<compile_context>
chip_gen: v7x
topology: tpu7x:2x2x1
jax: 0.10.0
libtpu: 0.0.40
codegen_flags: <defaults>
</compile_context>

<pallas_src>
import jax
import jax.numpy as jnp
import numpy as np
from jax.experimental import pallas as pl
from jax.experimental.pallas import tpu as pltpu

_EPS = 1e-5  # PyTorch InstanceNorm2d default (affine=False, no running stats)


def _unet_up_kernel(x_ref, w_ref, o_ref):
    # x_ref: (1, H+2, W+2, Cin)  one batch element, spatially zero-padded by 1.
    # w_ref: (4, 4*Cin, Cout)    per-phase im2col weights (phase index = 2*ph + pw).
    # o_ref: (1, 4, H, W, Cout)  per-phase output planes (f32).
    _, _, H, W, Cout = o_ref.shape
    K = w_ref.shape[1]                        # 4 * Cin

    x = x_ref[0]                              # (H+2, W+2, Cin)

    ys = []
    ssum = jnp.zeros((1, Cout), jnp.float32)
    ssq = jnp.zeros((1, Cout), jnp.float32)

    # --- transposed conv: 4 phases x one fat-K matmul each ---
    for ph in range(2):
        for pw in range(2):
            taps = [x[ph + th:ph + th + H, pw + tw:pw + tw + W, :]
                    for th in range(2) for tw in range(2)]          # 4 x (H, W, Cin)
            patch = jnp.concatenate(taps, axis=-1).reshape(H * W, K)
            y = jnp.dot(patch, w_ref[2 * ph + pw],
                        preferred_element_type=jnp.float32)         # (H*W, Cout) f32
            ssum += jnp.sum(y, axis=0, keepdims=True)
            ssq += jnp.sum(y * y, axis=0, keepdims=True)
            ys.append(y)

    # --- InstanceNorm2d (biased variance, eps=1e-5, no affine), fused stats ---
    inv_n = 1.0 / (4.0 * H * W)
    mean = ssum * inv_n
    var = ssq * inv_n - mean * mean
    inv_std = jax.lax.rsqrt(var + _EPS)

    # --- normalize + ReLU + store each phase plane ---
    for p, y in enumerate(ys):
        z = jnp.maximum((y - mean) * inv_std, 0.0)
        o_ref[0, p] = z.reshape(H, W, Cout).astype(o_ref.dtype)
    # TODO(synk): Dropout branch not emitted (module default dropout=0.0 -> identity).


def unet_up_forward(x_nchw, w_t, skip_nchw=None, compute_dtype=jnp.bfloat16):
    """x_nchw: (N, Cin, H, W); w_t: ConvTranspose2d weight (Cin, Cout, 4, 4);
    skip_nchw: (N, Cskip, 2H, 2W) or None. Returns NCHW output (f32),
    matching the PyTorch module in eval mode."""
    N, Cin, H, W = x_nchw.shape
    Cout = w_t.shape[1]
    OH, OW = 2 * H, 2 * W

    # --- glue: NCHW -> NHWC, zero-pad spatial by 1 (phase-decomposition halo) ---
    x = jnp.transpose(x_nchw, (0, 2, 3, 1))
    xp = jnp.pad(x, ((0, 0), (1, 1), (1, 1), (0, 0))).astype(compute_dtype)

    # --- glue: per-phase im2col weight (4, 4*Cin, Cout) ---
    #   y[2r+ph, 2c+pw, co] = sum_{th,tw,ci} xpad[r+ph+th, c+pw+tw, ci]
    #                                      * w_t[ci, co, 3-ph-2*th, 3-pw-2*tw]
    phase_w = []
    for ph in range(2):
        for pw in range(2):
            taps = [w_t[:, :, 3 - ph - 2 * th, 3 - pw - 2 * tw]
                    for th in range(2) for tw in range(2)]           # each (Cin, Cout)
            phase_w.append(jnp.concatenate(taps, axis=0))            # (4*Cin, Cout)
    wm = jnp.stack(phase_w, axis=0).astype(compute_dtype)            # (4, 4*Cin, Cout)

    out = pl.pallas_call(
        _unet_up_kernel,
        out_shape=jax.ShapeDtypeStruct((N, 4, H, W, Cout), jnp.float32),
        grid_spec=pltpu.PrefetchScalarGridSpec(
            num_scalar_prefetch=0,
            grid=(N,),
            in_specs=[
                pl.BlockSpec((1, H + 2, W + 2, Cin), lambda n: (n, 0, 0, 0)),
                pl.BlockSpec((4, 4 * Cin, Cout), lambda n: (0, 0, 0)),
            ],
            out_specs=pl.BlockSpec((1, 4, H, W, Cout),
                                   lambda n: (n, 0, 0, 0, 0)),
        ),
        compiler_params=pltpu.CompilerParams(
            dimension_semantics=("parallel",)),
    )(xp, wm)
    # TODO(synk): for very large feature maps on v7x (64 MiB VMEM) add a spatial
    # grid axis with a two-pass (stats-then-normalize) instance norm.

    # de-interleave phases: (N, 2, 2, H, W, Cout) -> (N, Cout, 2H, 2W)  (NCHW)
    y = out.reshape(N, 2, 2, H, W, Cout)
    y = jnp.transpose(y, (0, 5, 3, 1, 4, 2)).reshape(N, Cout, OH, OW)

    if skip_nchw is not None:
        y = jnp.concatenate([y, skip_nchw.astype(y.dtype)], axis=1)
    return y


def ref_forward(x_nchw, w_t, skip_nchw):
    """Pure-JAX reference of the PyTorch module (eval mode, dropout=0)."""
    w_conv = jnp.transpose(w_t[:, :, ::-1, ::-1], (1, 0, 2, 3))  # (Cout, Cin, 4, 4)
    y = jax.lax.conv_general_dilated(
        x_nchw, w_conv,
        window_strides=(1, 1),
        padding=((2, 2), (2, 2)),
        lhs_dilation=(2, 2),
        dimension_numbers=("NCHW", "OIHW", "NCHW"))
    mean = y.mean(axis=(2, 3), keepdims=True)
    var = ((y - mean) ** 2).mean(axis=(2, 3), keepdims=True)
    y = jnp.maximum((y - mean) * jax.lax.rsqrt(var + _EPS), 0.0)
    if skip_nchw is not None:
        y = jnp.concatenate([y, skip_nchw], axis=1)
    return y


if __name__ == "__main__":
    key = jax.random.PRNGKey(0)
    k1, k2, k3 = jax.random.split(key, 3)

    N, Cin, Cout, H, W = 2, 8, 8, 16, 16
    Cskip = 8

    x = jax.random.normal(k1, (N, Cin, H, W), dtype=jnp.float32)
    skip = jax.random.normal(k2, (N, Cskip, 2 * H, 2 * W), dtype=jnp.float32)
    # ConvTranspose2d weight, shape (in_size, out_size, 4, 4), bias=False.
    w_t = jax.random.normal(k3, (Cin, Cout, 4, 4), dtype=jnp.float32) * 0.1

    ref = jax.block_until_ready(ref_forward(x, w_t, skip))

    # f32 compute path: tight tolerance against the lax reference.
    out_f32 = jax.block_until_ready(
        unet_up_forward(x, w_t, skip, compute_dtype=jnp.float32))
    assert out_f32.shape == (N, Cout + Cskip, 2 * H, 2 * W), out_f32.shape
    np.testing.assert_allclose(np.asarray(out_f32), np.asarray(ref),
                               atol=1e-3, rtol=1e-3)

    # bf16 MXU-operand path (default): f32 accumulation/norm, bf16-level tolerance.
    out_bf16 = jax.block_until_ready(
        unet_up_forward(x, w_t, skip, compute_dtype=jnp.bfloat16))
    np.testing.assert_allclose(np.asarray(out_bf16), np.asarray(ref),
                               atol=5e-2, rtol=5e-2)

    print("KERNEL_OK")
</pallas_src>

<mosaic_0001>
module attributes {stable_mosaic.version = 11 : i64} {
  func.func @_unet_up_kernel(%arg0: i32, %arg1: memref<1x18x18x8xf32, #tpu.memory_space<vmem>>, %arg2: memref<4x32x8xf32, #tpu.memory_space<vmem>>, %arg3: memref<1x4x16x16x8xf32, #tpu.memory_space<vmem>>) attributes {dimension_semantics = [#tpu.dimension_semantics<parallel>], iteration_bounds = array<i64: 2>, scalar_prefetch = 0 : i64, scratch_operands = 0 : i64, tpu.core_type = #tpu.core_type<tc>, window_params = [{transform_indices = @transform_0, window_bounds = array<i64: 1, 18, 18, 8>}, {pipeline_mode = #tpu.pipeline_mode<synchronous>, transform_indices = @transform_1, window_bounds = array<i64: 4, 32, 8>}, {transform_indices = @transform_2, window_bounds = array<i64: 1, 4, 16, 16, 8>}]} {
    %c0 = arith.constant 0 : index
    %c0_0 = arith.constant 0 : index
    %c0_1 = arith.constant 0 : index
    %c0_2 = arith.constant 0 : index
    %0 = vector.load %arg1[%c0, %c0_0, %c0_1, %c0_2] : memref<1x18x18x8xf32, #tpu.memory_space<vmem>>, vector<1x18x18x8xf32>
    %1 = vector.shape_cast %0 : vector<1x18x18x8xf32> to vector<18x18x8xf32>
    %cst = arith.constant 0.000000e+00 : f32
    %2 = vector.broadcast %cst : f32 to vector<1x8xf32>
    %cst_3 = arith.constant 0.000000e+00 : f32
    %3 = vector.broadcast %cst_3 : f32 to vector<1x8xf32>
    %4 = vector.extract_strided_slice %1 {offsets = [0, 0, 0], sizes = [16, 16, 8], strides = [1, 1, 1]} : vector<18x18x8xf32> to vector<16x16x8xf32>
    %5 = vector.extract_strided_slice %1 {offsets = [0, 1, 0], sizes = [16, 16, 8], strides = [1, 1, 1]} : vector<18x18x8xf32> to vector<16x16x8xf32>
    %6 = vector.extract_strided_slice %1 {offsets = [1, 0, 0], sizes = [16, 16, 8], strides = [1, 1, 1]} : vector<18x18x8xf32> to vector<16x16x8xf32>
    %7 = vector.extract_strided_slice %1 {offsets = [1, 1, 0], sizes = [16, 16, 8], strides = [1, 1, 1]} : vector<18x18x8xf32> to vector<16x16x8xf32>
    %8 = tpu.concatenate %4, %5, %6, %7 in 2 : vector<16x16x8xf32>, vector<16x16x8xf32>, vector<16x16x8xf32>, vector<16x16x8xf32> -> vector<16x16x32xf32>
    %9 = vector.shape_cast %8 : vector<16x16x32xf32> to vector<256x32xf32>
    %c0_4 = arith.constant 0 : index
    %c0_5 = arith.constant 0 : index
    %c0_6 = arith.constant 0 : index
    %10 = vector.load %arg2[%c0_4, %c0_5, %c0_6] : memref<4x32x8xf32, #tpu.memory_space<vmem>>, vector<1x32x8xf32>
    %11 = vector.shape_cast %10 : vector<1x32x8xf32> to vector<32x8xf32>
    %cst_7 = arith.constant dense<0.000000e+00> : vector<256x8xf32>
    %12 = tpu.matmul %9, %11, %cst_7 {dimension_numbers = #tpu.dot_dimension_numbers<[1], [0], [0], [1], [0, 0, 1, 1], [], []>} : vector<256x32xf32>, vector<32x8xf32>, vector<256x8xf32> -> vector<256x8xf32>
    %cst_8 = arith.constant dense<0.000000e+00> : vector<8xf32>
    %13 = vector.multi_reduction <add>, %12, %cst_8 [0] : vector<256x8xf32> to vector<8xf32>
    %14 = vector.shape_cast %13 : vector<8xf32> to vector<1x8xf32>
    %15 = arith.addf %2, %14 : vector<1x8xf32>
    %16 = arith.mulf %12, %12 : vector<256x8xf32>
    %cst_9 = arith.constant dense<0.000000e+00> : vector<8xf32>
    %17 = vector.multi_reduction <add>, %16, %cst_9 [0] : vector<256x8xf32> to vector<8xf32>
    %18 = vector.shape_cast %17 : vector<8xf32> to vector<1x8xf32>
    %19 = arith.addf %3, %18 : vector<1x8xf32>
    %20 = vector.extract_strided_slice %1 {offsets = [0, 1, 0], sizes = [16, 16, 8], strides = [1, 1, 1]} : vector<18x18x8xf32> to vector<16x16x8xf32>
    %21 = vector.extract_strided_slice %1 {offsets = [0, 2, 0], sizes = [16, 16, 8], strides = [1, 1, 1]} : vector<18x18x8xf32> to vector<16x16x8xf32>
    %22 = vector.extract_strided_slice %1 {offsets = [1, 1, 0], sizes = [16, 16, 8], strides = [1, 1, 1]} : vector<18x18x8xf32> to vector<16x16x8xf32>
    %23 = vector.extract_strided_slice %1 {offsets = [1, 2, 0], sizes = [16, 16, 8], strides = [1, 1, 1]} : vector<18x18x8xf32> to vector<16x16x8xf32>
    %24 = tpu.concatenate %20, %21, %22, %23 in 2 : vector<16x16x8xf32>, vector<16x16x8xf32>, vector<16x16x8xf32>, vector<16x16x8xf32> -> vector<16x16x32xf32>
    %25 = vector.shape_cast %24 : vector<16x16x32xf32> to vector<256x32xf32>
    %c1 = arith.constant 1 : index
    %c0_10 = arith.constant 0 : index
    %c0_11 = arith.constant 0 : index
    %26 = vector.load %arg2[%c1, %c0_10, %c0_11] : memref<4x32x8xf32, #tpu.memory_space<vmem>>, vector<1x32x8xf32>
    %27 = vector.shape_cast %26 : vector<1x32x8xf32> to vector<32x8xf32>
    %cst_12 = arith.constant dense<0.000000e+00> : vector<256x8xf32>
    %28 = tpu.matmul %25, %27, %cst_12 {dimension_numbers = #tpu.dot_dimension_numbers<[1], [0], [0], [1], [0, 0, 1, 1], [], []>} : vector<256x32xf32>, vector<32x8xf32>, vector<256x8xf32> -> vector<256x8xf32>
    %cst_13 = arith.constant dense<0.000000e+00> : vector<8xf32>
    %29 = vector.multi_reduction <add>, %28, %cst_13 [0] : vector<256x8xf32> to vector<8xf32>
    %30 = vector.shape_cast %29 : vector<8xf32> to vector<1x8xf32>
    %31 = arith.addf %15, %30 : vector<1x8xf32>
    %32 = arith.mulf %28, %28 : vector<256x8xf32>
    %cst_14 = arith.constant dense<0.000000e+00> : vector<8xf32>
    %33 = vector.multi_reduction <add>, %32, %cst_14 [0] : vector<256x8xf32> to vector<8xf32>
    %34 = vector.shape_cast %33 : vector<8xf32> to vector<1x8xf32>
    %35 = arith.addf %19, %34 : vector<1x8xf32>
    %36 = vector.extract_strided_slice %1 {offsets = [1, 0, 0], sizes = [16, 16, 8], strides = [1, 1, 1]} : vector<18x18x8xf32> to vector<16x16x8xf32>
    %37 = vector.extract_strided_slice %1 {offsets = [1, 1, 0], sizes = [16, 16, 8], strides = [1, 1, 1]} : vector<18x18x8xf32> to vector<16x16x8xf32>
    %38 = vector.extract_strided_slice %1 {offsets = [2, 0, 0], sizes = [16, 16, 8], strides = [1, 1, 1]} : vector<18x18x8xf32> to vector<16x16x8xf32>
    %39 = vector.extract_strided_slice %1 {offsets = [2, 1, 0], sizes = [16, 16, 8], strides = [1, 1, 1]} : vector<18x18x8xf32> to vector<16x16x8xf32>
    %40 = tpu.concatenate %36, %37, %38, %39 in 2 : vector<16x16x8xf32>, vector<16x16x8xf32>, vector<16x16x8xf32>, vector<16x16x8xf32> -> vector<16x16x32xf32>
    %41 = vector.shape_cast %40 : vector<16x16x32xf32> to vector<256x32xf32>
    %c2 = arith.constant 2 : index
    %c0_15 = arith.constant 0 : index
    %c0_16 = arith.constant 0 : index
    %42 = vector.load %arg2[%c2, %c0_15, %c0_16] : memref<4x32x8xf32, #tpu.memory_space<vmem>>, vector<1x32x8xf32>
    %43 = vector.shape_cast %42 : vector<1x32x8xf32> to vector<32x8xf32>
    %cst_17 = arith.constant dense<0.000000e+00> : vector<256x8xf32>
    %44 = tpu.matmul %41, %43, %cst_17 {dimension_numbers = #tpu.dot_dimension_numbers<[1], [0], [0], [1], [0, 0, 1, 1], [], []>} : vector<256x32xf32>, vector<32x8xf32>, vector<256x8xf32> -> vector<256x8xf32>
    %cst_18 = arith.constant dense<0.000000e+00> : vector<8xf32>
    %45 = vector.multi_reduction <add>, %44, %cst_18 [0] : vector<256x8xf32> to vector<8xf32>
    %46 = vector.shape_cast %45 : vector<8xf32> to vector<1x8xf32>
    %47 = arith.addf %31, %46 : vector<1x8xf32>
    %48 = arith.mulf %44, %44 : vector<256x8xf32>
    %cst_19 = arith.constant dense<0.000000e+00> : vector<8xf32>
    %49 = vector.multi_reduction <add>, %48, %cst_19 [0] : vector<256x8xf32> to vector<8xf32>
    %50 = vector.shape_cast %49 : vector<8xf32> to vector<1x8xf32>
    %51 = arith.addf %35, %50 : vector<1x8xf32>
    %52 = vector.extract_strided_slice %1 {offsets = [1, 1, 0], sizes = [16, 16, 8], strides = [1, 1, 1]} : vector<18x18x8xf32> to vector<16x16x8xf32>
    %53 = vector.extract_strided_slice %1 {offsets = [1, 2, 0], sizes = [16, 16, 8], strides = [1, 1, 1]} : vector<18x18x8xf32> to vector<16x16x8xf32>
    %54 = vector.extract_strided_slice %1 {offsets = [2, 1, 0], sizes = [16, 16, 8], strides = [1, 1, 1]} : vector<18x18x8xf32> to vector<16x16x8xf32>
    %55 = vector.extract_strided_slice %1 {offsets = [2, 2, 0], sizes = [16, 16, 8], strides = [1, 1, 1]} : vector<18x18x8xf32> to vector<16x16x8xf32>
    %56 = tpu.concatenate %52, %53, %54, %55 in 2 : vector<16x16x8xf32>, vector<16x16x8xf32>, vector<16x16x8xf32>, vector<16x16x8xf32> -> vector<16x16x32xf32>
    %57 = vector.shape_cast %56 : vector<16x16x32xf32> to vector<256x32xf32>
    %c3 = arith.constant 3 : index
    %c0_20 = arith.constant 0 : index
    %c0_21 = arith.constant 0 : index
    %58 = vector.load %arg2[%c3, %c0_20, %c0_21] : memref<4x32x8xf32, #tpu.memory_space<vmem>>, vector<1x32x8xf32>
    %59 = vector.shape_cast %58 : vector<1x32x8xf32> to vector<32x8xf32>
    %cst_22 = arith.constant dense<0.000000e+00> : vector<256x8xf32>
    %60 = tpu.matmul %57, %59, %cst_22 {dimension_numbers = #tpu.dot_dimension_numbers<[1], [0], [0], [1], [0, 0, 1, 1], [], []>} : vector<256x32xf32>, vector<32x8xf32>, vector<256x8xf32> -> vector<256x8xf32>
    %cst_23 = arith.constant dense<0.000000e+00> : vector<8xf32>
    %61 = vector.multi_reduction <add>, %60, %cst_23 [0] : vector<256x8xf32> to vector<8xf32>
    %62 = vector.shape_cast %61 : vector<8xf32> to vector<1x8xf32>
    %63 = arith.addf %47, %62 : vector<1x8xf32>
    %64 = arith.mulf %60, %60 : vector<256x8xf32>
    %cst_24 = arith.constant dense<0.000000e+00> : vector<8xf32>
    %65 = vector.multi_reduction <add>, %64, %cst_24 [0] : vector<256x8xf32> to vector<8xf32>
    %66 = vector.shape_cast %65 : vector<8xf32> to vector<1x8xf32>
    %67 = arith.addf %51, %66 : vector<1x8xf32>
    %cst_25 = arith.constant 9.765625E-4 : f32
    %68 = vector.broadcast %cst_25 : f32 to vector<1x8xf32>
    %69 = arith.mulf %63, %68 : vector<1x8xf32>
    %cst_26 = arith.constant 9.765625E-4 : f32
    %70 = vector.broadcast %cst_26 : f32 to vector<1x8xf32>
    %71 = arith.mulf %67, %70 : vector<1x8xf32>
    %72 = arith.mulf %69, %69 : vector<1x8xf32>
    %73 = arith.subf %71, %72 : vector<1x8xf32>
    %cst_27 = arith.constant 9.99999974E-6 : f32
    %74 = vector.broadcast %cst_27 : f32 to vector<1x8xf32>
    %75 = arith.addf %73, %74 : vector<1x8xf32>
    %76 = math.rsqrt %75 : vector<1x8xf32>
    %77 = vector.broadcast %69 : vector<1x8xf32> to vector<256x8xf32>
    %78 = arith.subf %12, %77 : vector<256x8xf32>
    %79 = vector.broadcast %76 : vector<1x8xf32> to vector<256x8xf32>
    %80 = arith.mulf %78, %79 : vector<256x8xf32>
    %cst_28 = arith.constant 0.000000e+00 : f32
    %81 = vector.broadcast %cst_28 : f32 to vector<256x8xf32>
    %82 = arith.maximumf %80, %81 : vector<256x8xf32>
    %83 = vector.shape_cast %82 : vector<256x8xf32> to vector<16x16x8xf32>
    %c0_29 = arith.constant 0 : index
    %c0_30 = arith.constant 0 : index
    %c0_31 = arith.constant 0 : index
    %c0_32 = arith.constant 0 : index
    %c0_33 = arith.constant 0 : index
    %84 = vector.load %arg3[%c0_29, %c0_30, %c0_31, %c0_32, %c0_33] : memref<1x4x16x16x8xf32, #tpu.memory_space<vmem>>, vector<1x1x16x16x8xf32>
    %85 = vector.shape_cast %84 : vector<1x1x16x16x8xf32> to vector<16x16x8xf32>
    %86 = vector.shape_cast %83 : vector<16x16x8xf32> to vector<1x1x16x16x8xf32>
    tpu.vector_store %arg3[%c0_29, %c0_30, %c0_31, %c0_32, %c0_33], %86 {strides = array<i32>} : memref<1x4x16x16x8xf32, #tpu.memory_space<vmem>>, vector<1x1x16x16x8xf32>,
    %87 = vector.broadcast %69 : vector<1x8xf32> to vector<256x8xf32>
    %88 = arith.subf %28, %87 : vector<256x8xf32>
    %89 = vector.broadcast %76 : vector<1x8xf32> to vector<256x8xf32>
    %90 = arith.mulf %88, %89 : vector<256x8xf32>
    %cst_34 = arith.constant 0.000000e+00 : f32
    %91 = vector.broadcast %cst_34 : f32 to vector<256x8xf32>
    %92 = arith.maximumf %90, %91 : vector<256x8xf32>
    %93 = vector.shape_cast %92 : vector<256x8xf32> to vector<16x16x8xf32>
    %c0_35 = arith.constant 0 : index
    %c1_36 = arith.constant 1 : index
    %c0_37 = arith.constant 0 : index
    %c0_38 = arith.constant 0 : index
    %c0_39 = arith.constant 0 : index
    %94 = vector.load %arg3[%c0_35, %c1_36, %c0_37, %c0_38, %c0_39] : memref<1x4x16x16x8xf32, #tpu.memory_space<vmem>>, vector<1x1x16x16x8xf32>
    %95 = vector.shape_cast %94 : vector<1x1x16x16x8xf32> to vector<16x16x8xf32>
    %96 = vector.shape_cast %93 : vector<16x16x8xf32> to vector<1x1x16x16x8xf32>
    tpu.vector_store %arg3[%c0_35, %c1_36, %c0_37, %c0_38, %c0_39], %96 {strides = array<i32>} : memref<1x4x16x16x8xf32, #tpu.memory_space<vmem>>, vector<1x1x16x16x8xf32>,
    %97 = vector.broadcast %69 : vector<1x8xf32> to vector<256x8xf32>
    %98 = arith.subf %44, %97 : vector<256x8xf32>
    %99 = vector.broadcast %76 : vector<1x8xf32> to vector<256x8xf32>
    %100 = arith.mulf %98, %99 : vector<256x8xf32>
    %cst_40 = arith.constant 0.000000e+00 : f32
    %101 = vector.broadcast %cst_40 : f32 to vector<256x8xf32>
    %102 = arith.maximumf %100, %101 : vector<256x8xf32>
    %103 = vector.shape_cast %102 : vector<256x8xf32> to vector<16x16x8xf32>
    %c0_41 = arith.constant 0 : index
    %c2_42 = arith.constant 2 : index
    %c0_43 = arith.constant 0 : index
    %c0_44 = arith.constant 0 : index
    %c0_45 = arith.constant 0 : index
    %104 = vector.load %arg3[%c0_41, %c2_42, %c0_43, %c0_44, %c0_45] : memref<1x4x16x16x8xf32, #tpu.memory_space<vmem>>, vector<1x1x16x16x8xf32>
    %105 = vector.shape_cast %104 : vector<1x1x16x16x8xf32> to vector<16x16x8xf32>
    %106 = vector.shape_cast %103 : vector<16x16x8xf32> to vector<1x1x16x16x8xf32>
    tpu.vector_store %arg3[%c0_41, %c2_42, %c0_43, %c0_44, %c0_45], %106 {strides = array<i32>} : memref<1x4x16x16x8xf32, #tpu.memory_space<vmem>>, vector<1x1x16x16x8xf32>,
    %107 = vector.broadcast %69 : vector<1x8xf32> to vector<256x8xf32>
    %108 = arith.subf %60, %107 : vector<256x8xf32>
    %109 = vector.broadcast %76 : vector<1x8xf32> to vector<256x8xf32>
    %110 = arith.mulf %108, %109 : vector<256x8xf32>
    %cst_46 = arith.constant 0.000000e+00 : f32
    %111 = vector.broadcast %cst_46 : f32 to vector<256x8xf32>
    %112 = arith.maximumf %110, %111 : vector<256x8xf32>
    %113 = vector.shape_cast %112 : vector<256x8xf32> to vector<16x16x8xf32>
    %c0_47 = arith.constant 0 : index
    %c3_48 = arith.constant 3 : index
    %c0_49 = arith.constant 0 : index
    %c0_50 = arith.constant 0 : index
    %c0_51 = arith.constant 0 : index
    %114 = vector.load %arg3[%c0_47, %c3_48, %c0_49, %c0_50, %c0_51] : memref<1x4x16x16x8xf32, #tpu.memory_space<vmem>>, vector<1x1x16x16x8xf32>
    %115 = vector.shape_cast %114 : vector<1x1x16x16x8xf32> to vector<16x16x8xf32>
    %116 = vector.shape_cast %113 : vector<16x16x8xf32> to vector<1x1x16x16x8xf32>
    tpu.vector_store %arg3[%c0_47, %c3_48, %c0_49, %c0_50, %c0_51], %116 {strides = array<i32>} : memref<1x4x16x16x8xf32, #tpu.memory_space<vmem>>, vector<1x1x16x16x8xf32>,
    return
  }
  func.func @transform_0(%arg0: i32) -> (i32, i32, i32, i32) {
    %c0_i32 = arith.constant 0 : i32
    %c0_i32_0 = arith.constant 0 : i32
    %c0_i32_1 = arith.constant 0 : i32
    %c0_i32_2 = arith.constant 0 : i32
    return %arg0, %c0_i32, %c0_i32_0, %c0_i32_1 : i32, i32, i32, i32
  }
  func.func @transform_1(%arg0: i32) -> (i32, i32, i32) {
    %c0_i32 = arith.constant 0 : i32
    %c0_i32_0 = arith.constant 0 : i32
    %c0_i32_1 = arith.constant 0 : i32
    %c0_i32_2 = arith.constant 0 : i32
    return %c0_i32, %c0_i32_0, %c0_i32_1 : i32, i32, i32
  }
  func.func @transform_2(%arg0: i32) -> (i32, i32, i32, i32, i32) {
    %c0_i32 = arith.constant 0 : i32
    %c0_i32_0 = arith.constant 0 : i32
    %c0_i32_1 = arith.constant 0 : i32
    %c0_i32_2 = arith.constant 0 : i32
    %c0_i32_3 = arith.constant 0 : i32
    return %arg0, %c0_i32, %c0_i32_0, %c0_i32_1, %c0_i32_2 : i32, i32, i32, i32, i32
  }
}

</mosaic_0001>

<llo_original>
// kernel: tpu_custom_call.1
$region0: #{tpu_custom_call.1}
  #allocation0 [shape = 'u32[]', space=smem, size = 0x4, offset = 0x4, fixed_abs, tag = 'smem constant byte address 0x4 - core index']
  #allocation1 [shape = 'u32[144,128]{1,0:T(1,128)}', space=vmem, size = 0x12000, scoped, tag = 'internal scratch']
  %s0 = inlined_call_operand.vmem [shape: f32[2,18,18,8], index: 0, kind: input, shape index: {}]
  %s1 = inlined_call_operand.vmem [shape: f32[4,32,8], index: 1, kind: input, shape index: {}]
  %s2 = inlined_call_operand.vmem [shape: f32[2,4,16,16,8], index: 2, kind: output, shape index: {}]
  %s3 = sld [smem:[#allocation0]]
  $region41: #{tpu_custom_call.1} parent=0
    _
  %s5 = ssub.s32 1, %s3
  %s6 = scalar_select 0, %s5, %s3
  loop: start=0, step=1, limit=4
  $region2: #{tpu_custom_call.1} parent=0 // loop_pre_header
    _
  $region3: #{tpu_custom_call.1} parent=0 // loop_header
    %s8 = sphi 0, %s12
    %p9 = scmp.ge.s32.totalorder %s8, 4
    %s18 = sphi 0, %s20
    %s21 = sphi 0, %s18
    %s22 = sphi 0, %s21
    %s38 = sphi 0, %s22
    %s42 = sphi 0, %s42
    %s44 = sphi 0, %s42
    %s45 = sphi 0, %s44
    %s59 = sphi 0, %s45
    %s65 = sphi 0, %s67
    %s68 = sphi 0, %s65
    %s69 = sphi 0, %s68
    %s85 = sphi 0, %s69
  $region4: #{tpu_custom_call.1} parent=0 // loop_header_branch
    %11 = sbr.rel (%p9) target = $region8
  $region5: #{tpu_custom_call.1} parent=0 // loop_body
    %s13 = ssub.s32 %s8, 1
    %s14 = ssub.s32 %s8, 2
    %s15 = sadd.s32 %s8, 1
    %s16 = ssub.s32 %s8, %s15
    %p17 = scmp.eq.s32.totalorder %s16, 0
    %s19 = sadd.s32 %s18, 1
    %s20 = scalar_select %p17, %s18, %s19
    %p23 = pneg %p17
    %p24 = scmp.eq.s32.totalorder %s8, 1
    %p25 = por %p23, %p24
    %p26 = scmp.ne.s32.totalorder %s18, %s21
    %p27 = scmp.eq.s32.totalorder %s8, 0
    %p28 = por %p26, %p27
    %p29 = scmp.ne.s32.totalorder %s18, %s21
    %p30 = scmp.eq.s32.totalorder %s13, 1
    %p31 = por %p29, %p30
    %p32 = scmp.ne.s32.totalorder %s21, %s22
    %p33 = scmp.eq.s32.totalorder %s13, 0
    %p34 = por %p32, %p33
    %p35 = scmp.ne.s32.totalorder %s21, %s22
    %p36 = scmp.eq.s32.totalorder %s14, 1
    %p37 = por %p35, %p36
    %p39 = scmp.ne.s32.totalorder %s22, %s38
    %p40 = scmp.eq.s32.totalorder %s14, 0
    %p41 = por %p39, %p40
    %s43 = sadd.s32 %s42, 1
    %p46 = scmp.eq.s32.totalorder %s8, 1
    %p47 = scmp.ne.s32.totalorder %s42, %s44
    %p48 = scmp.eq.s32.totalorder %s8, 0
    %p49 = por %p47, %p48
    %p50 = scmp.ne.s32.totalorder %s42, %s44
    %p51 = scmp.eq.s32.totalorder %s13, 1
    %p52 = por %p50, %p51
    %p53 = scmp.ne.s32.totalorder %s44, %s45
    %p54 = scmp.eq.s32.totalorder %s13, 0
    %p55 = por %p53, %p54
    %p56 = scmp.ne.s32.totalorder %s44, %s45
    %p57 = scmp.eq.s32.totalorder %s14, 1
    %p58 = por %p56, %p57
    %p60 = scmp.ne.s32.totalorder %s45, %s59
    %p61 = scmp.eq.s32.totalorder %s14, 0
    %p62 = por %p60, %p61
    %s63 = ssub.s32 %s8, %s15
    %p64 = scmp.eq.s32.totalorder %s63, 0
    %s66 = sadd.s32 %s65, 1
    %s67 = scalar_select %p64, %s65, %s66
    %p70 = pneg %p64
    %p71 = scmp.eq.s32.totalorder %s8, 1
    %p72 = por %p70, %p71
    %p73 = scmp.ne.s32.totalorder %s65, %s68
    %p74 = scmp.eq.s32.totalorder %s8, 0
    %p75 = por %p73, %p74
    %p76 = scmp.ne.s32.totalorder %s65, %s68
    %p77 = scmp.eq.s32.totalorder %s13, 1
    %p78 = por %p76, %p77
    %p79 = scmp.ne.s32.totalorder %s68, %s69
    %p80 = scmp.eq.s32.totalorder %s13, 0
    %p81 = por %p79, %p80
    %p82 = scmp.ne.s32.totalorder %s68, %s69
    %p83 = scmp.eq.s32.totalorder %s14, 1
    %p84 = por %p82, %p83
    %p86 = scmp.ne.s32.totalorder %s69, %s85
    %p87 = scmp.eq.s32.totalorder %s14, 0
    %p88 = por %p86, %p87
    %p89 = scmp.le.s32.totalorder 1, %s8
    %p90 = scmp.lt.s32.totalorder %s8, 3
    %p91 = pnand %p89, %p90
    %p92 = pneg %p91
    // Predicated region
    $region9: #{tpu_custom_call.1} parent=5 // pred_check
      _
    $region10: #{tpu_custom_call.1} parent=5 // pred_check_branch
      %94 = sbr.rel (%p91) target = $region12
    $region11: #{tpu_custom_call.1} parent=5 // pred_region
      %s95 = ssub.s32 %s8, 1
      // Predicated region
      $region13: #{tpu_custom_call.1} parent=11 // pred_check
        %p96 = pneg %p55
      $region14: #{tpu_custom_call.1} parent=11 // pred_check_branch
        %98 = sbr.rel (%p96) target = $region16
      $region15: #{tpu_custom_call.1} parent=11 // pred_region
        _
      $region16: #{tpu_custom_call.1} parent=11 // pred_fallthru
        _
    $region12: #{tpu_custom_call.1} parent=5 // pred_fallthru
      _
    %p99 = scmp.lt.s32.totalorder %s8, 2
    // Predicated region
    $region17: #{tpu_custom_call.1} parent=5 // pred_check
      %p100 = pneg %p99
    $region18: #{tpu_custom_call.1} parent=5 // pred_check_branch
      %102 = sbr.rel (%p100) target = $region20
    $region19: #{tpu_custom_call.1} parent=5 // pred_region
      // Predicated region
      $region21: #{tpu_custom_call.1} parent=19 // pred_check
        %p103 = pneg %p28
      $region22: #{tpu_custom_call.1} parent=19 // pred_check_branch
        %105 = sbr.rel (%p103) target = $region24
      $region23: #{tpu_custom_call.1} parent=19 // pred_region
        %p106 = scmp.lt.s32.totalorder %s8, 1
        %s107 = scalar_select %p106, %s8, 1
        %s108 = smul.addr %s107, 54
        %s109 = smul.addr %s108, 8
        %s110 = scalar_lea.vmem %s0, %s109
      $region24: #{tpu_custom_call.1} parent=19 // pred_fallthru
        _
    $region20: #{tpu_custom_call.1} parent=5 // pred_fallthru
      _
    %p111 = scmp.le.s32.totalorder 1, %s8
    %p112 = scmp.lt.s32.totalorder %s8, 3
    %p113 = pnand %p111, %p112
    %p114 = pneg %p113
    // Predicated region
    $region25: #{tpu_custom_call.1} parent=5 // pred_check
      _
    $region26: #{tpu_custom_call.1} parent=5 // pred_check_branch
      %116 = sbr.rel (%p113) target = $region28
    $region27: #{tpu_custom_call.1} parent=5 // pred_region
      %s117 = ssub.s32 %s8, 1
      %p118 = scmp.lt.s32.totalorder %s13, 1
      %s119 = scalar_select %p118, %s13, 1
      %s120 = smul.addr %s119, 54
      %s121 = smul.addr %s120, 8
      %s122 = scalar_lea.vmem %s0, %s121
      %p123 = pneg %p34
      %p124 = pneg %p31
      %p125 = pneg %p55
      %p126 = pneg %p52
      %p127 = pneg %p81
      %p128 = pneg %p78
      %p129 = scmp.lt.s32.totalorder %s13, 1
      %s130 = scalar_select %p129, %s13, 1
      %s131 = smul.addr %s130, 128
      %s132 = smul.addr %s131, 8
      %s133 = scalar_lea.vmem %s2, %s132
      %p134 = scmp.lt.s32.totalorder %s13, 1
      %s135 = scalar_select %p134, %s13, 1
      %s136 = smul.addr %s135, 54
      %s137 = smul.addr %s136, 8
      %s138 = scalar_lea.vmem %s0, %s137
      %p139 = scmp.lt.s32.totalorder %s13, 1
      %s140 = scalar_select %p139, %s13, 1
      %s141 = smul.addr %s140, 128
      %s142 = smul.addr %s141, 8
      %s143 = scalar_lea.vmem %s2, %s142
      %v144 = vld [vmem:[%s138] sm:$0xff]
      %v145 = vld [vmem:[%s138 + $0x8] sm:$0xff]
      %v146 = vld [vmem:[%s138 + $0x10] sm:$0x3]
      %v147 = vld [vmem:[%s138 + $0x18] sm:$0xff]
      %v148 = vld [vmem:[%s138 + $0x20] sm:$0xff]
      %v149 = vld [vmem:[%s138 + $0x28] sm:$0x3]
      %v150 = vld [vmem:[%s138 + $0x30] sm:$0xff]
      %v151 = vld [vmem:[%s138 + $0x38] sm:$0xff]
      %v152 = vld [vmem:[%s138 + $0x40] sm:$0x3]
      %v153 = vld [vmem:[%s138 + $0x48] sm:$0xff]
      %v154 = vld [vmem:[%s138 + $0x50] sm:$0xff]
      %v155 = vld [vmem:[%s138 + $0x58] sm:$0x3]
      %v156 = vld [vmem:[%s138 + $0x60] sm:$0xff]
      %v157 = vld [vmem:[%s138 + $0x68] sm:$0xff]
      %v158 = vld [vmem:[%s138 + $0x70] sm:$0x3]
      %v159 = vld [vmem:[%s138 + $0x78] sm:$0xff]
      %v160 = vld [vmem:[%s138 + $0x80] sm:$0xff]
      %v161 = vld [vmem:[%s138 + $0x88] sm:$0x3]
      %v162 = vld [vmem:[%s138 + $0x90] sm:$0xff]
      %v163 = vld [vmem:[%s138 + $0x98] sm:$0xff]
      %v164 = vld [vmem:[%s138 + $0xa0] sm:$0x3]
      %v165 = vld [vmem:[%s138 + $0xa8] sm:$0xff]
      %v166 = vld [vmem:[%s138 + $0xb0] sm:$0xff]
      %v167 = vld [vmem:[%s138 + $0xb8] sm:$0x3]
      %v168 = vld [vmem:[%s138 + $0xc0] sm:$0xff]
      %v169 = vld [vmem:[%s138 + $0xc8] sm:$0xff]
      %v170 = vld [vmem:[%s138 + $0xd0] sm:$0x3]
      %v171 = vld [vmem:[%s138 + $0xd8] sm:$0xff]
      %v172 = vld [vmem:[%s138 + $0xe0] sm:$0xff]
      %v173 = vld [vmem:[%s138 + $0xe8] sm:$0x3]
      %v174 = vld [vmem:[%s138 + $0xf0] sm:$0xff]
      %v175 = vld [vmem:[%s138 + $0xf8] sm:$0xff]
      %v176 = vld [vmem:[%s138 + $0x100] sm:$0x3]
      %v177 = vld [vmem:[%s138 + $0x108] sm:$0xff]
      %v178 = vld [vmem:[%s138 + $0x110] sm:$0xff]
      %v179 = vld [vmem:[%s138 + $0x118] sm:$0x3]
      %v180 = vld [vmem:[%s138 + $0x120] sm:$0xff]
      %v181 = vld [vmem:[%s138 + $0x128] sm:$0xff]
      %v182 = vld [vmem:[%s138 + $0x130] sm:$0x3]
      %v183 = vld [vmem:[%s138 + $0x138] sm:$0xff]
      %v184 = vld [vmem:[%s138 + $0x140] sm:$0xff]
      %v185 = vld [vmem:[%s138 + $0x148] sm:$0x3]
      %v186 = vld [vmem:[%s138 + $0x150] sm:$0xff]
      %v187 = vld [vmem:[%s138 + $0x158] sm:$0xff]
      %v188 = vld [vmem:[%s138 + $0x160] sm:$0x3]
      %v189 = vld [vmem:[%s138 + $0x168] sm:$0xff]
      %v190 = vld [vmem:[%s138 + $0x170] sm:$0xff]
      %v191 = vld [vmem:[%s138 + $0x178] sm:$0x3]
      %v192 = vld [vmem:[%s138 + $0x180] sm:$0xff]
      %v193 = vld [vmem:[%s138 + $0x188] sm:$0xff]
      %v194 = vld [vmem:[%s138 + $0x190] sm:$0x3]
      %v195 = vld [vmem:[%s138 + $0x198] sm:$0xff]
      %v196 = vld [vmem:[%s138 + $0x1a0] sm:$0xff]
      %v197 = vld [vmem:[%s138 + $0x1a8] sm:$0x3]
      %vm246 = vcmask 1046528
      %v247 = vrot.slane %v144, 1
      %v248 = vrot.slane %v145, 1
      %v249 = vsel %vm246, %v247, %v248
      %v250 = vrot.slane %v146, 1
      %v251 = vsel %vm246, %v248, %v250
      %v252 = vrot.slane %v147, 1
      %v253 = vrot.slane %v148, 1
      %v254 = vsel %vm246, %v252, %v253
      %v255 = vrot.slane %v149, 1
      %v256 = vsel %vm246, %v253, %v255
      %v257 = vrot.slane %v150, 1
      %v258 = vrot.slane %v151, 1
      %v259 = vsel %vm246, %v257, %v258
      %v260 = vrot.slane %v152, 1
      %v261 = vsel %vm246, %v258, %v260
      %v262 = vrot.slane %v153, 1
      %v263 = vrot.slane %v154, 1
      %v264 = vsel %vm246, %v262, %v263
      %v265 = vrot.slane %v155, 1
      %v266 = vsel %vm246, %v263, %v265
      %v267 = vrot.slane %v156, 1
      %v268 = vrot.slane %v157, 1
      %v269 = vsel %vm246, %v267, %v268
      %v270 = vrot.slane %v158, 1
      %v271 = vsel %vm246, %v268, %v270
      %v272 = vrot.slane %v159, 1
      %v273 = vrot.slane %v160, 1
      %v274 = vsel %vm246, %v272, %v273
      %v275 = vrot.slane %v161, 1
      %v276 = vsel %vm246, %v273, %v275
      %v277 = vrot.slane %v162, 1
      %v278 = vrot.slane %v163, 1
      %v279 = vsel %vm246, %v277, %v278
      %v280 = vrot.slane %v164, 1
      %v281 = vsel %vm246, %v278, %v280
      %v282 = vrot.slane %v165, 1
      %v283 = vrot.slane %v166, 1
      %v284 = vsel %vm246, %v282, %v283
      %v285 = vrot.slane %v167, 1
      %v286 = vsel %vm246, %v283, %v285
      %v287 = vrot.slane %v168, 1
      %v288 = vrot.slane %v169, 1
      %v289 = vsel %vm246, %v287, %v288
      %v290 = vrot.slane %v170, 1
      %v291 = vsel %vm246, %v288, %v290
      %v292 = vrot.slane %v171, 1
      %v293 = vrot.slane %v172, 1
      %v294 = vsel %vm246, %v292, %v293
      %v295 = vrot.slane %v173, 1
      %v296 = vsel %vm246, %v293, %v295
      %v297 = vrot.slane %v174, 1
      %v298 = vrot.slane %v175, 1
      %v299 = vsel %vm246, %v297, %v298
      %v300 = vrot.slane %v176, 1
      %v301 = vsel %vm246, %v298, %v300
      %v302 = vrot.slane %v177, 1
      %v303 = vrot.slane %v178, 1
      %v304 = vsel %vm246, %v302, %v303
      %v305 = vrot.slane %v179, 1
      %v306 = vsel %vm246, %v303, %v305
      %v307 = vrot.slane %v180, 1
      %v308 = vrot.slane %v181, 1
      %v309 = vsel %vm246, %v307, %v308
      %v310 = vrot.slane %v182, 1
      %v311 = vsel %vm246, %v308, %v310
      %v312 = vrot.slane %v183, 1
      %v313 = vrot.slane %v184, 1
      %v314 = vsel %vm246, %v312, %v313
      %v315 = vrot.slane %v185, 1
      %v316 = vsel %vm246, %v313, %v315
      %v317 = vrot.slane %v186, 1
      %v318 = vrot.slane %v187, 1
      %v319 = vsel %vm246, %v317, %v318
      %v320 = vrot.slane %v188, 1
      %v321 = vsel %vm246, %v318, %v320
      %v322 = vrot.slane %v189, 1
      %v323 = vrot.slane %v190, 1
      %v324 = vsel %vm246, %v322, %v323
      %v325 = vrot.slane %v191, 1
      %v326 = vsel %vm246, %v323, %v325
      %327 = vrot.lane.b32.xlu0 %v249, 8
      %v328 = vpop.permute.xlu0 %327
      %329 = vrot.lane.b32.xlu0 %v251, 8
      %v330 = vpop.permute.xlu0 %329
      %331 = vrot.lane.b32.xlu0 %v254, 8
      %v332 = vpop.permute.xlu0 %331
      %333 = vrot.lane.b32.xlu0 %v256, 8
      %v334 = vpop.permute.xlu0 %333
      %335 = vrot.lane.b32.xlu0 %v259, 8
      %v336 = vpop.permute.xlu0 %335
      %337 = vrot.lane.b32.xlu0 %v261, 8
      %v338 = vpop.permute.xlu0 %337
      %339 = vrot.lane.b32.xlu0 %v264, 8
      %v340 = vpop.permute.xlu0 %339
      %341 = vrot.lane.b32.xlu0 %v266, 8
      %v342 = vpop.permute.xlu0 %341
      %343 = vrot.lane.b32.xlu0 %v269, 8
      %v344 = vpop.permute.xlu0 %343
      %345 = vrot.lane.b32.xlu0 %v271, 8
      %v346 = vpop.permute.xlu0 %345
      %347 = vrot.lane.b32.xlu0 %v274, 8
      %v348 = vpop.permute.xlu0 %347
      %349 = vrot.lane.b32.xlu0 %v276, 8
      %v350 = vpop.permute.xlu0 %349
      %351 = vrot.lane.b32.xlu0 %v279, 8
      %v352 = vpop.permute.xlu0 %351
      %353 = vrot.lane.b32.xlu0 %v281, 8
      %v354 = vpop.permute.xlu0 %353
      %355 = vrot.lane.b32.xlu0 %v284, 8
      %v356 = vpop.permute.xlu0 %355
      %357 = vrot.lane.b32.xlu0 %v286, 8
      %v358 = vpop.permute.xlu0 %357
      %359 = vrot.lane.b32.xlu0 %v289, 8
      %v360 = vpop.permute.xlu0 %359
      %361 = vrot.lane.b32.xlu0 %v291, 8
      %v362 = vpop.permute.xlu0 %361
      %363 = vrot.lane.b32.xlu0 %v294, 8
      %v364 = vpop.permute.xlu0 %363
      %365 = vrot.lane.b32.xlu0 %v296, 8
      %v366 = vpop.permute.xlu0 %365
      %367 = vrot.lane.b32.xlu0 %v299, 8
      %v368 = vpop.permute.xlu0 %367
      %369 = vrot.lane.b32.xlu0 %v301, 8
      %v370 = vpop.permute.xlu0 %369
      %371 = vrot.lane.b32.xlu0 %v304, 8
      %v372 = vpop.permute.xlu0 %371
      %373 = vrot.lane.b32.xlu0 %v306, 8
      %v374 = vpop.permute.xlu0 %373
      %375 = vrot.lane.b32.xlu0 %v309, 8
      %v376 = vpop.permute.xlu0 %375
      %377 = vrot.lane.b32.xlu0 %v311, 8
      %v378 = vpop.permute.xlu0 %377
      %379 = vrot.lane.b32.xlu0 %v314, 8
      %v380 = vpop.permute.xlu0 %379
      %381 = vrot.lane.b32.xlu0 %v316, 8
      %v382 = vpop.permute.xlu0 %381
      %383 = vrot.lane.b32.xlu0 %v319, 8
      %v384 = vpop.permute.xlu0 %383
      %385 = vrot.lane.b32.xlu0 %v321, 8
      %v386 = vpop.permute.xlu0 %385
      %387 = vrot.lane.b32.xlu0 %v324, 8
      %v388 = vpop.permute.xlu0 %387
      %389 = vrot.lane.b32.xlu0 %v326, 8
      %v390 = vpop.permute.xlu0 %389
      %425 = vrot.lane.b32.xlu0 %v147, 16
      %v426 = vpop.permute.xlu0 %425
      %427 = vrot.lane.b32.xlu0 %v148, 16
      %v428 = vpop.permute.xlu0 %427
      %429 = vrot.lane.b32.xlu0 %v150, 16
      %v430 = vpop.permute.xlu0 %429
      %431 = vrot.lane.b32.xlu0 %v151, 16
      %v432 = vpop.permute.xlu0 %431
      %433 = vrot.lane.b32.xlu0 %v153, 16
      %v434 = vpop.permute.xlu0 %433
      %435 = vrot.lane.b32.xlu0 %v154, 16
      %v436 = vpop.permute.xlu0 %435
      %437 = vrot.lane.b32.xlu0 %v156, 16
      %v438 = vpop.permute.xlu0 %437
      %439 = vrot.lane.b32.xlu0 %v157, 16
      %v440 = vpop.permute.xlu0 %439
      %441 = vrot.lane.b32.xlu0 %v159, 16
      %v442 = vpop.permute.xlu0 %441
      %443 = vrot.lane.b32.xlu0 %v160, 16
      %v444 = vpop.permute.xlu0 %443
      %445 = vrot.lane.b32.xlu0 %v162, 16
      %v446 = vpop.permute.xlu0 %445
      %447 = vrot.lane.b32.xlu0 %v163, 16
      %v448 = vpop.permute.xlu0 %447
      %449 = vrot.lane.b32.xlu0 %v165, 16
      %v450 = vpop.permute.xlu0 %449
      %451 = vrot.lane.b32.xlu0 %v166, 16
      %v452 = vpop.permute.xlu0 %451
      %453 = vrot.lane.b32.xlu0 %v168, 16
      %v454 = vpop.permute.xlu0 %453
      %455 = vrot.lane.b32.xlu0 %v169, 16
      %v456 = vpop.permute.xlu0 %455
      %457 = vrot.lane.b32.xlu0 %v171, 16
      %v458 = vpop.permute.xlu0 %457
      %459 = vrot.lane.b32.xlu0 %v172, 16
      %v460 = vpop.permute.xlu0 %459
      %461 = vrot.lane.b32.xlu0 %v174, 16
      %v462 = vpop.permute.xlu0 %461
      %463 = vrot.lane.b32.xlu0 %v175, 16
      %v464 = vpop.permute.xlu0 %463
      %465 = vrot.lane.b32.xlu0 %v177, 16
      %v466 = vpop.permute.xlu0 %465
      %467 = vrot.lane.b32.xlu0 %v178, 16
      %v468 = vpop.permute.xlu0 %467
      %469 = vrot.lane.b32.xlu0 %v180, 16
      %v470 = vpop.permute.xlu0 %469
      %471 = vrot.lane.b32.xlu0 %v181, 16
      %v472 = vpop.permute.xlu0 %471
      %473 = vrot.lane.b32.xlu0 %v183, 16
      %v474 = vpop.permute.xlu0 %473
      %475 = vrot.lane.b32.xlu0 %v184, 16
      %v476 = vpop.permute.xlu0 %475
      %477 = vrot.lane.b32.xlu0 %v186, 16
      %v478 = vpop.permute.xlu0 %477
      %479 = vrot.lane.b32.xlu0 %v187, 16
      %v480 = vpop.permute.xlu0 %479
      %481 = vrot.lane.b32.xlu0 %v189, 16
      %v482 = vpop.permute.xlu0 %481
      %483 = vrot.lane.b32.xlu0 %v190, 16
      %v484 = vpop.permute.xlu0 %483
      %485 = vrot.lane.b32.xlu0 %v192, 16
      %v486 = vpop.permute.xlu0 %485
      %487 = vrot.lane.b32.xlu0 %v193, 16
      %v488 = vpop.permute.xlu0 %487
      %v522 = vrot.slane %v192, 1
      %v523 = vrot.slane %v193, 1
      %v524 = vsel %vm246, %v522, %v523
      %v525 = vrot.slane %v194, 1
      %v526 = vsel %vm246, %v523, %v525
      %527 = vrot.lane.b32.xlu0 %v254, 24
      %v528 = vpop.permute.xlu0 %527
      %529 = vrot.lane.b32.xlu0 %v256, 24
      %v530 = vpop.permute.xlu0 %529
      %531 = vrot.lane.b32.xlu0 %v259, 24
      %v532 = vpop.permute.xlu0 %531
      %533 = vrot.lane.b32.xlu0 %v261, 24
      %v534 = vpop.permute.xlu0 %533
      %535 = vrot.lane.b32.xlu0 %v264, 24
      %v536 = vpop.permute.xlu0 %535
      %537 = vrot.lane.b32.xlu0 %v266, 24
      %v538 = vpop.permute.xlu0 %537
      %539 = vrot.lane.b32.xlu0 %v269, 24
      %v540 = vpop.permute.xlu0 %539
      %541 = vrot.lane.b32.xlu0 %v271, 24
      %v542 = vpop.permute.xlu0 %541
      %543 = vrot.lane.b32.xlu0 %v274, 24
      %v544 = vpop.permute.xlu0 %543
      %545 = vrot.lane.b32.xlu0 %v276, 24
      %v546 = vpop.permute.xlu0 %545
      %547 = vrot.lane.b32.xlu0 %v279, 24
      %v548 = vpop.permute.xlu0 %547
      %549 = vrot.lane.b32.xlu0 %v281, 24
      %v550 = vpop.permute.xlu0 %549
      %551 = vrot.lane.b32.xlu0 %v284, 24
      %v552 = vpop.permute.xlu0 %551
      %553 = vrot.lane.b32.xlu0 %v286, 24
      %v554 = vpop.permute.xlu0 %553
      %555 = vrot.lane.b32.xlu0 %v289, 24
      %v556 = vpop.permute.xlu0 %555
      %557 = vrot.lane.b32.xlu0 %v291, 24
      %v558 = vpop.permute.xlu0 %557
      %559 = vrot.lane.b32.xlu0 %v294, 24
      %v560 = vpop.permute.xlu0 %559
      %561 = vrot.lane.b32.xlu0 %v296, 24
      %v562 = vpop.permute.xlu0 %561
      %563 = vrot.lane.b32.xlu0 %v299, 24
      %v564 = vpop.permute.xlu0 %563
      %565 = vrot.lane.b32.xlu0 %v301, 24
      %v566 = vpop.permute.xlu0 %565
      %567 = vrot.lane.b32.xlu0 %v304, 24
      %v568 = vpop.permute.xlu0 %567
      %569 = vrot.lane.b32.xlu0 %v306, 24
      %v570 = vpop.permute.xlu0 %569
      %571 = vrot.lane.b32.xlu0 %v309, 24
      %v572 = vpop.permute.xlu0 %571
      %573 = vrot.lane.b32.xlu0 %v311, 24
      %v574 = vpop.permute.xlu0 %573
      %575 = vrot.lane.b32.xlu0 %v314, 24
      %v576 = vpop.permute.xlu0 %575
      %577 = vrot.lane.b32.xlu0 %v316, 24
      %v578 = vpop.permute.xlu0 %577
      %579 = vrot.lane.b32.xlu0 %v319, 24
      %v580 = vpop.permute.xlu0 %579
      %581 = vrot.lane.b32.xlu0 %v321, 24
      %v582 = vpop.permute.xlu0 %581
      %583 = vrot.lane.b32.xlu0 %v324, 24
      %v584 = vpop.permute.xlu0 %583
      %585 = vrot.lane.b32.xlu0 %v326, 24
      %v586 = vpop.permute.xlu0 %585
      %587 = vrot.lane.b32.xlu0 %v524, 24
      %v588 = vpop.permute.xlu0 %587
      %589 = vrot.lane.b32.xlu0 %v526, 24
      %v590 = vpop.permute.xlu0 %589
      %vm623 = vcmask 64512
      %v624 = vsel %vm623, %v144, %v328
      %v625 = vsel %vm623, %v145, %v330
      %v626 = vsel %vm623, %v147, %v332
      %v627 = vsel %vm623, %v148, %v334
      %v628 = vsel %vm623, %v150, %v336
      %v629 = vsel %vm623, %v151, %v338
      %v630 = vsel %vm623, %v153, %v340
      %v631 = vsel %vm623, %v154, %v342
      %v632 = vsel %vm623, %v156, %v344
      %v633 = vsel %vm623, %v157, %v346
      %v634 = vsel %vm623, %v159, %v348
      %v635 = vsel %vm623, %v160, %v350
      %v636 = vsel %vm623, %v162, %v352
      %v637 = vsel %vm623, %v163, %v354
      %v638 = vsel %vm623, %v165, %v356
      %v639 = vsel %vm623, %v166, %v358
      %v640 = vsel %vm623, %v168, %v360
      %v641 = vsel %vm623, %v169, %v362
      %v642 = vsel %vm623, %v171, %v364
      %v643 = vsel %vm623, %v172, %v366
      %v644 = vsel %vm623, %v174, %v368
      %v645 = vsel %vm623, %v175, %v370
      %v646 = vsel %vm623, %v177, %v372
      %v647 = vsel %vm623, %v178, %v374
      %v648 = vsel %vm623, %v180, %v376
      %v649 = vsel %vm623, %v181, %v378
      %v650 = vsel %vm623, %v183, %v380
      %v651 = vsel %vm623, %v184, %v382
      %v652 = vsel %vm623, %v186, %v384
      %v653 = vsel %vm623, %v187, %v386
      %v654 = vsel %vm623, %v189, %v388
      %v655 = vsel %vm623, %v190, %v390
      %vm656 = vcmask 130048
      %v657 = vsel %vm656, %v624, %v426
      %v658 = vsel %vm656, %v625, %v428
      %v659 = vsel %vm656, %v626, %v430
      %v660 = vsel %vm656, %v627, %v432
      %v661 = vsel %vm656, %v628, %v434
      %v662 = vsel %vm656, %v629, %v436
      %v663 = vsel %vm656, %v630, %v438
      %v664 = vsel %vm656, %v631, %v440
      %v665 = vsel %vm656, %v632, %v442
      %v666 = vsel %vm656, %v633, %v444
      %v667 = vsel %vm656, %v634, %v446
      %v668 = vsel %vm656, %v635, %v448
      %v669 = vsel %vm656, %v636, %v450
      %v670 = vsel %vm656, %v637, %v452
      %v671 = vsel %vm656, %v638, %v454
      %v672 = vsel %vm656, %v639, %v456
      %v673 = vsel %vm656, %v640, %v458
      %v674 = vsel %vm656, %v641, %v460
      %v675 = vsel %vm656, %v642, %v462
      %v676 = vsel %vm656, %v643, %v464
      %v677 = vsel %vm656, %v644, %v466
      %v678 = vsel %vm656, %v645, %v468
      %v679 = vsel %vm656, %v646, %v470
      %v680 = vsel %vm656, %v647, %v472
      %v681 = vsel %vm656, %v648, %v474
      %v682 = vsel %vm656, %v649, %v476
      %v683 = vsel %vm656, %v650, %v478
      %v684 = vsel %vm656, %v651, %v480
      %v685 = vsel %vm656, %v652, %v482
      %v686 = vsel %vm656, %v653, %v484
      %v687 = vsel %vm656, %v654, %v486
      %v688 = vsel %vm656, %v655, %v488
      %vm689 = vcmask 195584
      %v690 = vsel %vm689, %v657, %v528
      %v691 = vsel %vm689, %v658, %v530
      %v692 = vsel %vm689, %v659, %v532
      %v693 = vsel %vm689, %v660, %v534
      %v694 = vsel %vm689, %v661, %v536
      %v695 = vsel %vm689, %v662, %v538
      %v696 = vsel %vm689, %v663, %v540
      %v697 = vsel %vm689, %v664, %v542
      %v698 = vsel %vm689, %v665, %v544
      %v699 = vsel %vm689, %v666, %v546
      %v700 = vsel %vm689, %v667, %v548
      %v701 = vsel %vm689, %v668, %v550
      %v702 = vsel %vm689, %v669, %v552
      %v703 = vsel %vm689, %v670, %v554
      %v704 = vsel %vm689, %v671, %v556
      %v705 = vsel %vm689, %v672, %v558
      %v706 = vsel %vm689, %v673, %v560
      %v707 = vsel %vm689, %v674, %v562
      %v708 = vsel %vm689, %v675, %v564
      %v709 = vsel %vm689, %v676, %v566
      %v710 = vsel %vm689, %v677, %v568
      %v711 = vsel %vm689, %v678, %v570
      %v712 = vsel %vm689, %v679, %v572
      %v713 = vsel %vm689, %v680, %v574
      %v714 = vsel %vm689, %v681, %v576
      %v715 = vsel %vm689, %v682, %v578
      %v716 = vsel %vm689, %v683, %v580
      %v717 = vsel %vm689, %v684, %v582
      %v718 = vsel %vm689, %v685, %v584
      %v719 = vsel %vm689, %v686, %v586
      %v720 = vsel %vm689, %v687, %v588
      %v721 = vsel %vm689, %v688, %v590
      %v722 = vld [vmem:[%s1] sm:$0xff]
      %v723 = vld [vmem:[%s1 + $0x8] sm:$0xff]
      %v724 = vld [vmem:[%s1 + $0x10] sm:$0xff]
      %v725 = vld [vmem:[%s1 + $0x18] sm:$0xff]
      %vm726 = vcmask 261120
      %v728 = vsel %vm726, %v690, 0
      %v731 = vsel %vm726, %v691, 0
      %v734 = vsel %vm726, %v692, 0
      %v737 = vsel %vm726, %v693, 0
      %v740 = vsel %vm726, %v694, 0
      %v743 = vsel %vm726, %v695, 0
      %v746 = vsel %vm726, %v696, 0
      %v749 = vsel %vm726, %v697, 0
      %v752 = vsel %vm726, %v698, 0
      %v755 = vsel %vm726, %v699, 0
      %v758 = vsel %vm726, %v700, 0
      %v761 = vsel %vm726, %v701, 0
      %v764 = vsel %vm726, %v702, 0
      %v767 = vsel %vm726, %v703, 0
      %v770 = vsel %vm726, %v704, 0
      %v773 = vsel %vm726, %v705, 0
      %v776 = vsel %vm726, %v706, 0
      %v779 = vsel %vm726, %v707, 0
      %v782 = vsel %vm726, %v708, 0
      %v785 = vsel %vm726, %v709, 0
      %v788 = vsel %vm726, %v710, 0
      %v791 = vsel %vm726, %v711, 0
      %v794 = vsel %vm726, %v712, 0
      %v797 = vsel %vm726, %v713, 0
      %v800 = vsel %vm726, %v714, 0
      %v803 = vsel %vm726, %v715, 0
      %v806 = vsel %vm726, %v716, 0
      %v809 = vsel %vm726, %v717, 0
      %v812 = vsel %vm726, %v718, 0
      %v815 = vsel %vm726, %v719, 0
      %v818 = vsel %vm726, %v720, 0
      %v821 = vsel %vm726, %v721, 0
      %823 = vmatprep.subr.mxu0 0.0
      %824 = vmatpush1.msra.mxu0 %v722
      %825 = vmatprep.subr.mxu0 0.0
      %826 = vmatpush1.msra.mxu0 %v723
      %827 = vmatprep.subr.mxu0 0.0
      %828 = vmatpush1.msra.mxu0 %v724
      %829 = vmatprep.subr.mxu0 0.0
      %830 = vmatpush1.msra.mxu0 %v725
      %831 = vmatprep.subr.mxu0 0.0
      %832 = vmatpush1.msra.mxu0 0.0
      %833 = vmatprep.subr.mxu0 0.0
      %834 = vmatpush1.msra.mxu0 0.0
      %835 = vmatprep.subr.mxu0 0.0
      %836 = vmatpush1.msra.mxu0 0.0
      %837 = vmatprep.subr.mxu0 0.0
      %838 = vmatpush1.msra.mxu0 0.0
      %839 = vmatprep.subr.mxu0 0.0
      %840 = vmatpush1.msra.mxu0 0.0
      %841 = vmatprep.subr.mxu0 0.0
      %842 = vmatpush1.msra.mxu0 0.0
      %843 = vmatprep.subr.mxu0 0.0
      %844 = vmatpush1.msra.mxu0 0.0
      %845 = vmatprep.subr.mxu0 0.0
      %846 = vmatpush1.msra.mxu0 0.0
      %847 = vmatprep.subr.mxu0 0.0
      %848 = vmatpush1.msra.mxu0 0.0
      %849 = vmatprep.subr.mxu0 0.0
      %850 = vmatpush1.msra.mxu0 0.0
      %851 = vmatprep.subr.mxu0 0.0
      %852 = vmatpush1.msra.mxu0 0.0
      %853 = vmatprep.subr.mxu0 0.0
      %854 = vmatpush1.msra.mxu0 0.0
      %855 = vmatprep.subr.mxu0 0.0
      %856 = vmatpush1.msra.mxu0 0.0
      %857 = vmatprep.subr.mxu0 0.0
      %858 = vmatpush1.msra.mxu0 0.0
      %859 = vmatprep.subr.mxu0 0.0
      %860 = vmatpush1.msra.mxu0 0.0
      %861 = vmatprep.subr.mxu0 0.0
      %862 = vmatpush1.msra.mxu0 0.0
      %863 = vmatprep.subr.mxu0 0.0
      %864 = vmatpush1.msra.mxu0 0.0
      %865 = vmatprep.subr.mxu0 0.0
      %866 = vmatpush1.msra.mxu0 0.0
      %867 = vmatprep.subr.mxu0 0.0
      %868 = vmatpush1.msra.mxu0 0.0
      %869 = vmatprep.subr.mxu0 0.0
      %870 = vmatpush1.msra.mxu0 0.0
      %871 = vmatprep.subr.mxu0 0.0
      %872 = vmatpush1.msra.mxu0 0.0
      %873 = vmatprep.subr.mxu0 0.0
      %874 = vmatpush1.msra.mxu0 0.0
      %875 = vmatprep.subr.mxu0 0.0
      %876 = vmatpush1.msra.mxu0 0.0
      %877 = vmatprep.subr.mxu0 0.0
      %878 = vmatpush1.msra.mxu0 0.0
      %879 = vmatprep.subr.mxu0 0.0
      %880 = vmatpush1.msra.mxu0 0.0
      %881 = vmatprep.subr.mxu0 0.0
      %882 = vmatpush1.msra.mxu0 0.0
      %883 = vmatprep.subr.mxu0 0.0
      %884 = vmatpush1.msra.mxu0 0.0
      %885 = vmatprep.subr.mxu0 0.0
      %886 = vmatpush1.msra.mxu0 0.0
      %887 = vmatprep.mubr.f32.mxu0 0.0
      %888 = vmatmul.mubr.f32.gmra.mrb[0].mxu0 %v728
      %v889 = vpop.f32.mrb[0].mxu0
      %v890 = vadd.f32 0.0, %v889
      %v891 = vpop.f32.mrb[0].mxu0
      %892 = vmatprep.mubr.f32.mxu0 0.0
      %893 = vmatmul.mubr.f32.gmra.mrb[0].mxu0 %v731
      %v894 = vpop.f32.mrb[0].mxu0
      %v895 = vadd.f32 0.0, %v894
      %v896 = vpop.f32.mrb[0].mxu0
      %897 = vmatprep.mubr.f32.mxu0 0.0
      %898 = vmatmul.mubr.f32.gmra.mrb[0].mxu0 %v734
      %v899 = vpop.f32.mrb[0].mxu0
      %v900 = vadd.f32 0.0, %v899
      %v901 = vpop.f32.mrb[0].mxu0
      %902 = vmatprep.mubr.f32.mxu0 0.0
      %903 = vmatmul.mubr.f32.gmra.mrb[0].mxu0 %v737
      %v904 = vpop.f32.mrb[0].mxu0
      %v905 = vadd.f32 0.0, %v904
      %v906 = vpop.f32.mrb[0].mxu0
      %907 = vmatprep.mubr.f32.mxu0 0.0
      %908 = vmatmul.mubr.f32.gmra.mrb[0].mxu0 %v740
      %v909 = vpop.f32.mrb[0].mxu0
      %v910 = vadd.f32 0.0, %v909
      %v911 = vpop.f32.mrb[0].mxu0
      %912 = vmatprep.mubr.f32.mxu0 0.0
      %913 = vmatmul.mubr.f32.gmra.mrb[0].mxu0 %v743
      %v914 = vpop.f32.mrb[0].mxu0
      %v915 = vadd.f32 0.0, %v914
      %v916 = vpop.f32.mrb[0].mxu0
      %917 = vmatprep.mubr.f32.mxu0 0.0
      %918 = vmatmul.mubr.f32.gmra.mrb[0].mxu0 %v746
      %v919 = vpop.f32.mrb[0].mxu0
      %v920 = vadd.f32 0.0, %v919
      %v921 = vpop.f32.mrb[0].mxu0
      %922 = vmatprep.mubr.f32.mxu0 0.0
      %923 = vmatmul.mubr.f32.gmra.mrb[0].mxu0 %v749
      %v924 = vpop.f32.mrb[0].mxu0
      %v925 = vadd.f32 0.0, %v924
      %v926 = vpop.f32.mrb[0].mxu0
      %927 = vmatprep.mubr.f32.mxu0 0.0
      %928 = vmatmul.mubr.f32.gmra.mrb[0].mxu0 %v752
      %v929 = vpop.f32.mrb[0].mxu0
      %v930 = vadd.f32 0.0, %v929
      %v931 = vpop.f32.mrb[0].mxu0
      %932 = vmatprep.mubr.f32.mxu0 0.0
      %933 = vmatmul.mubr.f32.gmra.mrb[0].mxu0 %v755
      %v934 = vpop.f32.mrb[0].mxu0
      %v935 = vadd.f32 0.0, %v934
      %v936 = vpop.f32.mrb[0].mxu0
      %937 = vmatprep.mubr.f32.mxu0 0.0
      %938 = vmatmul.mubr.f32.gmra.mrb[0].mxu0 %v758
      %v939 = vpop.f32.mrb[0].mxu0
      %v940 = vadd.f32 0.0, %v939
      %v941 = vpop.f32.mrb[0].mxu0
      %942 = vmatprep.mubr.f32.mxu0 0.0
      %943 = vmatmul.mubr.f32.gmra.mrb[0].mxu0 %v761
      %v944 = vpop.f32.mrb[0].mxu0
      %v945 = vadd.f32 0.0, %v944
      %v946 = vpop.f32.mrb[0].mxu0
      %947 = vmatprep.mubr.f32.mxu0 0.0
      %948 = vmatmul.mubr.f32.gmra.mrb[0].mxu0 %v764
      %v949 = vpop.f32.mrb[0].mxu0
      %v950 = vadd.f32 0.0, %v949
      %v951 = vpop.f32.mrb[0].mxu0
      %952 = vmatprep.mubr.f32.mxu0 0.0
      %953 = vmatmul.mubr.f32.gmra.mrb[0].mxu0 %v767
      %v954 = vpop.f32.mrb[0].mxu0
      %v955 = vadd.f32 0.0, %v954
      %v956 = vpop.f32.mrb[0].mxu0
      %957 = vmatprep.mubr.f32.mxu0 0.0
      %958 = vmatmul.mubr.f32.gmra.mrb[0].mxu0 %v770
      %v959 = vpop.f32.mrb[0].mxu0
      %v960 = vadd.f32 0.0, %v959
      %v961 = vpop.f32.mrb[0].mxu0
      %962 = vmatprep.mubr.f32.mxu0 0.0
      %963 = vmatmul.mubr.f32.gmra.mrb[0].mxu0 %v773
      %v964 = vpop.f32.mrb[0].mxu0
      %v965 = vadd.f32 0.0, %v964
      %v966 = vpop.f32.mrb[0].mxu0
      %967 = vmatprep.mubr.f32.mxu0 0.0
      %968 = vmatmul.mubr.f32.gmra.mrb[0].mxu0 %v776
      %v969 = vpop.f32.mrb[0].mxu0
      %v970 = vadd.f32 0.0, %v969
      %v971 = vpop.f32.mrb[0].mxu0
      %972 = vmatprep.mubr.f32.mxu0 0.0
      %973 = vmatmul.mubr.f32.gmra.mrb[0].mxu0 %v779
      %v974 = vpop.f32.mrb[0].mxu0
      %v975 = vadd.f32 0.0, %v974
      %v976 = vpop.f32.mrb[0].mxu0
      %977 = vmatprep.mubr.f32.mxu0 0.0
      %978 = vmatmul.mubr.f32.gmra.mrb[0].mxu0 %v782
      %v979 = vpop.f32.mrb[0].mxu0
      %v980 = vadd.f32 0.0, %v979
      %v981 = vpop.f32.mrb[0].mxu0
      %982 = vmatprep.mubr.f32.mxu0 0.0
      %983 = vmatmul.mubr.f32.gmra.mrb[0].mxu0 %v785
      %v984 = vpop.f32.mrb[0].mxu0
      %v985 = vadd.f32 0.0, %v984
      %v986 = vpop.f32.mrb[0].mxu0
      %987 = vmatprep.mubr.f32.mxu0 0.0
      %988 = vmatmul.mubr.f32.gmra.mrb[0].mxu0 %v788
      %v989 = vpop.f32.mrb[0].mxu0
      %v990 = vadd.f32 0.0, %v989
      %v991 = vpop.f32.mrb[0].mxu0
      %992 = vmatprep.mubr.f32.mxu0 0.0
      %993 = vmatmul.mubr.f32.gmra.mrb[0].mxu0 %v791
      %v994 = vpop.f32.mrb[0].mxu0
      %v995 = vadd.f32 0.0, %v994
      %v996 = vpop.f32.mrb[0].mxu0
      %997 = vmatprep.mubr.f32.mxu0 0.0
      %998 = vmatmul.mubr.f32.gmra.mrb[0].mxu0 %v794
      %v999 = vpop.f32.mrb[0].mxu0
      %v1000 = vadd.f32 0.0, %v999
      %v1001 = vpop.f32.mrb[0].mxu0
      %1002 = vmatprep.mubr.f32.mxu0 0.0
      %1003 = vmatmul.mubr.f32.gmra.mrb[0].mxu0 %v797
      %v1004 = vpop.f32.mrb[0].mxu0
      %v1005 = vadd.f32 0.0, %v1004
      %v1006 = vpop.f32.mrb[0].mxu0
      %1007 = vmatprep.mubr.f32.mxu0 0.0
      %1008 = vmatmul.mubr.f32.gmra.mrb[0].mxu0 %v800
      %v1009 = vpop.f32.mrb[0].mxu0
      %v1010 = vadd.f32 0.0, %v1009
      %v1011 = vpop.f32.mrb[0].mxu0
      %1012 = vmatprep.mubr.f32.mxu0 0.0
      %1013 = vmatmul.mubr.f32.gmra.mrb[0].mxu0 %v803
      %v1014 = vpop.f32.mrb[0].mxu0
      %v1015 = vadd.f32 0.0, %v1014
      %v1016 = vpop.f32.mrb[0].mxu0
      %1017 = vmatprep.mubr.f32.mxu0 0.0
      %1018 = vmatmul.mubr.f32.gmra.mrb[0].mxu0 %v806
      %v1019 = vpop.f32.mrb[0].mxu0
      %v1020 = vadd.f32 0.0, %v1019
      %v1021 = vpop.f32.mrb[0].mxu0
      %1022 = vmatprep.mubr.f32.mxu0 0.0
      %1023 = vmatmul.mubr.f32.gmra.mrb[0].mxu0 %v809
      %v1024 = vpop.f32.mrb[0].mxu0
      %v1025 = vadd.f32 0.0, %v1024
      %v1026 = vpop.f32.mrb[0].mxu0
      %1027 = vmatprep.mubr.f32.mxu0 0.0
      %1028 = vmatmul.mubr.f32.gmra.mrb[0].mxu0 %v812
      %v1029 = vpop.f32.mrb[0].mxu0
      %v1030 = vadd.f32 0.0, %v1029
      %v1031 = vpop.f32.mrb[0].mxu0
      %1032 = vmatprep.mubr.f32.mxu0 0.0
      %1033 = vmatmul.mubr.f32.gmra.mrb[0].mxu0 %v815
      %v1034 = vpop.f32.mrb[0].mxu0
      %v1035 = vadd.f32 0.0, %v1034
      %v1036 = vpop.f32.mrb[0].mxu0
      %1037 = vmatprep.mubr.f32.mxu0 0.0
      %1038 = vmatmul.mubr.f32.gmra.mrb[0].mxu0 %v818
      %v1039 = vpop.f32.mrb[0].mxu0
      %v1040 = vadd.f32 0.0, %v1039
      %v1041 = vpop.f32.mrb[0].mxu0
      %1042 = vmatprep.mubr.f32.mxu0 0.0
      %1043 = vmatmul.mubr.f32.gmra.mrb[0].mxu0 %v821
      %v1044 = vpop.f32.mrb[0].mxu0
      %v1045 = vadd.f32 0.0, %v1044
      %v1046 = vpop.f32.mrb[0].mxu0
      %1047 = vdwg.mxu0
      %v1048 = vsel %vm623, %v890, 0.0
      %v1049 = vsel %vm623, %v895, 0.0
      %v1050 = vadd.f32 %v1048, %v1049
      %v1051 = vsel %vm623, %v900, 0.0
      %v1052 = vadd.f32 %v1050, %v1051
      %v1053 = vsel %vm623, %v905, 0.0
      %v1054 = vadd.f32 %v1052, %v1053
      %v1055 = vsel %vm623, %v910, 0.0
      %v1056 = vadd.f32 %v1054, %v1055
      %v1057 = vsel %vm623, %v915, 0.0
      %v1058 = vadd.f32 %v1056, %v1057
      %v1059 = vsel %vm623, %v920, 0.0
      %v1060 = vadd.f32 %v1058, %v1059
      %v1061 = vsel %vm623, %v925, 0.0
      %v1062 = vadd.f32 %v1060, %v1061
      %v1063 = vsel %vm623, %v930, 0.0
      %v1064 = vadd.f32 %v1062, %v1063
      %v1065 = vsel %vm623, %v935, 0.0
      %v1066 = vadd.f32 %v1064, %v1065
      %v1067 = vsel %vm623, %v940, 0.0
      %v1068 = vadd.f32 %v1066, %v1067
      %v1069 = vsel %vm623, %v945, 0.0
      %v1070 = vadd.f32 %v1068, %v1069
      %v1071 = vsel %vm623, %v950, 0.0
      %v1072 = vadd.f32 %v1070, %v1071
      %v1073 = vsel %vm623, %v955, 0.0
      %v1074 = vadd.f32 %v1072, %v1073
      %v1075 = vsel %vm623, %v960, 0.0
      %v1076 = vadd.f32 %v1074, %v1075
      %v1077 = vsel %vm623, %v965, 0.0
      %v1078 = vadd.f32 %v1076, %v1077
      %v1079 = vsel %vm623, %v970, 0.0
      %v1080 = vadd.f32 %v1078, %v1079
      %v1081 = vsel %vm623, %v975, 0.0
      %v1082 = vadd.f32 %v1080, %v1081
      %v1083 = vsel %vm623, %v980, 0.0
      %v1084 = vadd.f32 %v1082, %v1083
      %v1085 = vsel %vm623, %v985, 0.0
      %v1086 = vadd.f32 %v1084, %v1085
      %v1087 = vsel %vm623, %v990, 0.0
      %v1088 = vadd.f32 %v1086, %v1087
      %v1089 = vsel %vm623, %v995, 0.0
      %v1090 = vadd.f32 %v1088, %v1089
      %v1091 = vsel %vm623, %v1000, 0.0
      %v1092 = vadd.f32 %v1090, %v1091
      %v1093 = vsel %vm623, %v1005, 0.0
      %v1094 = vadd.f32 %v1092, %v1093
      %v1095 = vsel %vm623, %v1010, 0.0
      %v1096 = vadd.f32 %v1094, %v1095
      %v1097 = vsel %vm623, %v1015, 0.0
      %v1098 = vadd.f32 %v1096, %v1097
      %v1099 = vsel %vm623, %v1020, 0.0
      %v1100 = vadd.f32 %v1098, %v1099
      %v1101 = vsel %vm623, %v1025, 0.0
      %v1102 = vadd.f32 %v1100, %v1101
      %v1103 = vsel %vm623, %v1030, 0.0
      %v1104 = vadd.f32 %v1102, %v1103
      %v1105 = vsel %vm623, %v1035, 0.0
      %v1106 = vadd.f32 %v1104, %v1105
      %v1107 = vsel %vm623, %v1040, 0.0
      %v1108 = vadd.f32 %v1106, %v1107
      %v1109 = vsel %vm623, %v1045, 0.0
      %v1110 = vadd.f32 %v1108, %v1109
      %v1111 = vrot.slane %v1110, 4
      %v1112 = vadd.f32 %v1110, %v1111
      %v1113 = vrot.slane %v1112, 2
      %v1114 = vadd.f32 %v1112, %v1113
      %v1115 = vrot.slane %v1114, 1
      %v1116 = vadd.f32 %v1114, %v1115
      %v1117 = vadd.f32 %v1116, 0.0
      %v1118 = vmul.f32 %v890, %v890
      %v1119 = vmul.f32 %v895, %v895
      %v1120 = vmul.f32 %v900, %v900
      %v1121 = vmul.f32 %v905, %v905
      %v1122 = vmul.f32 %v910, %v910
      %v1123 = vmul.f32 %v915, %v915
      %v1124 = vmul.f32 %v920, %v920
      %v1125 = vmul.f32 %v925, %v925
      %v1126 = vmul.f32 %v930, %v930
      %v1127 = vmul.f32 %v935, %v935
      %v1128 = vmul.f32 %v940, %v940
      %v1129 = vmul.f32 %v945, %v945
      %v1130 = vmul.f32 %v950, %v950
      %v1131 = vmul.f32 %v955, %v955
      %v1132 = vmul.f32 %v960, %v960
      %v1133 = vmul.f32 %v965, %v965
      %v1134 = vmul.f32 %v970, %v970
      %v1135 = vmul.f32 %v975, %v975
      %v1136 = vmul.f32 %v980, %v980
      %v1137 = vmul.f32 %v985, %v985
      %v1138 = vmul.f32 %v990, %v990
      %v1139 = vmul.f32 %v995, %v995
      %v1140 = vmul.f32 %v1000, %v1000
      %v1141 = vmul.f32 %v1005, %v1005
      %v1142 = vmul.f32 %v1010, %v1010
      %v1143 = vmul.f32 %v1015, %v1015
      %v1144 = vmul.f32 %v1020, %v1020
      %v1145 = vmul.f32 %v1025, %v1025
      %v1146 = vmul.f32 %v1030, %v1030
      %v1147 = vmul.f32 %v1035, %v1035
      %v1148 = vmul.f32 %v1040, %v1040
      %v1149 = vmul.f32 %v1045, %v1045
      %v1150 = vsel %vm623, %v1118, 0.0
      %v1151 = vsel %vm623, %v1119, 0.0
      %v1152 = vadd.f32 %v1150, %v1151
      %v1153 = vsel %vm623, %v1120, 0.0
      %v1154 = vadd.f32 %v1152, %v1153
      %v1155 = vsel %vm623, %v1121, 0.0
      %v1156 = vadd.f32 %v1154, %v1155
      %v1157 = vsel %vm623, %v1122, 0.0
      %v1158 = vadd.f32 %v1156, %v1157
      %v1159 = vsel %vm623, %v1123, 0.0
      %v1160 = vadd.f32 %v1158, %v1159
      %v1161 = vsel %vm623, %v1124, 0.0
      %v1162 = vadd.f32 %v1160, %v1161
      %v1163 = vsel %vm623, %v1125, 0.0
      %v1164 = vadd.f32 %v1162, %v1163
      %v1165 = vsel %vm623, %v1126, 0.0
      %v1166 = vadd.f32 %v1164, %v1165
      %v1167 = vsel %vm623, %v1127, 0.0
      %v1168 = vadd.f32 %v1166, %v1167
      %v1169 = vsel %vm623, %v1128, 0.0
      %v1170 = vadd.f32 %v1168, %v1169
      %v1171 = vsel %vm623, %v1129, 0.0
      %v1172 = vadd.f32 %v1170, %v1171
      %v1173 = vsel %vm623, %v1130, 0.0
      %v1174 = vadd.f32 %v1172, %v1173
      %v1175 = vsel %vm623, %v1131, 0.0
      %v1176 = vadd.f32 %v1174, %v1175
      %v1177 = vsel %vm623, %v1132, 0.0
      %v1178 = vadd.f32 %v1176, %v1177
      %v1179 = vsel %vm623, %v1133, 0.0
      %v1180 = vadd.f32 %v1178, %v1179
      %v1181 = vsel %vm623, %v1134, 0.0
      %v1182 = vadd.f32 %v1180, %v1181
      %v1183 = vsel %vm623, %v1135, 0.0
      %v1184 = vadd.f32 %v1182, %v1183
      %v1185 = vsel %vm623, %v1136, 0.0
      %v1186 = vadd.f32 %v1184, %v1185
      %v1187 = vsel %vm623, %v1137, 0.0
      %v1188 = vadd.f32 %v1186, %v1187
      %v1189 = vsel %vm623, %v1138, 0.0
      %v1190 = vadd.f32 %v1188, %v1189
      %v1191 = vsel %vm623, %v1139, 0.0
      %v1192 = vadd.f32 %v1190, %v1191
      %v1193 = vsel %vm623, %v1140, 0.0
      %v1194 = vadd.f32 %v1192, %v1193
      %v1195 = vsel %vm623, %v1141, 0.0
      %v1196 = vadd.f32 %v1194, %v1195
      %v1197 = vsel %vm623, %v1142, 0.0
      %v1198 = vadd.f32 %v1196, %v1197
      %v1199 = vsel %vm623, %v1143, 0.0
      %v1200 = vadd.f32 %v1198, %v1199
      %v1201 = vsel %vm623, %v1144, 0.0
      %v1202 = vadd.f32 %v1200, %v1201
      %v1203 = vsel %vm623, %v1145, 0.0
      %v1204 = vadd.f32 %v1202, %v1203
      %v1205 = vsel %vm623, %v1146, 0.0
      %v1206 = vadd.f32 %v1204, %v1205
      %v1207 = vsel %vm623, %v1147, 0.0
      %v1208 = vadd.f32 %v1206, %v1207
      %v1209 = vsel %vm623, %v1148, 0.0
      %v1210 = vadd.f32 %v1208, %v1209
      %v1211 = vsel %vm623, %v1149, 0.0
      %v1212 = vadd.f32 %v1210, %v1211
      %v1213 = vrot.slane %v1212, 4
      %v1214 = vadd.f32 %v1212, %v1213
      %v1215 = vrot.slane %v1214, 2
      %v1216 = vadd.f32 %v1214, %v1215
      %v1217 = vrot.slane %v1216, 1
      %v1218 = vadd.f32 %v1216, %v1217
      %v1219 = vadd.f32 %v1218, 0.0
      %1220 = vrot.lane.b32.xlu0 %v250, 8
      %v1221 = vpop.permute.xlu0 %1220
      %1222 = vrot.lane.b32.xlu0 %v255, 8
      %v1223 = vpop.permute.xlu0 %1222
      %1224 = vrot.lane.b32.xlu0 %v260, 8
      %v1225 = vpop.permute.xlu0 %1224
      %1226 = vrot.lane.b32.xlu0 %v265, 8
      %v1227 = vpop.permute.xlu0 %1226
      %1228 = vrot.lane.b32.xlu0 %v270, 8
      %v1229 = vpop.permute.xlu0 %1228
      %1230 = vrot.lane.b32.xlu0 %v275, 8
      %v1231 = vpop.permute.xlu0 %1230
      %1232 = vrot.lane.b32.xlu0 %v280, 8
      %v1233 = vpop.permute.xlu0 %1232
      %1234 = vrot.lane.b32.xlu0 %v285, 8
      %v1235 = vpop.permute.xlu0 %1234
      %1236 = vrot.lane.b32.xlu0 %v290, 8
      %v1237 = vpop.permute.xlu0 %1236
      %1238 = vrot.lane.b32.xlu0 %v295, 8
      %v1239 = vpop.permute.xlu0 %1238
      %1240 = vrot.lane.b32.xlu0 %v300, 8
      %v1241 = vpop.permute.xlu0 %1240
      %1242 = vrot.lane.b32.xlu0 %v305, 8
      %v1243 = vpop.permute.xlu0 %1242
      %1244 = vrot.lane.b32.xlu0 %v310, 8
      %v1245 = vpop.permute.xlu0 %1244
      %1246 = vrot.lane.b32.xlu0 %v315, 8
      %v1247 = vpop.permute.xlu0 %1246
      %1248 = vrot.lane.b32.xlu0 %v320, 8
      %v1249 = vpop.permute.xlu0 %1248
      %1250 = vrot.lane.b32.xlu0 %v325, 8
      %v1251 = vpop.permute.xlu0 %1250
      %1268 = vrot.lane.b32.xlu0 %v149, 16
      %v1269 = vpop.permute.xlu0 %1268
      %1270 = vrot.lane.b32.xlu0 %v152, 16
      %v1271 = vpop.permute.xlu0 %1270
      %1272 = vrot.lane.b32.xlu0 %v155, 16
      %v1273 = vpop.permute.xlu0 %1272
      %1274 = vrot.lane.b32.xlu0 %v158, 16
      %v1275 = vpop.permute.xlu0 %1274
      %1276 = vrot.lane.b32.xlu0 %v161, 16
      %v1277 = vpop.permute.xlu0 %1276
      %1278 = vrot.lane.b32.xlu0 %v164, 16
      %v1279 = vpop.permute.xlu0 %1278
      %1280 = vrot.lane.b32.xlu0 %v167, 16
      %v1281 = vpop.permute.xlu0 %1280
      %1282 = vrot.lane.b32.xlu0 %v170, 16
      %v1283 = vpop.permute.xlu0 %1282
      %1284 = vrot.lane.b32.xlu0 %v173, 16
      %v1285 = vpop.permute.xlu0 %1284
      %1286 = vrot.lane.b32.xlu0 %v176, 16
      %v1287 = vpop.permute.xlu0 %1286
      %1288 = vrot.lane.b32.xlu0 %v179, 16
      %v1289 = vpop.permute.xlu0 %1288
      %1290 = vrot.lane.b32.xlu0 %v182, 16
      %v1291 = vpop.permute.xlu0 %1290
      %1292 = vrot.lane.b32.xlu0 %v185, 16
      %v1293 = vpop.permute.xlu0 %1292
      %1294 = vrot.lane.b32.xlu0 %v188, 16
      %v1295 = vpop.permute.xlu0 %1294
      %1296 = vrot.lane.b32.xlu0 %v191, 16
      %v1297 = vpop.permute.xlu0 %1296
      %1298 = vrot.lane.b32.xlu0 %v194, 16
      %v1299 = vpop.permute.xlu0 %1298
      %1316 = vrot.lane.b32.xlu0 %v255, 24
      %v1317 = vpop.permute.xlu0 %1316
      %1318 = vrot.lane.b32.xlu0 %v260, 24
      %v1319 = vpop.permute.xlu0 %1318
      %1320 = vrot.lane.b32.xlu0 %v265, 24
      %v1321 = vpop.permute.xlu0 %1320
      %1322 = vrot.lane.b32.xlu0 %v270, 24
      %v1323 = vpop.permute.xlu0 %1322
      %1324 = vrot.lane.b32.xlu0 %v275, 24
      %v1325 = vpop.permute.xlu0 %1324
      %1326 = vrot.lane.b32.xlu0 %v280, 24
      %v1327 = vpop.permute.xlu0 %1326
      %1328 = vrot.lane.b32.xlu0 %v285, 24
      %v1329 = vpop.permute.xlu0 %1328
      %1330 = vrot.lane.b32.xlu0 %v290, 24
      %v1331 = vpop.permute.xlu0 %1330
      %1332 = vrot.lane.b32.xlu0 %v295, 24
      %v1333 = vpop.permute.xlu0 %1332
      %1334 = vrot.lane.b32.xlu0 %v300, 24
      %v1335 = vpop.permute.xlu0 %1334
      %1336 = vrot.lane.b32.xlu0 %v305, 24
      %v1337 = vpop.permute.xlu0 %1336
      %1338 = vrot.lane.b32.xlu0 %v310, 24
      %v1339 = vpop.permute.xlu0 %1338
      %1340 = vrot.lane.b32.xlu0 %v315, 24
      %v1341 = vpop.permute.xlu0 %1340
      %1342 = vrot.lane.b32.xlu0 %v320, 24
      %v1343 = vpop.permute.xlu0 %1342
      %1344 = vrot.lane.b32.xlu0 %v325, 24
      %v1345 = vpop.permute.xlu0 %1344
      %1346 = vrot.lane.b32.xlu0 %v525, 24
      %v1347 = vpop.permute.xlu0 %1346
      %v1364 = vsel %vm623, %v146, %v1221
      %v1365 = vsel %vm623, %v149, %v1223
      %v1366 = vsel %vm623, %v152, %v1225
      %v1367 = vsel %vm623, %v155, %v1227
      %v1368 = vsel %vm623, %v158, %v1229
      %v1369 = vsel %vm623, %v161, %v1231
      %v1370 = vsel %vm623, %v164, %v1233
      %v1371 = vsel %vm623, %v167, %v1235
      %v1372 = vsel %vm623, %v170, %v1237
      %v1373 = vsel %vm623, %v173, %v1239
      %v1374 = vsel %vm623, %v176, %v1241
      %v1375 = vsel %vm623, %v179, %v1243
      %v1376 = vsel %vm623, %v182, %v1245
      %v1377 = vsel %vm623, %v185, %v1247
      %v1378 = vsel %vm623, %v188, %v1249
      %v1379 = vsel %vm623, %v191, %v1251
      %v1380 = vsel %vm656, %v1364, %v1269
      %v1381 = vsel %vm656, %v1365, %v1271
      %v1382 = vsel %vm656, %v1366, %v1273
      %v1383 = vsel %vm656, %v1367, %v1275
      %v1384 = vsel %vm656, %v1368, %v1277
      %v1385 = vsel %vm656, %v1369, %v1279
      %v1386 = vsel %vm656, %v1370, %v1281
      %v1387 = vsel %vm656, %v1371, %v1283
      %v1388 = vsel %vm656, %v1372, %v1285
      %v1389 = vsel %vm656, %v1373, %v1287
      %v1390 = vsel %vm656, %v1374, %v1289
      %v1391 = vsel %vm656, %v1375, %v1291
      %v1392 = vsel %vm656, %v1376, %v1293
      %v1393 = vsel %vm656, %v1377, %v1295
      %v1394 = vsel %vm656, %v1378, %v1297
      %v1395 = vsel %vm656, %v1379, %v1299
      %v1396 = vsel %vm689, %v1380, %v1317
      %v1397 = vsel %vm689, %v1381, %v1319
      %v1398 = vsel %vm689, %v1382, %v1321
      %v1399 = vsel %vm689, %v1383, %v1323
      %v1400 = vsel %vm689, %v1384, %v1325
      %v1401 = vsel %vm689, %v1385, %v1327
      %v1402 = vsel %vm689, %v1386, %v1329
      %v1403 = vsel %vm689, %v1387, %v1331
      %v1404 = vsel %vm689, %v1388, %v1333
      %v1405 = vsel %vm689, %v1389, %v1335
      %v1406 = vsel %vm689, %v1390, %v1337
      %v1407 = vsel %vm689, %v1391, %v1339
      %v1408 = vsel %vm689, %v1392, %v1341
      %v1409 = vsel %vm689, %v1393, %v1343
      %v1410 = vsel %vm689, %v1394, %v1345
      %v1411 = vsel %vm689, %v1395, %v1347
      %v1428 = vrot.slane %v690, 1
      %v1429 = vrot.slane %v691, 1
      %v1430 = vsel %vm246, %v1428, %v1429
      %v1431 = vrot.slane %v1396, 1
      %v1432 = vsel %vm246, %v1429, %v1431
      %v1433 = vrot.slane %v692, 1
      %v1434 = vrot.slane %v693, 1
      %v1435 = vsel %vm246, %v1433, %v1434
      %v1436 = vrot.slane %v1397, 1
      %v1437 = vsel %vm246, %v1434, %v1436
      %v1438 = vrot.slane %v694, 1
      %v1439 = vrot.slane %v695, 1
      %v1440 = vsel %vm246, %v1438, %v1439
      %v1441 = vrot.slane %v1398, 1
      %v1442 = vsel %vm246, %v1439, %v1441
      %v1443 = vrot.slane %v696, 1
      %v1444 = vrot.slane %v697, 1
      %v1445 = vsel %vm246, %v1443, %v1444
      %v1446 = vrot.slane %v1399, 1
      %v1447 = vsel %vm246, %v1444, %v1446
      %v1448 = vrot.slane %v698, 1
      %v1449 = vrot.slane %v699, 1
      %v1450 = vsel %vm246, %v1448, %v1449
      %v1451 = vrot.slane %v1400, 1
      %v1452 = vsel %vm246, %v1449, %v1451
      %v1453 = vrot.slane %v700, 1
      %v1454 = vrot.slane %v701, 1
      %v1455 = vsel %vm246, %v1453, %v1454
      %v1456 = vrot.slane %v1401, 1
      %v1457 = vsel %vm246, %v1454, %v1456
      %v1458 = vrot.slane %v702, 1
      %v1459 = vrot.slane %v703, 1
      %v1460 = vsel %vm246, %v1458, %v1459
      %v1461 = vrot.slane %v1402, 1
      %v1462 = vsel %vm246, %v1459, %v1461
      %v1463 = vrot.slane %v704, 1
      %v1464 = vrot.slane %v705, 1
      %v1465 = vsel %vm246, %v1463, %v1464
      %v1466 = vrot.slane %v1403, 1
      %v1467 = vsel %vm246, %v1464, %v1466
      %v1468 = vrot.slane %v706, 1
      %v1469 = vrot.slane %v707, 1
      %v1470 = vsel %vm246, %v1468, %v1469
      %v1471 = vrot.slane %v1404, 1
      %v1472 = vsel %vm246, %v1469, %v1471
      %v1473 = vrot.slane %v708, 1
      %v1474 = vrot.slane %v709, 1
      %v1475 = vsel %vm246, %v1473, %v1474
      %v1476 = vrot.slane %v1405, 1
      %v1477 = vsel %vm246, %v1474, %v1476
      %v1478 = vrot.slane %v710, 1
      %v1479 = vrot.slane %v711, 1
      %v1480 = vsel %vm246, %v1478, %v1479
      %v1481 = vrot.slane %v1406, 1
      %v1482 = vsel %vm246, %v1479, %v1481
      %v1483 = vrot.slane %v712, 1
      %v1484 = vrot.slane %v713, 1
      %v1485 = vsel %vm246, %v1483, %v1484
      %v1486 = vrot.slane %v1407, 1
      %v1487 = vsel %vm246, %v1484, %v1486
      %v1488 = vrot.slane %v714, 1
      %v1489 = vrot.slane %v715, 1
      %v1490 = vsel %vm246, %v1488, %v1489
      %v1491 = vrot.slane %v1408, 1
      %v1492 = vsel %vm246, %v1489, %v1491
      %v1493 = vrot.slane %v716, 1
      %v1494 = vrot.slane %v717, 1
      %v1495 = vsel %vm246, %v1493, %v1494
      %v1496 = vrot.slane %v1409, 1
      %v1497 = vsel %vm246, %v1494, %v1496
      %v1498 = vrot.slane %v718, 1
      %v1499 = vrot.slane %v719, 1
      %v1500 = vsel %vm246, %v1498, %v1499
      %v1501 = vrot.slane %v1410, 1
      %v1502 = vsel %vm246, %v1499, %v1501
      %v1503 = vrot.slane %v720, 1
      %v1504 = vrot.slane %v721, 1
      %v1505 = vsel %vm246, %v1503, %v1504
      %v1506 = vrot.slane %v1411, 1
      %v1507 = vsel %vm246, %v1504, %v1506
      %s1508 = scalar_lea.vmem %s1, 32
      %v1509 = vld [vmem:[%s1508] sm:$0xff]
      %v1510 = vld [vmem:[%s1508 + $0x8] sm:$0xff]
      %v1511 = vld [vmem:[%s1508 + $0x10] sm:$0xff]
      %v1512 = vld [vmem:[%s1508 + $0x18] sm:$0xff]
      %v1513 = vsel %vm726, %v1430, 0
      %v1515 = vsel %vm726, %v1432, 0
      %v1517 = vsel %vm726, %v1435, 0
      %v1519 = vsel %vm726, %v1437, 0
      %v1521 = vsel %vm726, %v1440, 0
      %v1523 = vsel %vm726, %v1442, 0
      %v1525 = vsel %vm726, %v1445, 0
      %v1527 = vsel %vm726, %v1447, 0
      %v1529 = vsel %vm726, %v1450, 0
      %v1531 = vsel %vm726, %v1452, 0
      %v1533 = vsel %vm726, %v1455, 0
      %v1535 = vsel %vm726, %v1457, 0
      %v1537 = vsel %vm726, %v1460, 0
      %v1539 = vsel %vm726, %v1462, 0
      %v1541 = vsel %vm726, %v1465, 0
      %v1543 = vsel %vm726, %v1467, 0
      %v1545 = vsel %vm726, %v1470, 0
      %v1547 = vsel %vm726, %v1472, 0
      %v1549 = vsel %vm726, %v1475, 0
      %v1551 = vsel %vm726, %v1477, 0
      %v1553 = vsel %vm726, %v1480, 0
      %v1555 = vsel %vm726, %v1482, 0
      %v1557 = vsel %vm726, %v1485, 0
      %v1559 = vsel %vm726, %v1487, 0
      %v1561 = vsel %vm726, %v1490, 0
      %v1563 = vsel %vm726, %v1492, 0
      %v1565 = vsel %vm726, %v1495, 0
      %v1567 = vsel %vm726, %v1497, 0
      %v1569 = vsel %vm726, %v1500, 0
      %v1571 = vsel %vm726, %v1502, 0
      %v1573 = vsel %vm726, %v1505, 0
      %v1575 = vsel %vm726, %v1507, 0
      %1577 = vmatprep.subr.mxu0 0.0
      %1578 = vmatpush1.msra.mxu0 %v1509
      %1579 = vmatprep.subr.mxu0 0.0
      %1580 = vmatpush1.msra.mxu0 %v1510
      %1581 = vmatprep.subr.mxu0 0.0
      %1582 = vmatpush1.msra.mxu0 %v1511
      %1583 = vmatprep.subr.mxu0 0.0
      %1584 = vmatpush1.msra.mxu0 %v1512
      %1585 = vmatprep.subr.mxu0 0.0
      %1586 = vmatpush1.msra.mxu0 0.0
      %1587 = vmatprep.subr.mxu0 0.0
      %1588 = vmatpush1.msra.mxu0 0.0
      %1589 = vmatprep.subr.mxu0 0.0
      %1590 = vmatpush1.msra.mxu0 0.0
      %1591 = vmatprep.subr.mxu0 0.0
      %1592 = vmatpush1.msra.mxu0 0.0
      %1593 = vmatprep.subr.mxu0 0.0
      %1594 = vmatpush1.msra.mxu0 0.0
      %1595 = vmatprep.subr.mxu0 0.0
      %1596 = vmatpush1.msra.mxu0 0.0
      %1597 = vmatprep.subr.mxu0 0.0
      %1598 = vmatpush1.msra.mxu0 0.0
      %1599 = vmatprep.subr.mxu0 0.0
      %1600 = vmatpush1.msra.mxu0 0.0
      %1601 = vmatprep.subr.mxu0 0.0
      %1602 = vmatpush1.msra.mxu0 0.0
      %1603 = vmatprep.subr.mxu0 0.0
      %1604 = vmatpush1.msra.mxu0 0.0
      %1605 = vmatprep.subr.mxu0 0.0
      %1606 = vmatpush1.msra.mxu0 0.0
      %1607 = vmatprep.subr.mxu0 0.0
      %1608 = vmatpush1.msra.mxu0 0.0
      %1609 = vmatprep.subr.mxu0 0.0
      %1610 = vmatpush1.msra.mxu0 0.0
      %1611 = vmatprep.subr.mxu0 0.0
      %1612 = vmatpush1.msra.mxu0 0.0
      %1613 = vmatprep.subr.mxu0 0.0
      %1614 = vmatpush1.msra.mxu0 0.0
      %1615 = vmatprep.subr.mxu0 0.0
      %1616 = vmatpush1.msra.mxu0 0.0
      %1617 = vmatprep.subr.mxu0 0.0
      %1618 = vmatpush1.msra.mxu0 0.0
      %1619 = vmatprep.subr.mxu0 0.0
      %1620 = vmatpush1.msra.mxu0 0.0
      %1621 = vmatprep.subr.mxu0 0.0
      %1622 = vmatpush1.msra.mxu0 0.0
      %1623 = vmatprep.subr.mxu0 0.0
      %1624 = vmatpush1.msra.mxu0 0.0
      %1625 = vmatprep.subr.mxu0 0.0
      %1626 = vmatpush1.msra.mxu0 0.0
      %1627 = vmatprep.subr.mxu0 0.0
      %1628 = vmatpush1.msra.mxu0 0.0
      %1629 = vmatprep.subr.mxu0 0.0
      %1630 = vmatpush1.msra.mxu0 0.0
      %1631 = vmatprep.subr.mxu0 0.0
      %1632 = vmatpush1.msra.mxu0 0.0
      %1633 = vmatprep.subr.mxu0 0.0
      %1634 = vmatpush1.msra.mxu0 0.0
      %1635 = vmatprep.subr.mxu0 0.0
      %1636 = vmatpush1.msra.mxu0 0.0
      %1637 = vmatprep.subr.mxu0 0.0
      %1638 = vmatpush1.msra.mxu0 0.0
      %1639 = vmatprep.subr.mxu0 0.0
      %1640 = vmatpush1.msra.mxu0 0.0
      %1641 = vmatprep.mubr.f32.mxu0 0.0
      %1642 = vmatmul.mubr.f32.gmra.mrb[0].mxu0 %v1513
      %v1643 = vpop.f32.mrb[0].mxu0
      %v1644 = vadd.f32 0.0, %v1643
      %v1645 = vpop.f32.mrb[0].mxu0
      %1646 = vmatprep.mubr.f32.mxu0 0.0
      %1647 = vmatmul.mubr.f32.gmra.mrb[0].mxu0 %v1515
      %v1648 = vpop.f32.mrb[0].mxu0
      %v1649 = vadd.f32 0.0, %v1648
      %v1650 = vpop.f32.mrb[0].mxu0
      %1651 = vmatprep.mubr.f32.mxu0 0.0
      %1652 = vmatmul.mubr.f32.gmra.mrb[0].mxu0 %v1517
      %v1653 = vpop.f32.mrb[0].mxu0
      %v1654 = vadd.f32 0.0, %v1653
      %v1655 = vpop.f32.mrb[0].mxu0
      %1656 = vmatprep.mubr.f32.mxu0 0.0
      %1657 = vmatmul.mubr.f32.gmra.mrb[0].mxu0 %v1519
      %v1658 = vpop.f32.mrb[0].mxu0
      %v1659 = vadd.f32 0.0, %v1658
      %v1660 = vpop.f32.mrb[0].mxu0
      %1661 = vmatprep.mubr.f32.mxu0 0.0
      %1662 = vmatmul.mubr.f32.gmra.mrb[0].mxu0 %v1521
      %v1663 = vpop.f32.mrb[0].mxu0
      %v1664 = vadd.f32 0.0, %v1663
      %v1665 = vpop.f32.mrb[0].mxu0
      %1666 = vmatprep.mubr.f32.mxu0 0.0
      %1667 = vmatmul.mubr.f32.gmra.mrb[0].mxu0 %v1523
      %v1668 = vpop.f32.mrb[0].mxu0
      %v1669 = vadd.f32 0.0, %v1668
      %v1670 = vpop.f32.mrb[0].mxu0
      %1671 = vmatprep.mubr.f32.mxu0 0.0
      %1672 = vmatmul.mubr.f32.gmra.mrb[0].mxu0 %v1525
      %v1673 = vpop.f32.mrb[0].mxu0
      %v1674 = vadd.f32 0.0, %v1673
      %v1675 = vpop.f32.mrb[0].mxu0
      %1676 = vmatprep.mubr.f32.mxu0 0.0
      %1677 = vmatmul.mubr.f32.gmra.mrb[0].mxu0 %v1527
      %v1678 = vpop.f32.mrb[0].mxu0
      %v1679 = vadd.f32 0.0, %v1678
      %v1680 = vpop.f32.mrb[0].mxu0
      %1681 = vmatprep.mubr.f32.mxu0 0.0
      %1682 = vmatmul.mubr.f32.gmra.mrb[0].mxu0 %v1529
      %v1683 = vpop.f32.mrb[0].mxu0
      %v1684 = vadd.f32 0.0, %v1683
      %v1685 = vpop.f32.mrb[0].mxu0
      %1686 = vmatprep.mubr.f32.mxu0 0.0
      %1687 = vmatmul.mubr.f32.gmra.mrb[0].mxu0 %v1531
      %v1688 = vpop.f32.mrb[0].mxu0
      %v1689 = vadd.f32 0.0, %v1688
      %v1690 = vpop.f32.mrb[0].mxu0
      %1691 = vmatprep.mubr.f32.mxu0 0.0
      %1692 = vmatmul.mubr.f32.gmra.mrb[0].mxu0 %v1533
      %v1693 = vpop.f32.mrb[0].mxu0
      %v1694 = vadd.f32 0.0, %v1693
      %v1695 = vpop.f32.mrb[0].mxu0
      %1696 = vmatprep.mubr.f32.mxu0 0.0
      %1697 = vmatmul.mubr.f32.gmra.mrb[0].mxu0 %v1535
      %v1698 = vpop.f32.mrb[0].mxu0
      %v1699 = vadd.f32 0.0, %v1698
      %v1700 = vpop.f32.mrb[0].mxu0
      %1701 = vmatprep.mubr.f32.mxu0 0.0
      %1702 = vmatmul.mubr.f32.gmra.mrb[0].mxu0 %v1537
      %v1703 = vpop.f32.mrb[0].mxu0
      %v1704 = vadd.f32 0.0, %v1703
      %v1705 = vpop.f32.mrb[0].mxu0
      %1706 = vmatprep.mubr.f32.mxu0 0.0
      %1707 = vmatmul.mubr.f32.gmra.mrb[0].mxu0 %v1539
      %v1708 = vpop.f32.mrb[0].mxu0
      %v1709 = vadd.f32 0.0, %v1708
      %v1710 = vpop.f32.mrb[0].mxu0
      %1711 = vmatprep.mubr.f32.mxu0 0.0
      %1712 = vmatmul.mubr.f32.gmra.mrb[0].mxu0 %v1541
      %v1713 = vpop.f32.mrb[0].mxu0
      %v1714 = vadd.f32 0.0, %v1713
      %v1715 = vpop.f32.mrb[0].mxu0
      %1716 = vmatprep.mubr.f32.mxu0 0.0
      %1717 = vmatmul.mubr.f32.gmra.mrb[0].mxu0 %v1543
      %v1718 = vpop.f32.mrb[0].mxu0
      %v1719 = vadd.f32 0.0, %v1718
      %v1720 = vpop.f32.mrb[0].mxu0
      %1721 = vmatprep.mubr.f32.mxu0 0.0
      %1722 = vmatmul.mubr.f32.gmra.mrb[0].mxu0 %v1545
      %v1723 = vpop.f32.mrb[0].mxu0
      %v1724 = vadd.f32 0.0, %v1723
      %v1725 = vpop.f32.mrb[0].mxu0
      %1726 = vmatprep.mubr.f32.mxu0 0.0
      %1727 = vmatmul.mubr.f32.gmra.mrb[0].mxu0 %v1547
      %v1728 = vpop.f32.mrb[0].mxu0
      %v1729 = vadd.f32 0.0, %v1728
      %v1730 = vpop.f32.mrb[0].mxu0
      %1731 = vmatprep.mubr.f32.mxu0 0.0
      %1732 = vmatmul.mubr.f32.gmra.mrb[0].mxu0 %v1549
      %v1733 = vpop.f32.mrb[0].mxu0
      %v1734 = vadd.f32 0.0, %v1733
      %v1735 = vpop.f32.mrb[0].mxu0
      %1736 = vmatprep.mubr.f32.mxu0 0.0
      %1737 = vmatmul.mubr.f32.gmra.mrb[0].mxu0 %v1551
      %v1738 = vpop.f32.mrb[0].mxu0
      %v1739 = vadd.f32 0.0, %v1738
      %v1740 = vpop.f32.mrb[0].mxu0
      %1741 = vmatprep.mubr.f32.mxu0 0.0
      %1742 = vmatmul.mubr.f32.gmra.mrb[0].mxu0 %v1553
      %v1743 = vpop.f32.mrb[0].mxu0
      %v1744 = vadd.f32 0.0, %v1743
      %v1745 = vpop.f32.mrb[0].mxu0
      %1746 = vmatprep.mubr.f32.mxu0 0.0
      %1747 = vmatmul.mubr.f32.gmra.mrb[0].mxu0 %v1555
      %v1748 = vpop.f32.mrb[0].mxu0
      %v1749 = vadd.f32 0.0, %v1748
      %v1750 = vpop.f32.mrb[0].mxu0
      %1751 = vmatprep.mubr.f32.mxu0 0.0
      %1752 = vmatmul.mubr.f32.gmra.mrb[0].mxu0 %v1557
      %v1753 = vpop.f32.mrb[0].mxu0
      %v1754 = vadd.f32 0.0, %v1753
      %v1755 = vpop.f32.mrb[0].mxu0
      %1756 = vmatprep.mubr.f32.mxu0 0.0
      %1757 = vmatmul.mubr.f32.gmra.mrb[0].mxu0 %v1559
      %v1758 = vpop.f32.mrb[0].mxu0
      %v1759 = vadd.f32 0.0, %v1758
      %v1760 = vpop.f32.mrb[0].mxu0
      %1761 = vmatprep.mubr.f32.mxu0 0.0
      %1762 = vmatmul.mubr.f32.gmra.mrb[0].mxu0 %v1561
      %v1763 = vpop.f32.mrb[0].mxu0
      %v1764 = vadd.f32 0.0, %v1763
      %v1765 = vpop.f32.mrb[0].mxu0
      %1766 = vmatprep.mubr.f32.mxu0 0.0
      %1767 = vmatmul.mubr.f32.gmra.mrb[0].mxu0 %v1563
      %v1768 = vpop.f32.mrb[0].mxu0
      %v1769 = vadd.f32 0.0, %v1768
      %v1770 = vpop.f32.mrb[0].mxu0
      %1771 = vmatprep.mubr.f32.mxu0 0.0
      %1772 = vmatmul.mubr.f32.gmra.mrb[0].mxu0 %v1565
      %v1773 = vpop.f32.mrb[0].mxu0
      %v1774 = vadd.f32 0.0, %v1773
      %v1775 = vpop.f32.mrb[0].mxu0
      %1776 = vmatprep.mubr.f32.mxu0 0.0
      %1777 = vmatmul.mubr.f32.gmra.mrb[0].mxu0 %v1567
      %v1778 = vpop.f32.mrb[0].mxu0
      %v1779 = vadd.f32 0.0, %v1778
      %v1780 = vpop.f32.mrb[0].mxu0
      %1781 = vmatprep.mubr.f32.mxu0 0.0
      %1782 = vmatmul.mubr.f32.gmra.mrb[0].mxu0 %v1569
      %v1783 = vpop.f32.mrb[0].mxu0
      %v1784 = vadd.f32 0.0, %v1783
      %v1785 = vpop.f32.mrb[0].mxu0
      %1786 = vmatprep.mubr.f32.mxu0 0.0
      %1787 = vmatmul.mubr.f32.gmra.mrb[0].mxu0 %v1571
      %v1788 = vpop.f32.mrb[0].mxu0
      %v1789 = vadd.f32 0.0, %v1788
      %v1790 = vpop.f32.mrb[0].mxu0
      %1791 = vmatprep.mubr.f32.mxu0 0.0
      %1792 = vmatmul.mubr.f32.gmra.mrb[0].mxu0 %v1573
      %v1793 = vpop.f32.mrb[0].mxu0
      %v1794 = vadd.f32 0.0, %v1793
      %v1795 = vpop.f32.mrb[0].mxu0
      %1796 = vmatprep.mubr.f32.mxu0 0.0
      %1797 = vmatmul.mubr.f32.gmra.mrb[0].mxu0 %v1575
      %v1798 = vpop.f32.mrb[0].mxu0
      %v1799 = vadd.f32 0.0, %v1798
      %v1800 = vpop.f32.mrb[0].mxu0
      %1801 = vdwg.mxu0
      %v1802 = vsel %vm623, %v1644, 0.0
      %v1803 = vsel %vm623, %v1649, 0.0
      %v1804 = vadd.f32 %v1802, %v1803
      %v1805 = vsel %vm623, %v1654, 0.0
      %v1806 = vadd.f32 %v1804, %v1805
      %v1807 = vsel %vm623, %v1659, 0.0
      %v1808 = vadd.f32 %v1806, %v1807
      %v1809 = vsel %vm623, %v1664, 0.0
      %v1810 = vadd.f32 %v1808, %v1809
      %v1811 = vsel %vm623, %v1669, 0.0
      %v1812 = vadd.f32 %v1810, %v1811
      %v1813 = vsel %vm623, %v1674, 0.0
      %v1814 = vadd.f32 %v1812, %v1813
      %v1815 = vsel %vm623, %v1679, 0.0
      %v1816 = vadd.f32 %v1814, %v1815
      %v1817 = vsel %vm623, %v1684, 0.0
      %v1818 = vadd.f32 %v1816, %v1817
      %v1819 = vsel %vm623, %v1689, 0.0
      %v1820 = vadd.f32 %v1818, %v1819
      %v1821 = vsel %vm623, %v1694, 0.0
      %v1822 = vadd.f32 %v1820, %v1821
      %v1823 = vsel %vm623, %v1699, 0.0
      %v1824 = vadd.f32 %v1822, %v1823
      %v1825 = vsel %vm623, %v1704, 0.0
      %v1826 = vadd.f32 %v1824, %v1825
      %v1827 = vsel %vm623, %v1709, 0.0
      %v1828 = vadd.f32 %v1826, %v1827
      %v1829 = vsel %vm623, %v1714, 0.0
      %v1830 = vadd.f32 %v1828, %v1829
      %v1831 = vsel %vm623, %v1719, 0.0
      %v1832 = vadd.f32 %v1830, %v1831
      %v1833 = vsel %vm623, %v1724, 0.0
      %v1834 = vadd.f32 %v1832, %v1833
      %v1835 = vsel %vm623, %v1729, 0.0
      %v1836 = vadd.f32 %v1834, %v1835
      %v1837 = vsel %vm623, %v1734, 0.0
      %v1838 = vadd.f32 %v1836, %v1837
      %v1839 = vsel %vm623, %v1739, 0.0
      %v1840 = vadd.f32 %v1838, %v1839
      %v1841 = vsel %vm623, %v1744, 0.0
      %v1842 = vadd.f32 %v1840, %v1841
      %v1843 = vsel %vm623, %v1749, 0.0
      %v1844 = vadd.f32 %v1842, %v1843
      %v1845 = vsel %vm623, %v1754, 0.0
      %v1846 = vadd.f32 %v1844, %v1845
      %v1847 = vsel %vm623, %v1759, 0.0
      %v1848 = vadd.f32 %v1846, %v1847
      %v1849 = vsel %vm623, %v1764, 0.0
      %v1850 = vadd.f32 %v1848, %v1849
      %v1851 = vsel %vm623, %v1769, 0.0
      %v1852 = vadd.f32 %v1850, %v1851
      %v1853 = vsel %vm623, %v1774, 0.0
      %v1854 = vadd.f32 %v1852, %v1853
      %v1855 = vsel %vm623, %v1779, 0.0
      %v1856 = vadd.f32 %v1854, %v1855
      %v1857 = vsel %vm623, %v1784, 0.0
      %v1858 = vadd.f32 %v1856, %v1857
      %v1859 = vsel %vm623, %v1789, 0.0
      %v1860 = vadd.f32 %v1858, %v1859
      %v1861 = vsel %vm623, %v1794, 0.0
      %v1862 = vadd.f32 %v1860, %v1861
      %v1863 = vsel %vm623, %v1799, 0.0
      %v1864 = vadd.f32 %v1862, %v1863
      %v1865 = vrot.slane %v1864, 4
      %v1866 = vadd.f32 %v1864, %v1865
      %v1867 = vrot.slane %v1866, 2
      %v1868 = vadd.f32 %v1866, %v1867
      %v1869 = vrot.slane %v1868, 1
      %v1870 = vadd.f32 %v1868, %v1869
      %v1871 = vadd.f32 %v1117, %v1870
      %v1872 = vmul.f32 %v1644, %v1644
      %v1873 = vmul.f32 %v1649, %v1649
      %v1874 = vmul.f32 %v1654, %v1654
      %v1875 = vmul.f32 %v1659, %v1659
      %v1876 = vmul.f32 %v1664, %v1664
      %v1877 = vmul.f32 %v1669, %v1669
      %v1878 = vmul.f32 %v1674, %v1674
      %v1879 = vmul.f32 %v1679, %v1679
      %v1880 = vmul.f32 %v1684, %v1684
      %v1881 = vmul.f32 %v1689, %v1689
      %v1882 = vmul.f32 %v1694, %v1694
      %v1883 = vmul.f32 %v1699, %v1699
      %v1884 = vmul.f32 %v1704, %v1704
      %v1885 = vmul.f32 %v1709, %v1709
      %v1886 = vmul.f32 %v1714, %v1714
      %v1887 = vmul.f32 %v1719, %v1719
      %v1888 = vmul.f32 %v1724, %v1724
      %v1889 = vmul.f32 %v1729, %v1729
      %v1890 = vmul.f32 %v1734, %v1734
      %v1891 = vmul.f32 %v1739, %v1739
      %v1892 = vmul.f32 %v1744, %v1744
      %v1893 = vmul.f32 %v1749, %v1749
      %v1894 = vmul.f32 %v1754, %v1754
      %v1895 = vmul.f32 %v1759, %v1759
      %v1896 = vmul.f32 %v1764, %v1764
      %v1897 = vmul.f32 %v1769, %v1769
      %v1898 = vmul.f32 %v1774, %v1774
      %v1899 = vmul.f32 %v1779, %v1779
      %v1900 = vmul.f32 %v1784, %v1784
      %v1901 = vmul.f32 %v1789, %v1789
      %v1902 = vmul.f32 %v1794, %v1794
      %v1903 = vmul.f32 %v1799, %v1799
      %v1904 = vsel %vm623, %v1872, 0.0
      %v1905 = vsel %vm623, %v1873, 0.0
      %v1906 = vadd.f32 %v1904, %v1905
      %v1907 = vsel %vm623, %v1874, 0.0
      %v1908 = vadd.f32 %v1906, %v1907
      %v1909 = vsel %vm623, %v1875, 0.0
      %v1910 = vadd.f32 %v1908, %v1909
      %v1911 = vsel %vm623, %v1876, 0.0
      %v1912 = vadd.f32 %v1910, %v1911
      %v1913 = vsel %vm623, %v1877, 0.0
      %v1914 = vadd.f32 %v1912, %v1913
      %v1915 = vsel %vm623, %v1878, 0.0
      %v1916 = vadd.f32 %v1914, %v1915
      %v1917 = vsel %vm623, %v1879, 0.0
      %v1918 = vadd.f32 %v1916, %v1917
      %v1919 = vsel %vm623, %v1880, 0.0
      %v1920 = vadd.f32 %v1918, %v1919
      %v1921 = vsel %vm623, %v1881, 0.0
      %v1922 = vadd.f32 %v1920, %v1921
      %v1923 = vsel %vm623, %v1882, 0.0
      %v1924 = vadd.f32 %v1922, %v1923
      %v1925 = vsel %vm623, %v1883, 0.0
      %v1926 = vadd.f32 %v1924, %v1925
      %v1927 = vsel %vm623, %v1884, 0.0
      %v1928 = vadd.f32 %v1926, %v1927
      %v1929 = vsel %vm623, %v1885, 0.0
      %v1930 = vadd.f32 %v1928, %v1929
      %v1931 = vsel %vm623, %v1886, 0.0
      %v1932 = vadd.f32 %v1930, %v1931
      %v1933 = vsel %vm623, %v1887, 0.0
      %v1934 = vadd.f32 %v1932, %v1933
      %v1935 = vsel %vm623, %v1888, 0.0
      %v1936 = vadd.f32 %v1934, %v1935
      %v1937 = vsel %vm623, %v1889, 0.0
      %v1938 = vadd.f32 %v1936, %v1937
      %v1939 = vsel %vm623, %v1890, 0.0
      %v1940 = vadd.f32 %v1938, %v1939
      %v1941 = vsel %vm623, %v1891, 0.0
      %v1942 = vadd.f32 %v1940, %v1941
      %v1943 = vsel %vm623, %v1892, 0.0
      %v1944 = vadd.f32 %v1942, %v1943
      %v1945 = vsel %vm623, %v1893, 0.0
      %v1946 = vadd.f32 %v1944, %v1945
      %v1947 = vsel %vm623, %v1894, 0.0
      %v1948 = vadd.f32 %v1946, %v1947
      %v1949 = vsel %vm623, %v1895, 0.0
      %v1950 = vadd.f32 %v1948, %v1949
      %v1951 = vsel %vm623, %v1896, 0.0
      %v1952 = vadd.f32 %v1950, %v1951
      %v1953 = vsel %vm623, %v1897, 0.0
      %v1954 = vadd.f32 %v1952, %v1953
      %v1955 = vsel %vm623, %v1898, 0.0
      %v1956 = vadd.f32 %v1954, %v1955
      %v1957 = vsel %vm623, %v1899, 0.0
      %v1958 = vadd.f32 %v1956, %v1957
      %v1959 = vsel %vm623, %v1900, 0.0
      %v1960 = vadd.f32 %v1958, %v1959
      %v1961 = vsel %vm623, %v1901, 0.0
      %v1962 = vadd.f32 %v1960, %v1961
      %v1963 = vsel %vm623, %v1902, 0.0
      %v1964 = vadd.f32 %v1962, %v1963
      %v1965 = vsel %vm623, %v1903, 0.0
      %v1966 = vadd.f32 %v1964, %v1965
      %v1967 = vrot.slane %v1966, 4
      %v1968 = vadd.f32 %v1966, %v1967
      %v1969 = vrot.slane %v1968, 2
      %v1970 = vadd.f32 %v1968, %v1969
      %v1971 = vrot.slane %v1970, 1
      %v1972 = vadd.f32 %v1970, %v1971
      %v1973 = vadd.f32 %v1219, %v1972
      %1974 = vrot.lane.b32.xlu0 %v524, 8
      %v1975 = vpop.permute.xlu0 %1974
      %1976 = vrot.lane.b32.xlu0 %v526, 8
      %v1977 = vpop.permute.xlu0 %1976
      %1982 = vrot.lane.b32.xlu0 %v195, 16
      %v1983 = vpop.permute.xlu0 %1982
      %1984 = vrot.lane.b32.xlu0 %v196, 16
      %v1985 = vpop.permute.xlu0 %1984
      %v1989 = vrot.slane %v195, 1
      %v1990 = vrot.slane %v196, 1
      %v1991 = vsel %vm246, %v1989, %v1990
      %v1992 = vrot.slane %v197, 1
      %v1993 = vsel %vm246, %v1990, %v1992
      %1994 = vrot.lane.b32.xlu0 %v1991, 24
      %v1995 = vpop.permute.xlu0 %1994
      %1996 = vrot.lane.b32.xlu0 %v1993, 24
      %v1997 = vpop.permute.xlu0 %1996
      %v2000 = vsel %vm623, %v192, %v1975
      %v2001 = vsel %vm623, %v193, %v1977
      %v2002 = vsel %vm656, %v2000, %v1983
      %v2003 = vsel %vm656, %v2001, %v1985
      %v2004 = vsel %vm689, %v2002, %v1995
      %v2005 = vsel %vm689, %v2003, %v1997
      %s2006 = scalar_lea.vmem %s1, 64
      %v2007 = vld [vmem:[%s2006] sm:$0xff]
      %v2008 = vld [vmem:[%s2006 + $0x8] sm:$0xff]
      %v2009 = vld [vmem:[%s2006 + $0x10] sm:$0xff]
      %v2010 = vld [vmem:[%s2006 + $0x18] sm:$0xff]
      %v2012 = vsel %vm726, %v2004, 0
      %v2015 = vsel %vm726, %v2005, 0
      %2017 = vmatprep.subr.mxu0 0.0
      %2018 = vmatpush1.msra.mxu0 %v2007
      %2019 = vmatprep.subr.mxu0 0.0
      %2020 = vmatpush1.msra.mxu0 %v2008
      %2021 = vmatprep.subr.mxu0 0.0
      %2022 = vmatpush1.msra.mxu0 %v2009
      %2023 = vmatprep.subr.mxu0 0.0
      %2024 = vmatpush1.msra.mxu0 %v2010
      %2025 = vmatprep.subr.mxu0 0.0
      %2026 = vmatpush1.msra.mxu0 0.0
      %2027 = vmatprep.subr.mxu0 0.0
      %2028 = vmatpush1.msra.mxu0 0.0
      %2029 = vmatprep.subr.mxu0 0.0
      %2030 = vmatpush1.msra.mxu0 0.0
      %2031 = vmatprep.subr.mxu0 0.0
      %2032 = vmatpush1.msra.mxu0 0.0
      %2033 = vmatprep.subr.mxu0 0.0
      %2034 = vmatpush1.msra.mxu0 0.0
      %2035 = vmatprep.subr.mxu0 0.0
      %2036 = vmatpush1.msra.mxu0 0.0
      %2037 = vmatprep.subr.mxu0 0.0
      %2038 = vmatpush1.msra.mxu0 0.0
      %2039 = vmatprep.subr.mxu0 0.0
      %2040 = vmatpush1.msra.mxu0 0.0
      %2041 = vmatprep.subr.mxu0 0.0
      %2042 = vmatpush1.msra.mxu0 0.0
      %2043 = vmatprep.subr.mxu0 0.0
      %2044 = vmatpush1.msra.mxu0 0.0
      %2045 = vmatprep.subr.mxu0 0.0
      %2046 = vmatpush1.msra.mxu0 0.0
      %2047 = vmatprep.subr.mxu0 0.0
      %2048 = vmatpush1.msra.mxu0 0.0
      %2049 = vmatprep.subr.mxu0 0.0
      %2050 = vmatpush1.msra.mxu0 0.0
      %2051 = vmatprep.subr.mxu0 0.0
      %2052 = vmatpush1.msra.mxu0 0.0
      %2053 = vmatprep.subr.mxu0 0.0
      %2054 = vmatpush1.msra.mxu0 0.0
      %2055 = vmatprep.subr.mxu0 0.0
      %2056 = vmatpush1.msra.mxu0 0.0
      %2057 = vmatprep.subr.mxu0 0.0
      %2058 = vmatpush1.msra.mxu0 0.0
      %2059 = vmatprep.subr.mxu0 0.0
      %2060 = vmatpush1.msra.mxu0 0.0
      %2061 = vmatprep.subr.mxu0 0.0
      %2062 = vmatpush1.msra.mxu0 0.0
      %2063 = vmatprep.subr.mxu0 0.0
      %2064 = vmatpush1.msra.mxu0 0.0
      %2065 = vmatprep.subr.mxu0 0.0
      %2066 = vmatpush1.msra.mxu0 0.0
      %2067 = vmatprep.subr.mxu0 0.0
      %2068 = vmatpush1.msra.mxu0 0.0
      %2069 = vmatprep.subr.mxu0 0.0
      %2070 = vmatpush1.msra.mxu0 0.0
      %2071 = vmatprep.subr.mxu0 0.0
      %2072 = vmatpush1.msra.mxu0 0.0
      %2073 = vmatprep.subr.mxu0 0.0
      %2074 = vmatpush1.msra.mxu0 0.0
      %2075 = vmatprep.subr.mxu0 0.0
      %2076 = vmatpush1.msra.mxu0 0.0
      %2077 = vmatprep.subr.mxu0 0.0
      %2078 = vmatpush1.msra.mxu0 0.0
      %2079 = vmatprep.subr.mxu0 0.0
      %2080 = vmatpush1.msra.mxu0 0.0
      %2081 = vmatprep.mubr.f32.mxu0 0.0
      %2082 = vmatmul.mubr.f32.gmra.mrb[0].mxu0 %v734
      %v2083 = vpop.f32.mrb[0].mxu0
      %v2084 = vadd.f32 0.0, %v2083
      %v2085 = vpop.f32.mrb[0].mxu0
      %2086 = vmatprep.mubr.f32.mxu0 0.0
      %2087 = vmatmul.mubr.f32.gmra.mrb[0].mxu0 %v737
      %v2088 = vpop.f32.mrb[0].mxu0
      %v2089 = vadd.f32 0.0, %v2088
      %v2090 = vpop.f32.mrb[0].mxu0
      %2091 = vmatprep.mubr.f32.mxu0 0.0
      %2092 = vmatmul.mubr.f32.gmra.mrb[0].mxu0 %v740
      %v2093 = vpop.f32.mrb[0].mxu0
      %v2094 = vadd.f32 0.0, %v2093
      %v2095 = vpop.f32.mrb[0].mxu0
      %2096 = vmatprep.mubr.f32.mxu0 0.0
      %2097 = vmatmul.mubr.f32.gmra.mrb[0].mxu0 %v743
      %v2098 = vpop.f32.mrb[0].mxu0
      %v2099 = vadd.f32 0.0, %v2098
      %v2100 = vpop.f32.mrb[0].mxu0
      %2101 = vmatprep.mubr.f32.mxu0 0.0
      %2102 = vmatmul.mubr.f32.gmra.mrb[0].mxu0 %v746
      %v2103 = vpop.f32.mrb[0].mxu0
      %v2104 = vadd.f32 0.0, %v2103
      %v2105 = vpop.f32.mrb[0].mxu0
      %2106 = vmatprep.mubr.f32.mxu0 0.0
      %2107 = vmatmul.mubr.f32.gmra.mrb[0].mxu0 %v749
      %v2108 = vpop.f32.mrb[0].mxu0
      %v2109 = vadd.f32 0.0, %v2108
      %v2110 = vpop.f32.mrb[0].mxu0
      %2111 = vmatprep.mubr.f32.mxu0 0.0
      %2112 = vmatmul.mubr.f32.gmra.mrb[0].mxu0 %v752
      %v2113 = vpop.f32.mrb[0].mxu0
      %v2114 = vadd.f32 0.0, %v2113
      %v2115 = vpop.f32.mrb[0].mxu0
      %2116 = vmatprep.mubr.f32.mxu0 0.0
      %2117 = vmatmul.mubr.f32.gmra.mrb[0].mxu0 %v755
      %v2118 = vpop.f32.mrb[0].mxu0
      %v2119 = vadd.f32 0.0, %v2118
      %v2120 = vpop.f32.mrb[0].mxu0
      %2121 = vmatprep.mubr.f32.mxu0 0.0
      %2122 = vmatmul.mubr.f32.gmra.mrb[0].mxu0 %v758
      %v2123 = vpop.f32.mrb[0].mxu0
      %v2124 = vadd.f32 0.0, %v2123
      %v2125 = vpop.f32.mrb[0].mxu0
      %2126 = vmatprep.mubr.f32.mxu0 0.0
      %2127 = vmatmul.mubr.f32.gmra.mrb[0].mxu0 %v761
      %v2128 = vpop.f32.mrb[0].mxu0
      %v2129 = vadd.f32 0.0, %v2128
      %v2130 = vpop.f32.mrb[0].mxu0
      %2131 = vmatprep.mubr.f32.mxu0 0.0
      %2132 = vmatmul.mubr.f32.gmra.mrb[0].mxu0 %v764
      %v2133 = vpop.f32.mrb[0].mxu0
      %v2134 = vadd.f32 0.0, %v2133
      %v2135 = vpop.f32.mrb[0].mxu0
      %2136 = vmatprep.mubr.f32.mxu0 0.0
      %2137 = vmatmul.mubr.f32.gmra.mrb[0].mxu0 %v767
      %v2138 = vpop.f32.mrb[0].mxu0
      %v2139 = vadd.f32 0.0, %v2138
      %v2140 = vpop.f32.mrb[0].mxu0
      %2141 = vmatprep.mubr.f32.mxu0 0.0
      %2142 = vmatmul.mubr.f32.gmra.mrb[0].mxu0 %v770
      %v2143 = vpop.f32.mrb[0].mxu0
      %v2144 = vadd.f32 0.0, %v2143
      %v2145 = vpop.f32.mrb[0].mxu0
      %2146 = vmatprep.mubr.f32.mxu0 0.0
      %2147 = vmatmul.mubr.f32.gmra.mrb[0].mxu0 %v773
      %v2148 = vpop.f32.mrb[0].mxu0
      %v2149 = vadd.f32 0.0, %v2148
      %v2150 = vpop.f32.mrb[0].mxu0
      %2151 = vmatprep.mubr.f32.mxu0 0.0
      %2152 = vmatmul.mubr.f32.gmra.mrb[0].mxu0 %v776
      %v2153 = vpop.f32.mrb[0].mxu0
      %v2154 = vadd.f32 0.0, %v2153
      %v2155 = vpop.f32.mrb[0].mxu0
      %2156 = vmatprep.mubr.f32.mxu0 0.0
      %2157 = vmatmul.mubr.f32.gmra.mrb[0].mxu0 %v779
      %v2158 = vpop.f32.mrb[0].mxu0
      %v2159 = vadd.f32 0.0, %v2158
      %v2160 = vpop.f32.mrb[0].mxu0
      %2161 = vmatprep.mubr.f32.mxu0 0.0
      %2162 = vmatmul.mubr.f32.gmra.mrb[0].mxu0 %v782
      %v2163 = vpop.f32.mrb[0].mxu0
      %v2164 = vadd.f32 0.0, %v2163
      %v2165 = vpop.f32.mrb[0].mxu0
      %2166 = vmatprep.mubr.f32.mxu0 0.0
      %2167 = vmatmul.mubr.f32.gmra.mrb[0].mxu0 %v785
      %v2168 = vpop.f32.mrb[0].mxu0
      %v2169 = vadd.f32 0.0, %v2168
      %v2170 = vpop.f32.mrb[0].mxu0
      %2171 = vmatprep.mubr.f32.mxu0 0.0
      %2172 = vmatmul.mubr.f32.gmra.mrb[0].mxu0 %v788
      %v2173 = vpop.f32.mrb[0].mxu0
      %v2174 = vadd.f32 0.0, %v2173
      %v2175 = vpop.f32.mrb[0].mxu0
      %2176 = vmatprep.mubr.f32.mxu0 0.0
      %2177 = vmatmul.mubr.f32.gmra.mrb[0].mxu0 %v791
      %v2178 = vpop.f32.mrb[0].mxu0
      %v2179 = vadd.f32 0.0, %v2178
      %v2180 = vpop.f32.mrb[0].mxu0
      %2181 = vmatprep.mubr.f32.mxu0 0.0
      %2182 = vmatmul.mubr.f32.gmra.mrb[0].mxu0 %v794
      %v2183 = vpop.f32.mrb[0].mxu0
      %v2184 = vadd.f32 0.0, %v2183
      %v2185 = vpop.f32.mrb[0].mxu0
      %2186 = vmatprep.mubr.f32.mxu0 0.0
      %2187 = vmatmul.mubr.f32.gmra.mrb[0].mxu0 %v797
      %v2188 = vpop.f32.mrb[0].mxu0
      %v2189 = vadd.f32 0.0, %v2188
      %v2190 = vpop.f32.mrb[0].mxu0
      %2191 = vmatprep.mubr.f32.mxu0 0.0
      %2192 = vmatmul.mubr.f32.gmra.mrb[0].mxu0 %v800
      %v2193 = vpop.f32.mrb[0].mxu0
      %v2194 = vadd.f32 0.0, %v2193
      %v2195 = vpop.f32.mrb[0].mxu0
      %2196 = vmatprep.mubr.f32.mxu0 0.0
      %2197 = vmatmul.mubr.f32.gmra.mrb[0].mxu0 %v803
      %v2198 = vpop.f32.mrb[0].mxu0
      %v2199 = vadd.f32 0.0, %v2198
      %v2200 = vpop.f32.mrb[0].mxu0
      %2201 = vmatprep.mubr.f32.mxu0 0.0
      %2202 = vmatmul.mubr.f32.gmra.mrb[0].mxu0 %v806
      %v2203 = vpop.f32.mrb[0].mxu0
      %v2204 = vadd.f32 0.0, %v2203
      %v2205 = vpop.f32.mrb[0].mxu0
      %2206 = vmatprep.mubr.f32.mxu0 0.0
      %2207 = vmatmul.mubr.f32.gmra.mrb[0].mxu0 %v809
      %v2208 = vpop.f32.mrb[0].mxu0
      %v2209 = vadd.f32 0.0, %v2208
      %v2210 = vpop.f32.mrb[0].mxu0
      %2211 = vmatprep.mubr.f32.mxu0 0.0
      %2212 = vmatmul.mubr.f32.gmra.mrb[0].mxu0 %v812
      %v2213 = vpop.f32.mrb[0].mxu0
      %v2214 = vadd.f32 0.0, %v2213
      %v2215 = vpop.f32.mrb[0].mxu0
      %2216 = vmatprep.mubr.f32.mxu0 0.0
      %2217 = vmatmul.mubr.f32.gmra.mrb[0].mxu0 %v815
      %v2218 = vpop.f32.mrb[0].mxu0
      %v2219 = vadd.f32 0.0, %v2218
      %v2220 = vpop.f32.mrb[0].mxu0
      %2221 = vmatprep.mubr.f32.mxu0 0.0
      %2222 = vmatmul.mubr.f32.gmra.mrb[0].mxu0 %v818
      %v2223 = vpop.f32.mrb[0].mxu0
      %v2224 = vadd.f32 0.0, %v2223
      %v2225 = vpop.f32.mrb[0].mxu0
      %2226 = vmatprep.mubr.f32.mxu0 0.0
      %2227 = vmatmul.mubr.f32.gmra.mrb[0].mxu0 %v821
      %v2228 = vpop.f32.mrb[0].mxu0
      %v2229 = vadd.f32 0.0, %v2228
      %v2230 = vpop.f32.mrb[0].mxu0
      %2231 = vmatprep.mubr.f32.mxu0 0.0
      %2232 = vmatmul.mubr.f32.gmra.mrb[0].mxu0 %v2012
      %v2233 = vpop.f32.mrb[0].mxu0
      %v2234 = vadd.f32 0.0, %v2233
      %v2235 = vpop.f32.mrb[0].mxu0
      %2236 = vmatprep.mubr.f32.mxu0 0.0
      %2237 = vmatmul.mubr.f32.gmra.mrb[0].mxu0 %v2015
      %v2238 = vpop.f32.mrb[0].mxu0
      %v2239 = vadd.f32 0.0, %v2238
      %v2240 = vpop.f32.mrb[0].mxu0
      %2241 = vdwg.mxu0
      %v2242 = vsel %vm623, %v2084, 0.0
      %v2243 = vsel %vm623, %v2089, 0.0
      %v2244 = vadd.f32 %v2242, %v2243
      %v2245 = vsel %vm623, %v2094, 0.0
      %v2246 = vadd.f32 %v2244, %v2245
      %v2247 = vsel %vm623, %v2099, 0.0
      %v2248 = vadd.f32 %v2246, %v2247
      %v2249 = vsel %vm623, %v2104, 0.0
      %v2250 = vadd.f32 %v2248, %v2249
      %v2251 = vsel %vm623, %v2109, 0.0
      %v2252 = vadd.f32 %v2250, %v2251
      %v2253 = vsel %vm623, %v2114, 0.0
      %v2254 = vadd.f32 %v2252, %v2253
      %v2255 = vsel %vm623, %v2119, 0.0
      %v2256 = vadd.f32 %v2254, %v2255
      %v2257 = vsel %vm623, %v2124, 0.0
      %v2258 = vadd.f32 %v2256, %v2257
      %v2259 = vsel %vm623, %v2129, 0.0
      %v2260 = vadd.f32 %v2258, %v2259
      %v2261 = vsel %vm623, %v2134, 0.0
      %v2262 = vadd.f32 %v2260, %v2261
      %v2263 = vsel %vm623, %v2139, 0.0
      %v2264 = vadd.f32 %v2262, %v2263
      %v2265 = vsel %vm623, %v2144, 0.0
      %v2266 = vadd.f32 %v2264, %v2265
      %v2267 = vsel %vm623, %v2149, 0.0
      %v2268 = vadd.f32 %v2266, %v2267
      %v2269 = vsel %vm623, %v2154, 0.0
      %v2270 = vadd.f32 %v2268, %v2269
      %v2271 = vsel %vm623, %v2159, 0.0
      %v2272 = vadd.f32 %v2270, %v2271
      %v2273 = vsel %vm623, %v2164, 0.0
      %v2274 = vadd.f32 %v2272, %v2273
      %v2275 = vsel %vm623, %v2169, 0.0
      %v2276 = vadd.f32 %v2274, %v2275
      %v2277 = vsel %vm623, %v2174, 0.0
      %v2278 = vadd.f32 %v2276, %v2277
      %v2279 = vsel %vm623, %v2179, 0.0
      %v2280 = vadd.f32 %v2278, %v2279
      %v2281 = vsel %vm623, %v2184, 0.0
      %v2282 = vadd.f32 %v2280, %v2281
      %v2283 = vsel %vm623, %v2189, 0.0
      %v2284 = vadd.f32 %v2282, %v2283
      %v2285 = vsel %vm623, %v2194, 0.0
      %v2286 = vadd.f32 %v2284, %v2285
      %v2287 = vsel %vm623, %v2199, 0.0
      %v2288 = vadd.f32 %v2286, %v2287
      %v2289 = vsel %vm623, %v2204, 0.0
      %v2290 = vadd.f32 %v2288, %v2289
      %v2291 = vsel %vm623, %v2209, 0.0
      %v2292 = vadd.f32 %v2290, %v2291
      %v2293 = vsel %vm623, %v2214, 0.0
      %v2294 = vadd.f32 %v2292, %v2293
      %v2295 = vsel %vm623, %v2219, 0.0
      %v2296 = vadd.f32 %v2294, %v2295
      %v2297 = vsel %vm623, %v2224, 0.0
      %v2298 = vadd.f32 %v2296, %v2297
      %v2299 = vsel %vm623, %v2229, 0.0
      %v2300 = vadd.f32 %v2298, %v2299
      %v2301 = vsel %vm623, %v2234, 0.0
      %v2302 = vadd.f32 %v2300, %v2301
      %v2303 = vsel %vm623, %v2239, 0.0
      %v2304 = vadd.f32 %v2302, %v2303
      %v2305 = vrot.slane %v2304, 4
      %v2306 = vadd.f32 %v2304, %v2305
      %v2307 = vrot.slane %v2306, 2
      %v2308 = vadd.f32 %v2306, %v2307
      %v2309 = vrot.slane %v2308, 1
      %v2310 = vadd.f32 %v2308, %v2309
      %v2311 = vadd.f32 %v1871, %v2310
      %v2312 = vmul.f32 %v2084, %v2084
      %v2313 = vmul.f32 %v2089, %v2089
      %v2314 = vmul.f32 %v2094, %v2094
      %v2315 = vmul.f32 %v2099, %v2099
      %v2316 = vmul.f32 %v2104, %v2104
      %v2317 = vmul.f32 %v2109, %v2109
      %v2318 = vmul.f32 %v2114, %v2114
      %v2319 = vmul.f32 %v2119, %v2119
      %v2320 = vmul.f32 %v2124, %v2124
      %v2321 = vmul.f32 %v2129, %v2129
      %v2322 = vmul.f32 %v2134, %v2134
      %v2323 = vmul.f32 %v2139, %v2139
      %v2324 = vmul.f32 %v2144, %v2144
      %v2325 = vmul.f32 %v2149, %v2149
      %v2326 = vmul.f32 %v2154, %v2154
      %v2327 = vmul.f32 %v2159, %v2159
      %v2328 = vmul.f32 %v2164, %v2164
      %v2329 = vmul.f32 %v2169, %v2169
      %v2330 = vmul.f32 %v2174, %v2174
      %v2331 = vmul.f32 %v2179, %v2179
      %v2332 = vmul.f32 %v2184, %v2184
      %v2333 = vmul.f32 %v2189, %v2189
      %v2334 = vmul.f32 %v2194, %v2194
      %v2335 = vmul.f32 %v2199, %v2199
      %v2336 = vmul.f32 %v2204, %v2204
      %v2337 = vmul.f32 %v2209, %v2209
      %v2338 = vmul.f32 %v2214, %v2214
      %v2339 = vmul.f32 %v2219, %v2219
      %v2340 = vmul.f32 %v2224, %v2224
      %v2341 = vmul.f32 %v2229, %v2229
      %v2342 = vmul.f32 %v2234, %v2234
      %v2343 = vmul.f32 %v2239, %v2239
      %v2344 = vsel %vm623, %v2312, 0.0
      %v2345 = vsel %vm623, %v2313, 0.0
      %v2346 = vadd.f32 %v2344, %v2345
      %v2347 = vsel %vm623, %v2314, 0.0
      %v2348 = vadd.f32 %v2346, %v2347
      %v2349 = vsel %vm623, %v2315, 0.0
      %v2350 = vadd.f32 %v2348, %v2349
      %v2351 = vsel %vm623, %v2316, 0.0
      %v2352 = vadd.f32 %v2350, %v2351
      %v2353 = vsel %vm623, %v2317, 0.0
      %v2354 = vadd.f32 %v2352, %v2353
      %v2355 = vsel %vm623, %v2318, 0.0
      %v2356 = vadd.f32 %v2354, %v2355
      %v2357 = vsel %vm623, %v2319, 0.0
      %v2358 = vadd.f32 %v2356, %v2357
      %v2359 = vsel %vm623, %v2320, 0.0
      %v2360 = vadd.f32 %v2358, %v2359
      %v2361 = vsel %vm623, %v2321, 0.0
      %v2362 = vadd.f32 %v2360, %v2361
      %v2363 = vsel %vm623, %v2322, 0.0
      %v2364 = vadd.f32 %v2362, %v2363
      %v2365 = vsel %vm623, %v2323, 0.0
      %v2366 = vadd.f32 %v2364, %v2365
      %v2367 = vsel %vm623, %v2324, 0.0
      %v2368 = vadd.f32 %v2366, %v2367
      %v2369 = vsel %vm623, %v2325, 0.0
      %v2370 = vadd.f32 %v2368, %v2369
      %v2371 = vsel %vm623, %v2326, 0.0
      %v2372 = vadd.f32 %v2370, %v2371
      %v2373 = vsel %vm623, %v2327, 0.0
      %v2374 = vadd.f32 %v2372, %v2373
      %v2375 = vsel %vm623, %v2328, 0.0
      %v2376 = vadd.f32 %v2374, %v2375
      %v2377 = vsel %vm623, %v2329, 0.0
      %v2378 = vadd.f32 %v2376, %v2377
      %v2379 = vsel %vm623, %v2330, 0.0
      %v2380 = vadd.f32 %v2378, %v2379
      %v2381 = vsel %vm623, %v2331, 0.0
      %v2382 = vadd.f32 %v2380, %v2381
      %v2383 = vsel %vm623, %v2332, 0.0
      %v2384 = vadd.f32 %v2382, %v2383
      %v2385 = vsel %vm623, %v2333, 0.0
      %v2386 = vadd.f32 %v2384, %v2385
      %v2387 = vsel %vm623, %v2334, 0.0
      %v2388 = vadd.f32 %v2386, %v2387
      %v2389 = vsel %vm623, %v2335, 0.0
      %v2390 = vadd.f32 %v2388, %v2389
      %v2391 = vsel %vm623, %v2336, 0.0
      %v2392 = vadd.f32 %v2390, %v2391
      %v2393 = vsel %vm623, %v2337, 0.0
      %v2394 = vadd.f32 %v2392, %v2393
      %v2395 = vsel %vm623, %v2338, 0.0
      %v2396 = vadd.f32 %v2394, %v2395
      %v2397 = vsel %vm623, %v2339, 0.0
      %v2398 = vadd.f32 %v2396, %v2397
      %v2399 = vsel %vm623, %v2340, 0.0
      %v2400 = vadd.f32 %v2398, %v2399
      %v2401 = vsel %vm623, %v2341, 0.0
      %v2402 = vadd.f32 %v2400, %v2401
      %v2403 = vsel %vm623, %v2342, 0.0
      %v2404 = vadd.f32 %v2402, %v2403
      %v2405 = vsel %vm623, %v2343, 0.0
      %v2406 = vadd.f32 %v2404, %v2405
      %v2407 = vrot.slane %v2406, 4
      %v2408 = vadd.f32 %v2406, %v2407
      %v2409 = vrot.slane %v2408, 2
      %v2410 = vadd.f32 %v2408, %v2409
      %v2411 = vrot.slane %v2410, 1
      %v2412 = vadd.f32 %v2410, %v2411
      %v2413 = vadd.f32 %v1973, %v2412
      %2414 = vrot.lane.b32.xlu0 %v525, 8
      %v2415 = vpop.permute.xlu0 %2414
      %2417 = vrot.lane.b32.xlu0 %v197, 16
      %v2418 = vpop.permute.xlu0 %2417
      %2420 = vrot.lane.b32.xlu0 %v1992, 24
      %v2421 = vpop.permute.xlu0 %2420
      %v2423 = vsel %vm623, %v194, %v2415
      %v2424 = vsel %vm656, %v2423, %v2418
      %v2425 = vsel %vm689, %v2424, %v2421
      %v2427 = vrot.slane %v2004, 1
      %v2428 = vrot.slane %v2005, 1
      %v2429 = vsel %vm246, %v2427, %v2428
      %v2430 = vrot.slane %v2425, 1
      %v2431 = vsel %vm246, %v2428, %v2430
      %s2432 = scalar_lea.vmem %s1, 96
      %v2433 = vld [vmem:[%s2432] sm:$0xff]
      %v2434 = vld [vmem:[%s2432 + $0x8] sm:$0xff]
      %v2435 = vld [vmem:[%s2432 + $0x10] sm:$0xff]
      %v2436 = vld [vmem:[%s2432 + $0x18] sm:$0xff]
      %v2437 = vsel %vm726, %v2429, 0
      %v2439 = vsel %vm726, %v2431, 0
      %2441 = vmatprep.subr.mxu0 0.0
      %2442 = vmatpush1.msra.mxu0 %v2433
      %2443 = vmatprep.subr.mxu0 0.0
      %2444 = vmatpush1.msra.mxu0 %v2434
      %2445 = vmatprep.subr.mxu0 0.0
      %2446 = vmatpush1.msra.mxu0 %v2435
      %2447 = vmatprep.subr.mxu0 0.0
      %2448 = vmatpush1.msra.mxu0 %v2436
      %2449 = vmatprep.subr.mxu0 0.0
      %2450 = vmatpush1.msra.mxu0 0.0
      %2451 = vmatprep.subr.mxu0 0.0
      %2452 = vmatpush1.msra.mxu0 0.0
      %2453 = vmatprep.subr.mxu0 0.0
      %2454 = vmatpush1.msra.mxu0 0.0
      %2455 = vmatprep.subr.mxu0 0.0
      %2456 = vmatpush1.msra.mxu0 0.0
      %2457 = vmatprep.subr.mxu0 0.0
      %2458 = vmatpush1.msra.mxu0 0.0
      %2459 = vmatprep.subr.mxu0 0.0
      %2460 = vmatpush1.msra.mxu0 0.0
      %2461 = vmatprep.subr.mxu0 0.0
      %2462 = vmatpush1.msra.mxu0 0.0
      %2463 = vmatprep.subr.mxu0 0.0
      %2464 = vmatpush1.msra.mxu0 0.0
      %2465 = vmatprep.subr.mxu0 0.0
      %2466 = vmatpush1.msra.mxu0 0.0
      %2467 = vmatprep.subr.mxu0 0.0
      %2468 = vmatpush1.msra.mxu0 0.0
      %2469 = vmatprep.subr.mxu0 0.0
      %2470 = vmatpush1.msra.mxu0 0.0
      %2471 = vmatprep.subr.mxu0 0.0
      %2472 = vmatpush1.msra.mxu0 0.0
      %2473 = vmatprep.subr.mxu0 0.0
      %2474 = vmatpush1.msra.mxu0 0.0
      %2475 = vmatprep.subr.mxu0 0.0
      %2476 = vmatpush1.msra.mxu0 0.0
      %2477 = vmatprep.subr.mxu0 0.0
      %2478 = vmatpush1.msra.mxu0 0.0
      %2479 = vmatprep.subr.mxu0 0.0
      %2480 = vmatpush1.msra.mxu0 0.0
      %2481 = vmatprep.subr.mxu0 0.0
      %2482 = vmatpush1.msra.mxu0 0.0
      %2483 = vmatprep.subr.mxu0 0.0
      %2484 = vmatpush1.msra.mxu0 0.0
      %2485 = vmatprep.subr.mxu0 0.0
      %2486 = vmatpush1.msra.mxu0 0.0
      %2487 = vmatprep.subr.mxu0 0.0
      %2488 = vmatpush1.msra.mxu0 0.0
      %2489 = vmatprep.subr.mxu0 0.0
      %2490 = vmatpush1.msra.mxu0 0.0
      %2491 = vmatprep.subr.mxu0 0.0
      %2492 = vmatpush1.msra.mxu0 0.0
      %2493 = vmatprep.subr.mxu0 0.0
      %2494 = vmatpush1.msra.mxu0 0.0
      %2495 = vmatprep.subr.mxu0 0.0
      %2496 = vmatpush1.msra.mxu0 0.0
      %2497 = vmatprep.subr.mxu0 0.0
      %2498 = vmatpush1.msra.mxu0 0.0
      %2499 = vmatprep.subr.mxu0 0.0
      %2500 = vmatpush1.msra.mxu0 0.0
      %2501 = vmatprep.subr.mxu0 0.0
      %2502 = vmatpush1.msra.mxu0 0.0
      %2503 = vmatprep.subr.mxu0 0.0
      %2504 = vmatpush1.msra.mxu0 0.0
      %2505 = vmatprep.mubr.f32.mxu0 0.0
      %2506 = vmatmul.mubr.f32.gmra.mrb[0].mxu0 %v1517
      %v2507 = vpop.f32.mrb[0].mxu0
      %v2508 = vadd.f32 0.0, %v2507
      %v2509 = vpop.f32.mrb[0].mxu0
      %2510 = vmatprep.mubr.f32.mxu0 0.0
      %2511 = vmatmul.mubr.f32.gmra.mrb[0].mxu0 %v1519
      %v2512 = vpop.f32.mrb[0].mxu0
      %v2513 = vadd.f32 0.0, %v2512
      %v2514 = vpop.f32.mrb[0].mxu0
      %2515 = vmatprep.mubr.f32.mxu0 0.0
      %2516 = vmatmul.mubr.f32.gmra.mrb[0].mxu0 %v1521
      %v2517 = vpop.f32.mrb[0].mxu0
      %v2518 = vadd.f32 0.0, %v2517
      %v2519 = vpop.f32.mrb[0].mxu0
      %2520 = vmatprep.mubr.f32.mxu0 0.0
      %2521 = vmatmul.mubr.f32.gmra.mrb[0].mxu0 %v1523
      %v2522 = vpop.f32.mrb[0].mxu0
      %v2523 = vadd.f32 0.0, %v2522
      %v2524 = vpop.f32.mrb[0].mxu0
      %2525 = vmatprep.mubr.f32.mxu0 0.0
      %2526 = vmatmul.mubr.f32.gmra.mrb[0].mxu0 %v1525
      %v2527 = vpop.f32.mrb[0].mxu0
      %v2528 = vadd.f32 0.0, %v2527
      %v2529 = vpop.f32.mrb[0].mxu0
      %2530 = vmatprep.mubr.f32.mxu0 0.0
      %2531 = vmatmul.mubr.f32.gmra.mrb[0].mxu0 %v1527
      %v2532 = vpop.f32.mrb[0].mxu0
      %v2533 = vadd.f32 0.0, %v2532
      %v2534 = vpop.f32.mrb[0].mxu0
      %2535 = vmatprep.mubr.f32.mxu0 0.0
      %2536 = vmatmul.mubr.f32.gmra.mrb[0].mxu0 %v1529
      %v2537 = vpop.f32.mrb[0].mxu0
      %v2538 = vadd.f32 0.0, %v2537
      %v2539 = vpop.f32.mrb[0].mxu0
      %2540 = vmatprep.mubr.f32.mxu0 0.0
      %2541 = vmatmul.mubr.f32.gmra.mrb[0].mxu0 %v1531
      %v2542 = vpop.f32.mrb[0].mxu0
      %v2543 = vadd.f32 0.0, %v2542
      %v2544 = vpop.f32.mrb[0].mxu0
      %2545 = vmatprep.mubr.f32.mxu0 0.0
      %2546 = vmatmul.mubr.f32.gmra.mrb[0].mxu0 %v1533
      %v2547 = vpop.f32.mrb[0].mxu0
      %v2548 = vadd.f32 0.0, %v2547
      %v2549 = vpop.f32.mrb[0].mxu0
      %2550 = vmatprep.mubr.f32.mxu0 0.0
      %2551 = vmatmul.mubr.f32.gmra.mrb[0].mxu0 %v1535
      %v2552 = vpop.f32.mrb[0].mxu0
      %v2553 = vadd.f32 0.0, %v2552
      %v2554 = vpop.f32.mrb[0].mxu0
      %2555 = vmatprep.mubr.f32.mxu0 0.0
      %2556 = vmatmul.mubr.f32.gmra.mrb[0].mxu0 %v1537
      %v2557 = vpop.f32.mrb[0].mxu0
      %v2558 = vadd.f32 0.0, %v2557
      %v2559 = vpop.f32.mrb[0].mxu0
      %2560 = vmatprep.mubr.f32.mxu0 0.0
      %2561 = vmatmul.mubr.f32.gmra.mrb[0].mxu0 %v1539
      %v2562 = vpop.f32.mrb[0].mxu0
      %v2563 = vadd.f32 0.0, %v2562
      %v2564 = vpop.f32.mrb[0].mxu0
      %2565 = vmatprep.mubr.f32.mxu0 0.0
      %2566 = vmatmul.mubr.f32.gmra.mrb[0].mxu0 %v1541
      %v2567 = vpop.f32.mrb[0].mxu0
      %v2568 = vadd.f32 0.0, %v2567
      %v2569 = vpop.f32.mrb[0].mxu0
      %2570 = vmatprep.mubr.f32.mxu0 0.0
      %2571 = vmatmul.mubr.f32.gmra.mrb[0].mxu0 %v1543
      %v2572 = vpop.f32.mrb[0].mxu0
      %v2573 = vadd.f32 0.0, %v2572
      %v2574 = vpop.f32.mrb[0].mxu0
      %2575 = vmatprep.mubr.f32.mxu0 0.0
      %2576 = vmatmul.mubr.f32.gmra.mrb[0].mxu0 %v1545
      %v2577 = vpop.f32.mrb[0].mxu0
      %v2578 = vadd.f32 0.0, %v2577
      %v2579 = vpop.f32.mrb[0].mxu0
      %2580 = vmatprep.mubr.f32.mxu0 0.0
      %2581 = vmatmul.mubr.f32.gmra.mrb[0].mxu0 %v1547
      %v2582 = vpop.f32.mrb[0].mxu0
      %v2583 = vadd.f32 0.0, %v2582
      %v2584 = vpop.f32.mrb[0].mxu0
      %2585 = vmatprep.mubr.f32.mxu0 0.0
      %2586 = vmatmul.mubr.f32.gmra.mrb[0].mxu0 %v1549
      %v2587 = vpop.f32.mrb[0].mxu0
      %v2588 = vadd.f32 0.0, %v2587
      %v2589 = vpop.f32.mrb[0].mxu0
      %2590 = vmatprep.mubr.f32.mxu0 0.0
      %2591 = vmatmul.mubr.f32.gmra.mrb[0].mxu0 %v1551
      %v2592 = vpop.f32.mrb[0].mxu0
      %v2593 = vadd.f32 0.0, %v2592
      %v2594 = vpop.f32.mrb[0].mxu0
      %2595 = vmatprep.mubr.f32.mxu0 0.0
      %2596 = vmatmul.mubr.f32.gmra.mrb[0].mxu0 %v1553
      %v2597 = vpop.f32.mrb[0].mxu0
      %v2598 = vadd.f32 0.0, %v2597
      %v2599 = vpop.f32.mrb[0].mxu0
      %2600 = vmatprep.mubr.f32.mxu0 0.0
      %2601 = vmatmul.mubr.f32.gmra.mrb[0].mxu0 %v1555
      %v2602 = vpop.f32.mrb[0].mxu0
      %v2603 = vadd.f32 0.0, %v2602
      %v2604 = vpop.f32.mrb[0].mxu0
      %2605 = vmatprep.mubr.f32.mxu0 0.0
      %2606 = vmatmul.mubr.f32.gmra.mrb[0].mxu0 %v1557
      %v2607 = vpop.f32.mrb[0].mxu0
      %v2608 = vadd.f32 0.0, %v2607
      %v2609 = vpop.f32.mrb[0].mxu0
      %2610 = vmatprep.mubr.f32.mxu0 0.0
      %2611 = vmatmul.mubr.f32.gmra.mrb[0].mxu0 %v1559
      %v2612 = vpop.f32.mrb[0].mxu0
      %v2613 = vadd.f32 0.0, %v2612
      %v2614 = vpop.f32.mrb[0].mxu0
      %2615 = vmatprep.mubr.f32.mxu0 0.0
      %2616 = vmatmul.mubr.f32.gmra.mrb[0].mxu0 %v1561
      %v2617 = vpop.f32.mrb[0].mxu0
      %v2618 = vadd.f32 0.0, %v2617
      %v2619 = vpop.f32.mrb[0].mxu0
      %2620 = vmatprep.mubr.f32.mxu0 0.0
      %2621 = vmatmul.mubr.f32.gmra.mrb[0].mxu0 %v1563
      %v2622 = vpop.f32.mrb[0].mxu0
      %v2623 = vadd.f32 0.0, %v2622
      %v2624 = vpop.f32.mrb[0].mxu0
      %2625 = vmatprep.mubr.f32.mxu0 0.0
      %2626 = vmatmul.mubr.f32.gmra.mrb[0].mxu0 %v1565
      %v2627 = vpop.f32.mrb[0].mxu0
      %v2628 = vadd.f32 0.0, %v2627
      %v2629 = vpop.f32.mrb[0].mxu0
      %2630 = vmatprep.mubr.f32.mxu0 0.0
      %2631 = vmatmul.mubr.f32.gmra.mrb[0].mxu0 %v1567
      %v2632 = vpop.f32.mrb[0].mxu0
      %v2633 = vadd.f32 0.0, %v2632
      %v2634 = vpop.f32.mrb[0].mxu0
      %2635 = vmatprep.mubr.f32.mxu0 0.0
      %2636 = vmatmul.mubr.f32.gmra.mrb[0].mxu0 %v1569
      %v2637 = vpop.f32.mrb[0].mxu0
      %v2638 = vadd.f32 0.0, %v2637
      %v2639 = vpop.f32.mrb[0].mxu0
      %2640 = vmatprep.mubr.f32.mxu0 0.0
      %2641 = vmatmul.mubr.f32.gmra.mrb[0].mxu0 %v1571
      %v2642 = vpop.f32.mrb[0].mxu0
      %v2643 = vadd.f32 0.0, %v2642
      %v2644 = vpop.f32.mrb[0].mxu0
      %2645 = vmatprep.mubr.f32.mxu0 0.0
      %2646 = vmatmul.mubr.f32.gmra.mrb[0].mxu0 %v1573
      %v2647 = vpop.f32.mrb[0].mxu0
      %v2648 = vadd.f32 0.0, %v2647
      %v2649 = vpop.f32.mrb[0].mxu0
      %2650 = vmatprep.mubr.f32.mxu0 0.0
      %2651 = vmatmul.mubr.f32.gmra.mrb[0].mxu0 %v1575
      %v2652 = vpop.f32.mrb[0].mxu0
      %v2653 = vadd.f32 0.0, %v2652
      %v2654 = vpop.f32.mrb[0].mxu0
      %2655 = vmatprep.mubr.f32.mxu0 0.0
      %2656 = vmatmul.mubr.f32.gmra.mrb[0].mxu0 %v2437
      %v2657 = vpop.f32.mrb[0].mxu0
      %v2658 = vadd.f32 0.0, %v2657
      %v2659 = vpop.f32.mrb[0].mxu0
      %2660 = vmatprep.mubr.f32.mxu0 0.0
      %2661 = vmatmul.mubr.f32.gmra.mrb[0].mxu0 %v2439
      %v2662 = vpop.f32.mrb[0].mxu0
      %v2663 = vadd.f32 0.0, %v2662
      %v2664 = vpop.f32.mrb[0].mxu0
      %2665 = vdwg.mxu0
      %v2666 = vsel %vm623, %v2508, 0.0
      %v2667 = vsel %vm623, %v2513, 0.0
      %v2668 = vadd.f32 %v2666, %v2667
      %v2669 = vsel %vm623, %v2518, 0.0
      %v2670 = vadd.f32 %v2668, %v2669
      %v2671 = vsel %vm623, %v2523, 0.0
      %v2672 = vadd.f32 %v2670, %v2671
      %v2673 = vsel %vm623, %v2528, 0.0
      %v2674 = vadd.f32 %v2672, %v2673
      %v2675 = vsel %vm623, %v2533, 0.0
      %v2676 = vadd.f32 %v2674, %v2675
      %v2677 = vsel %vm623, %v2538, 0.0
      %v2678 = vadd.f32 %v2676, %v2677
      %v2679 = vsel %vm623, %v2543, 0.0
      %v2680 = vadd.f32 %v2678, %v2679
      %v2681 = vsel %vm623, %v2548, 0.0
      %v2682 = vadd.f32 %v2680, %v2681
      %v2683 = vsel %vm623, %v2553, 0.0
      %v2684 = vadd.f32 %v2682, %v2683
      %v2685 = vsel %vm623, %v2558, 0.0
      %v2686 = vadd.f32 %v2684, %v2685
      %v2687 = vsel %vm623, %v2563, 0.0
      %v2688 = vadd.f32 %v2686, %v2687
      %v2689 = vsel %vm623, %v2568, 0.0
      %v2690 = vadd.f32 %v2688, %v2689
      %v2691 = vsel %vm623, %v2573, 0.0
      %v2692 = vadd.f32 %v2690, %v2691
      %v2693 = vsel %vm623, %v2578, 0.0
      %v2694 = vadd.f32 %v2692, %v2693
      %v2695 = vsel %vm623, %v2583, 0.0
      %v2696 = vadd.f32 %v2694, %v2695
      %v2697 = vsel %vm623, %v2588, 0.0
      %v2698 = vadd.f32 %v2696, %v2697
      %v2699 = vsel %vm623, %v2593, 0.0
      %v2700 = vadd.f32 %v2698, %v2699
      %v2701 = vsel %vm623, %v2598, 0.0
      %v2702 = vadd.f32 %v2700, %v2701
      %v2703 = vsel %vm623, %v2603, 0.0
      %v2704 = vadd.f32 %v2702, %v2703
      %v2705 = vsel %vm623, %v2608, 0.0
      %v2706 = vadd.f32 %v2704, %v2705
      %v2707 = vsel %vm623, %v2613, 0.0
      %v2708 = vadd.f32 %v2706, %v2707
      %v2709 = vsel %vm623, %v2618, 0.0
      %v2710 = vadd.f32 %v2708, %v2709
      %v2711 = vsel %vm623, %v2623, 0.0
      %v2712 = vadd.f32 %v2710, %v2711
      %v2713 = vsel %vm623, %v2628, 0.0
      %v2714 = vadd.f32 %v2712, %v2713
      %v2715 = vsel %vm623, %v2633, 0.0
      %v2716 = vadd.f32 %v2714, %v2715
      %v2717 = vsel %vm623, %v2638, 0.0
      %v2718 = vadd.f32 %v2716, %v2717
      %v2719 = vsel %vm623, %v2643, 0.0
      %v2720 = vadd.f32 %v2718, %v2719
      %v2721 = vsel %vm623, %v2648, 0.0
      %v2722 = vadd.f32 %v2720, %v2721
      %v2723 = vsel %vm623, %v2653, 0.0
      %v2724 = vadd.f32 %v2722, %v2723
      %v2725 = vsel %vm623, %v2658, 0.0
      %v2726 = vadd.f32 %v2724, %v2725
      %v2727 = vsel %vm623, %v2663, 0.0
      %v2728 = vadd.f32 %v2726, %v2727
      %v2729 = vrot.slane %v2728, 4
      %v2730 = vadd.f32 %v2728, %v2729
      %v2731 = vrot.slane %v2730, 2
      %v2732 = vadd.f32 %v2730, %v2731
      %v2733 = vrot.slane %v2732, 1
      %v2734 = vadd.f32 %v2732, %v2733
      %v2735 = vadd.f32 %v2311, %v2734
      %v2736 = vmul.f32 %v2508, %v2508
      %v2737 = vmul.f32 %v2513, %v2513
      %v2738 = vmul.f32 %v2518, %v2518
      %v2739 = vmul.f32 %v2523, %v2523
      %v2740 = vmul.f32 %v2528, %v2528
      %v2741 = vmul.f32 %v2533, %v2533
      %v2742 = vmul.f32 %v2538, %v2538
      %v2743 = vmul.f32 %v2543, %v2543
      %v2744 = vmul.f32 %v2548, %v2548
      %v2745 = vmul.f32 %v2553, %v2553
      %v2746 = vmul.f32 %v2558, %v2558
      %v2747 = vmul.f32 %v2563, %v2563
      %v2748 = vmul.f32 %v2568, %v2568
      %v2749 = vmul.f32 %v2573, %v2573
      %v2750 = vmul.f32 %v2578, %v2578
      %v2751 = vmul.f32 %v2583, %v2583
      %v2752 = vmul.f32 %v2588, %v2588
      %v2753 = vmul.f32 %v2593, %v2593
      %v2754 = vmul.f32 %v2598, %v2598
      %v2755 = vmul.f32 %v2603, %v2603
      %v2756 = vmul.f32 %v2608, %v2608
      %v2757 = vmul.f32 %v2613, %v2613
      %v2758 = vmul.f32 %v2618, %v2618
      %v2759 = vmul.f32 %v2623, %v2623
      %v2760 = vmul.f32 %v2628, %v2628
      %v2761 = vmul.f32 %v2633, %v2633
      %v2762 = vmul.f32 %v2638, %v2638
      %v2763 = vmul.f32 %v2643, %v2643
      %v2764 = vmul.f32 %v2648, %v2648
      %v2765 = vmul.f32 %v2653, %v2653
      %v2766 = vmul.f32 %v2658, %v2658
      %v2767 = vmul.f32 %v2663, %v2663
      %v2768 = vsel %vm623, %v2736, 0.0
      %v2769 = vsel %vm623, %v2737, 0.0
      %v2770 = vadd.f32 %v2768, %v2769
      %v2771 = vsel %vm623, %v2738, 0.0
      %v2772 = vadd.f32 %v2770, %v2771
      %v2773 = vsel %vm623, %v2739, 0.0
      %v2774 = vadd.f32 %v2772, %v2773
      %v2775 = vsel %vm623, %v2740, 0.0
      %v2776 = vadd.f32 %v2774, %v2775
      %v2777 = vsel %vm623, %v2741, 0.0
      %v2778 = vadd.f32 %v2776, %v2777
      %v2779 = vsel %vm623, %v2742, 0.0
      %v2780 = vadd.f32 %v2778, %v2779
      %v2781 = vsel %vm623, %v2743, 0.0
      %v2782 = vadd.f32 %v2780, %v2781
      %v2783 = vsel %vm623, %v2744, 0.0
      %v2784 = vadd.f32 %v2782, %v2783
      %v2785 = vsel %vm623, %v2745, 0.0
      %v2786 = vadd.f32 %v2784, %v2785
      %v2787 = vsel %vm623, %v2746, 0.0
      %v2788 = vadd.f32 %v2786, %v2787
      %v2789 = vsel %vm623, %v2747, 0.0
      %v2790 = vadd.f32 %v2788, %v2789
      %v2791 = vsel %vm623, %v2748, 0.0
      %v2792 = vadd.f32 %v2790, %v2791
      %v2793 = vsel %vm623, %v2749, 0.0
      %v2794 = vadd.f32 %v2792, %v2793
      %v2795 = vsel %vm623, %v2750, 0.0
      %v2796 = vadd.f32 %v2794, %v2795
      %v2797 = vsel %vm623, %v2751, 0.0
      %v2798 = vadd.f32 %v2796, %v2797
      %v2799 = vsel %vm623, %v2752, 0.0
      %v2800 = vadd.f32 %v2798, %v2799
      %v2801 = vsel %vm623, %v2753, 0.0
      %v2802 = vadd.f32 %v2800, %v2801
      %v2803 = vsel %vm623, %v2754, 0.0
      %v2804 = vadd.f32 %v2802, %v2803
      %v2805 = vsel %vm623, %v2755, 0.0
      %v2806 = vadd.f32 %v2804, %v2805
      %v2807 = vsel %vm623, %v2756, 0.0
      %v2808 = vadd.f32 %v2806, %v2807
      %v2809 = vsel %vm623, %v2757, 0.0
      %v2810 = vadd.f32 %v2808, %v2809
      %v2811 = vsel %vm623, %v2758, 0.0
      %v2812 = vadd.f32 %v2810, %v2811
      %v2813 = vsel %vm623, %v2759, 0.0
      %v2814 = vadd.f32 %v2812, %v2813
      %v2815 = vsel %vm623, %v2760, 0.0
      %v2816 = vadd.f32 %v2814, %v2815
      %v2817 = vsel %vm623, %v2761, 0.0
      %v2818 = vadd.f32 %v2816, %v2817
      %v2819 = vsel %vm623, %v2762, 0.0
      %v2820 = vadd.f32 %v2818, %v2819
      %v2821 = vsel %vm623, %v2763, 0.0
      %v2822 = vadd.f32 %v2820, %v2821
      %v2823 = vsel %vm623, %v2764, 0.0
      %v2824 = vadd.f32 %v2822, %v2823
      %v2825 = vsel %vm623, %v2765, 0.0
      %v2826 = vadd.f32 %v2824, %v2825
      %v2827 = vsel %vm623, %v2766, 0.0
      %v2828 = vadd.f32 %v2826, %v2827
      %v2829 = vsel %vm623, %v2767, 0.0
      %v2830 = vadd.f32 %v2828, %v2829
      %v2831 = vrot.slane %v2830, 4
      %v2832 = vadd.f32 %v2830, %v2831
      %v2833 = vrot.slane %v2832, 2
      %v2834 = vadd.f32 %v2832, %v2833
      %v2835 = vrot.slane %v2834, 1
      %v2836 = vadd.f32 %v2834, %v2835
      %v2837 = vadd.f32 %v2413, %v2836
      %v2838 = vmul.f32 %v2735, 0.0009765625
      %v2839 = vmul.f32 %v2837, 0.0009765625
      %v2840 = vmul.f32 %v2838, %v2838
      %v2841 = vsub.f32 %v2839, %v2840
      %v2842 = vadd.f32 %v2841, 1e-05
      %v2843 = vrsqrt.pop %v2842
      %v2844 = vsub.f32 %v890, %v2838
      %v2845 = vsub.f32 %v895, %v2838
      %v2846 = vsub.f32 %v900, %v2838
      %v2847 = vsub.f32 %v905, %v2838
      %v2848 = vsub.f32 %v910, %v2838
      %v2849 = vsub.f32 %v915, %v2838
      %v2850 = vsub.f32 %v920, %v2838
      %v2851 = vsub.f32 %v925, %v2838
      %v2852 = vsub.f32 %v930, %v2838
      %v2853 = vsub.f32 %v935, %v2838
      %v2854 = vsub.f32 %v940, %v2838
      %v2855 = vsub.f32 %v945, %v2838
      %v2856 = vsub.f32 %v950, %v2838
      %v2857 = vsub.f32 %v955, %v2838
      %v2858 = vsub.f32 %v960, %v2838
      %v2859 = vsub.f32 %v965, %v2838
      %v2860 = vsub.f32 %v970, %v2838
      %v2861 = vsub.f32 %v975, %v2838
      %v2862 = vsub.f32 %v980, %v2838
      %v2863 = vsub.f32 %v985, %v2838
      %v2864 = vsub.f32 %v990, %v2838
      %v2865 = vsub.f32 %v995, %v2838
      %v2866 = vsub.f32 %v1000, %v2838
      %v2867 = vsub.f32 %v1005, %v2838
      %v2868 = vsub.f32 %v1010, %v2838
      %v2869 = vsub.f32 %v1015, %v2838
      %v2870 = vsub.f32 %v1020, %v2838
      %v2871 = vsub.f32 %v1025, %v2838
      %v2872 = vsub.f32 %v1030, %v2838
      %v2873 = vsub.f32 %v1035, %v2838
      %v2874 = vsub.f32 %v1040, %v2838
      %v2875 = vsub.f32 %v1045, %v2838
      %v2876 = vmul.f32 %v2844, %v2843
      %v2877 = vmul.f32 %v2845, %v2843
      %v2878 = vmul.f32 %v2846, %v2843
      %v2879 = vmul.f32 %v2847, %v2843
      %v2880 = vmul.f32 %v2848, %v2843
      %v2881 = vmul.f32 %v2849, %v2843
      %v2882 = vmul.f32 %v2850, %v2843
      %v2883 = vmul.f32 %v2851, %v2843
      %v2884 = vmul.f32 %v2852, %v2843
      %v2885 = vmul.f32 %v2853, %v2843
      %v2886 = vmul.f32 %v2854, %v2843
      %v2887 = vmul.f32 %v2855, %v2843
      %v2888 = vmul.f32 %v2856, %v2843
      %v2889 = vmul.f32 %v2857, %v2843
      %v2890 = vmul.f32 %v2858, %v2843
      %v2891 = vmul.f32 %v2859, %v2843
      %v2892 = vmul.f32 %v2860, %v2843
      %v2893 = vmul.f32 %v2861, %v2843
      %v2894 = vmul.f32 %v2862, %v2843
      %v2895 = vmul.f32 %v2863, %v2843
      %v2896 = vmul.f32 %v2864, %v2843
      %v2897 = vmul.f32 %v2865, %v2843
      %v2898 = vmul.f32 %v2866, %v2843
      %v2899 = vmul.f32 %v2867, %v2843
      %v2900 = vmul.f32 %v2868, %v2843
      %v2901 = vmul.f32 %v2869, %v2843
      %v2902 = vmul.f32 %v2870, %v2843
      %v2903 = vmul.f32 %v2871, %v2843
      %v2904 = vmul.f32 %v2872, %v2843
      %v2905 = vmul.f32 %v2873, %v2843
      %v2906 = vmul.f32 %v2874, %v2843
      %v2907 = vmul.f32 %v2875, %v2843
      %v2908 = vmax.f32 %v2876, 0.0
      %v2909 = vmax.f32 %v2877, 0.0
      %v2910 = vmax.f32 %v2878, 0.0
      %v2911 = vmax.f32 %v2879, 0.0
      %v2912 = vmax.f32 %v2880, 0.0
      %v2913 = vmax.f32 %v2881, 0.0
      %v2914 = vmax.f32 %v2882, 0.0
      %v2915 = vmax.f32 %v2883, 0.0
      %v2916 = vmax.f32 %v2884, 0.0
      %v2917 = vmax.f32 %v2885, 0.0
      %v2918 = vmax.f32 %v2886, 0.0
      %v2919 = vmax.f32 %v2887, 0.0
      %v2920 = vmax.f32 %v2888, 0.0
      %v2921 = vmax.f32 %v2889, 0.0
      %v2922 = vmax.f32 %v2890, 0.0
      %v2923 = vmax.f32 %v2891, 0.0
      %v2924 = vmax.f32 %v2892, 0.0
      %v2925 = vmax.f32 %v2893, 0.0
      %v2926 = vmax.f32 %v2894, 0.0
      %v2927 = vmax.f32 %v2895, 0.0
      %v2928 = vmax.f32 %v2896, 0.0
      %v2929 = vmax.f32 %v2897, 0.0
      %v2930 = vmax.f32 %v2898, 0.0
      %v2931 = vmax.f32 %v2899, 0.0
      %v2932 = vmax.f32 %v2900, 0.0
      %v2933 = vmax.f32 %v2901, 0.0
      %v2934 = vmax.f32 %v2902, 0.0
      %v2935 = vmax.f32 %v2903, 0.0
      %v2936 = vmax.f32 %v2904, 0.0
      %v2937 = vmax.f32 %v2905, 0.0
      %v2938 = vmax.f32 %v2906, 0.0
      %v2939 = vmax.f32 %v2907, 0.0
      %2940 = vst.msk [vmem:[%s143] sm:$0xff] %vm623, %v2908
      %2941 = vst.msk [vmem:[%s143 + $0x8] sm:$0xff] %vm623, %v2909
      %2942 = vst.msk [vmem:[%s143 + $0x10] sm:$0xff] %vm623, %v2910
      %2943 = vst.msk [vmem:[%s143 + $0x18] sm:$0xff] %vm623, %v2911
      %2944 = vst.msk [vmem:[%s143 + $0x20] sm:$0xff] %vm623, %v2912
      %2945 = vst.msk [vmem:[%s143 + $0x28] sm:$0xff] %vm623, %v2913
      %2946 = vst.msk [vmem:[%s143 + $0x30] sm:$0xff] %vm623, %v2914
      %2947 = vst.msk [vmem:[%s143 + $0x38] sm:$0xff] %vm623, %v2915
      %2948 = vst.msk [vmem:[%s143 + $0x40] sm:$0xff] %vm623, %v2916
      %2949 = vst.msk [vmem:[%s143 + $0x48] sm:$0xff] %vm623, %v2917
      %2950 = vst.msk [vmem:[%s143 + $0x50] sm:$0xff] %vm623, %v2918
      %2951 = vst.msk [vmem:[%s143 + $0x58] sm:$0xff] %vm623, %v2919
      %2952 = vst.msk [vmem:[%s143 + $0x60] sm:$0xff] %vm623, %v2920
      %2953 = vst.msk [vmem:[%s143 + $0x68] sm:$0xff] %vm623, %v2921
      %2954 = vst.msk [vmem:[%s143 + $0x70] sm:$0xff] %vm623, %v2922
      %2955 = vst.msk [vmem:[%s143 + $0x78] sm:$0xff] %vm623, %v2923
      %2956 = vst.msk [vmem:[%s143 + $0x80] sm:$0xff] %vm623, %v2924
      %2957 = vst.msk [vmem:[%s143 + $0x88] sm:$0xff] %vm623, %v2925
      %2958 = vst.msk [vmem:[%s143 + $0x90] sm:$0xff] %vm623, %v2926
      %2959 = vst.msk [vmem:[%s143 + $0x98] sm:$0xff] %vm623, %v2927
      %2960 = vst.msk [vmem:[%s143 + $0xa0] sm:$0xff] %vm623, %v2928
      %2961 = vst.msk [vmem:[%s143 + $0xa8] sm:$0xff] %vm623, %v2929
      %2962 = vst.msk [vmem:[%s143 + $0xb0] sm:$0xff] %vm623, %v2930
      %2963 = vst.msk [vmem:[%s143 + $0xb8] sm:$0xff] %vm623, %v2931
      %2964 = vst.msk [vmem:[%s143 + $0xc0] sm:$0xff] %vm623, %v2932
      %2965 = vst.msk [vmem:[%s143 + $0xc8] sm:$0xff] %vm623, %v2933
      %2966 = vst.msk [vmem:[%s143 + $0xd0] sm:$0xff] %vm623, %v2934
      %2967 = vst.msk [vmem:[%s143 + $0xd8] sm:$0xff] %vm623, %v2935
      %2968 = vst.msk [vmem:[%s143 + $0xe0] sm:$0xff] %vm623, %v2936
      %2969 = vst.msk [vmem:[%s143 + $0xe8] sm:$0xff] %vm623, %v2937
      %2970 = vst.msk [vmem:[%s143 + $0xf0] sm:$0xff] %vm623, %v2938
      %2971 = vst.msk [vmem:[%s143 + $0xf8] sm:$0xff] %vm623, %v2939
      %v2972 = vsub.f32 %v1644, %v2838
      %v2973 = vsub.f32 %v1649, %v2838
      %v2974 = vsub.f32 %v1654, %v2838
      %v2975 = vsub.f32 %v1659, %v2838
      %v2976 = vsub.f32 %v1664, %v2838
      %v2977 = vsub.f32 %v1669, %v2838
      %v2978 = vsub.f32 %v1674, %v2838
      %v2979 = vsub.f32 %v1679, %v2838
      %v2980 = vsub.f32 %v1684, %v2838
      %v2981 = vsub.f32 %v1689, %v2838
      %v2982 = vsub.f32 %v1694, %v2838
      %v2983 = vsub.f32 %v1699, %v2838
      %v2984 = vsub.f32 %v1704, %v2838
      %v2985 = vsub.f32 %v1709, %v2838
      %v2986 = vsub.f32 %v1714, %v2838
      %v2987 = vsub.f32 %v1719, %v2838
      %v2988 = vsub.f32 %v1724, %v2838
      %v2989 = vsub.f32 %v1729, %v2838
      %v2990 = vsub.f32 %v1734, %v2838
      %v2991 = vsub.f32 %v1739, %v2838
      %v2992 = vsub.f32 %v1744, %v2838
      %v2993 = vsub.f32 %v1749, %v2838
      %v2994 = vsub.f32 %v1754, %v2838
      %v2995 = vsub.f32 %v1759, %v2838
      %v2996 = vsub.f32 %v1764, %v2838
      %v2997 = vsub.f32 %v1769, %v2838
      %v2998 = vsub.f32 %v1774, %v2838
      %v2999 = vsub.f32 %v1779, %v2838
      %v3000 = vsub.f32 %v1784, %v2838
      %v3001 = vsub.f32 %v1789, %v2838
      %v3002 = vsub.f32 %v1794, %v2838
      %v3003 = vsub.f32 %v1799, %v2838
      %v3004 = vmul.f32 %v2972, %v2843
      %v3005 = vmul.f32 %v2973, %v2843
      %v3006 = vmul.f32 %v2974, %v2843
      %v3007 = vmul.f32 %v2975, %v2843
      %v3008 = vmul.f32 %v2976, %v2843
      %v3009 = vmul.f32 %v2977, %v2843
      %v3010 = vmul.f32 %v2978, %v2843
      %v3011 = vmul.f32 %v2979, %v2843
      %v3012 = vmul.f32 %v2980, %v2843
      %v3013 = vmul.f32 %v2981, %v2843
      %v3014 = vmul.f32 %v2982, %v2843
      %v3015 = vmul.f32 %v2983, %v2843
      %v3016 = vmul.f32 %v2984, %v2843
      %v3017 = vmul.f32 %v2985, %v2843
      %v3018 = vmul.f32 %v2986, %v2843
      %v3019 = vmul.f32 %v2987, %v2843
      %v3020 = vmul.f32 %v2988, %v2843
      %v3021 = vmul.f32 %v2989, %v2843
      %v3022 = vmul.f32 %v2990, %v2843
      %v3023 = vmul.f32 %v2991, %v2843
      %v3024 = vmul.f32 %v2992, %v2843
      %v3025 = vmul.f32 %v2993, %v2843
      %v3026 = vmul.f32 %v2994, %v2843
      %v3027 = vmul.f32 %v2995, %v2843
      %v3028 = vmul.f32 %v2996, %v2843
      %v3029 = vmul.f32 %v2997, %v2843
      %v3030 = vmul.f32 %v2998, %v2843
      %v3031 = vmul.f32 %v2999, %v2843
      %v3032 = vmul.f32 %v3000, %v2843
      %v3033 = vmul.f32 %v3001, %v2843
      %v3034 = vmul.f32 %v3002, %v2843
      %v3035 = vmul.f32 %v3003, %v2843
      %v3036 = vmax.f32 %v3004, 0.0
      %v3037 = vmax.f32 %v3005, 0.0
      %v3038 = vmax.f32 %v3006, 0.0
      %v3039 = vmax.f32 %v3007, 0.0
      %v3040 = vmax.f32 %v3008, 0.0
      %v3041 = vmax.f32 %v3009, 0.0
      %v3042 = vmax.f32 %v3010, 0.0
      %v3043 = vmax.f32 %v3011, 0.0
      %v3044 = vmax.f32 %v3012, 0.0
      %v3045 = vmax.f32 %v3013, 0.0
      %v3046 = vmax.f32 %v3014, 0.0
      %v3047 = vmax.f32 %v3015, 0.0
      %v3048 = vmax.f32 %v3016, 0.0
      %v3049 = vmax.f32 %v3017, 0.0
      %v3050 = vmax.f32 %v3018, 0.0
      %v3051 = vmax.f32 %v3019, 0.0
      %v3052 = vmax.f32 %v3020, 0.0
      %v3053 = vmax.f32 %v3021, 0.0
      %v3054 = vmax.f32 %v3022, 0.0
      %v3055 = vmax.f32 %v3023, 0.0
      %v3056 = vmax.f32 %v3024, 0.0
      %v3057 = vmax.f32 %v3025, 0.0
      %v3058 = vmax.f32 %v3026, 0.0
      %v3059 = vmax.f32 %v3027, 0.0
      %v3060 = vmax.f32 %v3028, 0.0
      %v3061 = vmax.f32 %v3029, 0.0
      %v3062 = vmax.f32 %v3030, 0.0
      %v3063 = vmax.f32 %v3031, 0.0
      %v3064 = vmax.f32 %v3032, 0.0
      %v3065 = vmax.f32 %v3033, 0.0
      %v3066 = vmax.f32 %v3034, 0.0
      %v3067 = vmax.f32 %v3035, 0.0
      %s3068 = scalar_lea.vmem %s143, 256
      %3069 = vst.msk [vmem:[%s3068] sm:$0xff] %vm623, %v3036
      %3070 = vst.msk [vmem:[%s3068 + $0x8] sm:$0xff] %vm623, %v3037
      %3071 = vst.msk [vmem:[%s3068 + $0x10] sm:$0xff] %vm623, %v3038
      %3072 = vst.msk [vmem:[%s3068 + $0x18] sm:$0xff] %vm623, %v3039
      %3073 = vst.msk [vmem:[%s3068 + $0x20] sm:$0xff] %vm623, %v3040
      %3074 = vst.msk [vmem:[%s3068 + $0x28] sm:$0xff] %vm623, %v3041
      %3075 = vst.msk [vmem:[%s3068 + $0x30] sm:$0xff] %vm623, %v3042
      %3076 = vst.msk [vmem:[%s3068 + $0x38] sm:$0xff] %vm623, %v3043
      %3077 = vst.msk [vmem:[%s3068 + $0x40] sm:$0xff] %vm623, %v3044
      %3078 = vst.msk [vmem:[%s3068 + $0x48] sm:$0xff] %vm623, %v3045
      %3079 = vst.msk [vmem:[%s3068 + $0x50] sm:$0xff] %vm623, %v3046
      %3080 = vst.msk [vmem:[%s3068 + $0x58] sm:$0xff] %vm623, %v3047
      %3081 = vst.msk [vmem:[%s3068 + $0x60] sm:$0xff] %vm623, %v3048
      %3082 = vst.msk [vmem:[%s3068 + $0x68] sm:$0xff] %vm623, %v3049
      %3083 = vst.msk [vmem:[%s3068 + $0x70] sm:$0xff] %vm623, %v3050
      %3084 = vst.msk [vmem:[%s3068 + $0x78] sm:$0xff] %vm623, %v3051
      %3085 = vst.msk [vmem:[%s3068 + $0x80] sm:$0xff] %vm623, %v3052
      %3086 = vst.msk [vmem:[%s3068 + $0x88] sm:$0xff] %vm623, %v3053
      %3087 = vst.msk [vmem:[%s3068 + $0x90] sm:$0xff] %vm623, %v3054
      %3088 = vst.msk [vmem:[%s3068 + $0x98] sm:$0xff] %vm623, %v3055
      %3089 = vst.msk [vmem:[%s3068 + $0xa0] sm:$0xff] %vm623, %v3056
      %3090 = vst.msk [vmem:[%s3068 + $0xa8] sm:$0xff] %vm623, %v3057
      %3091 = vst.msk [vmem:[%s3068 + $0xb0] sm:$0xff] %vm623, %v3058
      %3092 = vst.msk [vmem:[%s3068 + $0xb8] sm:$0xff] %vm623, %v3059
      %3093 = vst.msk [vmem:[%s3068 + $0xc0] sm:$0xff] %vm623, %v3060
      %3094 = vst.msk [vmem:[%s3068 + $0xc8] sm:$0xff] %vm623, %v3061
      %3095 = vst.msk [vmem:[%s3068 + $0xd0] sm:$0xff] %vm623, %v3062
      %3096 = vst.msk [vmem:[%s3068 + $0xd8] sm:$0xff] %vm623, %v3063
      %3097 = vst.msk [vmem:[%s3068 + $0xe0] sm:$0xff] %vm623, %v3064
      %3098 = vst.msk [vmem:[%s3068 + $0xe8] sm:$0xff] %vm623, %v3065
      %3099 = vst.msk [vmem:[%s3068 + $0xf0] sm:$0xff] %vm623, %v3066
      %3100 = vst.msk [vmem:[%s3068 + $0xf8] sm:$0xff] %vm623, %v3067
      %v3101 = vsub.f32 %v2084, %v2838
      %v3102 = vsub.f32 %v2089, %v2838
      %v3103 = vsub.f32 %v2094, %v2838
      %v3104 = vsub.f32 %v2099, %v2838
      %v3105 = vsub.f32 %v2104, %v2838
      %v3106 = vsub.f32 %v2109, %v2838
      %v3107 = vsub.f32 %v2114, %v2838
      %v3108 = vsub.f32 %v2119, %v2838
      %v3109 = vsub.f32 %v2124, %v2838
      %v3110 = vsub.f32 %v2129, %v2838
      %v3111 = vsub.f32 %v2134, %v2838
      %v3112 = vsub.f32 %v2139, %v2838
      %v3113 = vsub.f32 %v2144, %v2838
      %v3114 = vsub.f32 %v2149, %v2838
      %v3115 = vsub.f32 %v2154, %v2838
      %v3116 = vsub.f32 %v2159, %v2838
      %v3117 = vsub.f32 %v2164, %v2838
      %v3118 = vsub.f32 %v2169, %v2838
      %v3119 = vsub.f32 %v2174, %v2838
      %v3120 = vsub.f32 %v2179, %v2838
      %v3121 = vsub.f32 %v2184, %v2838
      %v3122 = vsub.f32 %v2189, %v2838
      %v3123 = vsub.f32 %v2194, %v2838
      %v3124 = vsub.f32 %v2199, %v2838
      %v3125 = vsub.f32 %v2204, %v2838
      %v3126 = vsub.f32 %v2209, %v2838
      %v3127 = vsub.f32 %v2214, %v2838
      %v3128 = vsub.f32 %v2219, %v2838
      %v3129 = vsub.f32 %v2224, %v2838
      %v3130 = vsub.f32 %v2229, %v2838
      %v3131 = vsub.f32 %v2234, %v2838
      %v3132 = vsub.f32 %v2239, %v2838
      %v3133 = vmul.f32 %v3101, %v2843
      %v3134 = vmul.f32 %v3102, %v2843
      %v3135 = vmul.f32 %v3103, %v2843
      %v3136 = vmul.f32 %v3104, %v2843
      %v3137 = vmul.f32 %v3105, %v2843
      %v3138 = vmul.f32 %v3106, %v2843
      %v3139 = vmul.f32 %v3107, %v2843
      %v3140 = vmul.f32 %v3108, %v2843
      %v3141 = vmul.f32 %v3109, %v2843
      %v3142 = vmul.f32 %v3110, %v2843
      %v3143 = vmul.f32 %v3111, %v2843
      %v3144 = vmul.f32 %v3112, %v2843
      %v3145 = vmul.f32 %v3113, %v2843
      %v3146 = vmul.f32 %v3114, %v2843
      %v3147 = vmul.f32 %v3115, %v2843
      %v3148 = vmul.f32 %v3116, %v2843
      %v3149 = vmul.f32 %v3117, %v2843
      %v3150 = vmul.f32 %v3118, %v2843
      %v3151 = vmul.f32 %v3119, %v2843
      %v3152 = vmul.f32 %v3120, %v2843
      %v3153 = vmul.f32 %v3121, %v2843
      %v3154 = vmul.f32 %v3122, %v2843
      %v3155 = vmul.f32 %v3123, %v2843
      %v3156 = vmul.f32 %v3124, %v2843
      %v3157 = vmul.f32 %v3125, %v2843
      %v3158 = vmul.f32 %v3126, %v2843
      %v3159 = vmul.f32 %v3127, %v2843
      %v3160 = vmul.f32 %v3128, %v2843
      %v3161 = vmul.f32 %v3129, %v2843
      %v3162 = vmul.f32 %v3130, %v2843
      %v3163 = vmul.f32 %v3131, %v2843
      %v3164 = vmul.f32 %v3132, %v2843
      %v3165 = vmax.f32 %v3133, 0.0
      %v3166 = vmax.f32 %v3134, 0.0
      %v3167 = vmax.f32 %v3135, 0.0
      %v3168 = vmax.f32 %v3136, 0.0
      %v3169 = vmax.f32 %v3137, 0.0
      %v3170 = vmax.f32 %v3138, 0.0
      %v3171 = vmax.f32 %v3139, 0.0
      %v3172 = vmax.f32 %v3140, 0.0
      %v3173 = vmax.f32 %v3141, 0.0
      %v3174 = vmax.f32 %v3142, 0.0
      %v3175 = vmax.f32 %v3143, 0.0
      %v3176 = vmax.f32 %v3144, 0.0
      %v3177 = vmax.f32 %v3145, 0.0
      %v3178 = vmax.f32 %v3146, 0.0
      %v3179 = vmax.f32 %v3147, 0.0
      %v3180 = vmax.f32 %v3148, 0.0
      %v3181 = vmax.f32 %v3149, 0.0
      %v3182 = vmax.f32 %v3150, 0.0
      %v3183 = vmax.f32 %v3151, 0.0
      %v3184 = vmax.f32 %v3152, 0.0
      %v3185 = vmax.f32 %v3153, 0.0
      %v3186 = vmax.f32 %v3154, 0.0
      %v3187 = vmax.f32 %v3155, 0.0
      %v3188 = vmax.f32 %v3156, 0.0
      %v3189 = vmax.f32 %v3157, 0.0
      %v3190 = vmax.f32 %v3158, 0.0
      %v3191 = vmax.f32 %v3159, 0.0
      %v3192 = vmax.f32 %v3160, 0.0
      %v3193 = vmax.f32 %v3161, 0.0
      %v3194 = vmax.f32 %v3162, 0.0
      %v3195 = vmax.f32 %v3163, 0.0
      %v3196 = vmax.f32 %v3164, 0.0
      %s3197 = scalar_lea.vmem %s143, 512
      %3198 = vst.msk [vmem:[%s3197] sm:$0xff] %vm623, %v3165
      %3199 = vst.msk [vmem:[%s3197 + $0x8] sm:$0xff] %vm623, %v3166
      %3200 = vst.msk [vmem:[%s3197 + $0x10] sm:$0xff] %vm623, %v3167
      %3201 = vst.msk [vmem:[%s3197 + $0x18] sm:$0xff] %vm623, %v3168
      %3202 = vst.msk [vmem:[%s3197 + $0x20] sm:$0xff] %vm623, %v3169
      %3203 = vst.msk [vmem:[%s3197 + $0x28] sm:$0xff] %vm623, %v3170
      %3204 = vst.msk [vmem:[%s3197 + $0x30] sm:$0xff] %vm623, %v3171
      %3205 = vst.msk [vmem:[%s3197 + $0x38] sm:$0xff] %vm623, %v3172
      %3206 = vst.msk [vmem:[%s3197 + $0x40] sm:$0xff] %vm623, %v3173
      %3207 = vst.msk [vmem:[%s3197 + $0x48] sm:$0xff] %vm623, %v3174
      %3208 = vst.msk [vmem:[%s3197 + $0x50] sm:$0xff] %vm623, %v3175
      %3209 = vst.msk [vmem:[%s3197 + $0x58] sm:$0xff] %vm623, %v3176
      %3210 = vst.msk [vmem:[%s3197 + $0x60] sm:$0xff] %vm623, %v3177
      %3211 = vst.msk [vmem:[%s3197 + $0x68] sm:$0xff] %vm623, %v3178
      %3212 = vst.msk [vmem:[%s3197 + $0x70] sm:$0xff] %vm623, %v3179
      %3213 = vst.msk [vmem:[%s3197 + $0x78] sm:$0xff] %vm623, %v3180
      %3214 = vst.msk [vmem:[%s3197 + $0x80] sm:$0xff] %vm623, %v3181
      %3215 = vst.msk [vmem:[%s3197 + $0x88] sm:$0xff] %vm623, %v3182
      %3216 = vst.msk [vmem:[%s3197 + $0x90] sm:$0xff] %vm623, %v3183
      %3217 = vst.msk [vmem:[%s3197 + $0x98] sm:$0xff] %vm623, %v3184
      %3218 = vst.msk [vmem:[%s3197 + $0xa0] sm:$0xff] %vm623, %v3185
      %3219 = vst.msk [vmem:[%s3197 + $0xa8] sm:$0xff] %vm623, %v3186
      %3220 = vst.msk [vmem:[%s3197 + $0xb0] sm:$0xff] %vm623, %v3187
      %3221 = vst.msk [vmem:[%s3197 + $0xb8] sm:$0xff] %vm623, %v3188
      %3222 = vst.msk [vmem:[%s3197 + $0xc0] sm:$0xff] %vm623, %v3189
      %3223 = vst.msk [vmem:[%s3197 + $0xc8] sm:$0xff] %vm623, %v3190
      %3224 = vst.msk [vmem:[%s3197 + $0xd0] sm:$0xff] %vm623, %v3191
      %3225 = vst.msk [vmem:[%s3197 + $0xd8] sm:$0xff] %vm623, %v3192
      %3226 = vst.msk [vmem:[%s3197 + $0xe0] sm:$0xff] %vm623, %v3193
      %3227 = vst.msk [vmem:[%s3197 + $0xe8] sm:$0xff] %vm623, %v3194
      %3228 = vst.msk [vmem:[%s3197 + $0xf0] sm:$0xff] %vm623, %v3195
      %3229 = vst.msk [vmem:[%s3197 + $0xf8] sm:$0xff] %vm623, %v3196
      %v3230 = vsub.f32 %v2508, %v2838
      %v3231 = vsub.f32 %v2513, %v2838
      %v3232 = vsub.f32 %v2518, %v2838
      %v3233 = vsub.f32 %v2523, %v2838
      %v3234 = vsub.f32 %v2528, %v2838
      %v3235 = vsub.f32 %v2533, %v2838
      %v3236 = vsub.f32 %v2538, %v2838
      %v3237 = vsub.f32 %v2543, %v2838
      %v3238 = vsub.f32 %v2548, %v2838
      %v3239 = vsub.f32 %v2553, %v2838
      %v3240 = vsub.f32 %v2558, %v2838
      %v3241 = vsub.f32 %v2563, %v2838
      %v3242 = vsub.f32 %v2568, %v2838
      %v3243 = vsub.f32 %v2573, %v2838
      %v3244 = vsub.f32 %v2578, %v2838
      %v3245 = vsub.f32 %v2583, %v2838
      %v3246 = vsub.f32 %v2588, %v2838
      %v3247 = vsub.f32 %v2593, %v2838
      %v3248 = vsub.f32 %v2598, %v2838
      %v3249 = vsub.f32 %v2603, %v2838
      %v3250 = vsub.f32 %v2608, %v2838
      %v3251 = vsub.f32 %v2613, %v2838
      %v3252 = vsub.f32 %v2618, %v2838
      %v3253 = vsub.f32 %v2623, %v2838
      %v3254 = vsub.f32 %v2628, %v2838
      %v3255 = vsub.f32 %v2633, %v2838
      %v3256 = vsub.f32 %v2638, %v2838
      %v3257 = vsub.f32 %v2643, %v2838
      %v3258 = vsub.f32 %v2648, %v2838
      %v3259 = vsub.f32 %v2653, %v2838
      %v3260 = vsub.f32 %v2658, %v2838
      %v3261 = vsub.f32 %v2663, %v2838
      %v3262 = vmul.f32 %v3230, %v2843
      %v3263 = vmul.f32 %v3231, %v2843
      %v3264 = vmul.f32 %v3232, %v2843
      %v3265 = vmul.f32 %v3233, %v2843
      %v3266 = vmul.f32 %v3234, %v2843
      %v3267 = vmul.f32 %v3235, %v2843
      %v3268 = vmul.f32 %v3236, %v2843
      %v3269 = vmul.f32 %v3237, %v2843
      %v3270 = vmul.f32 %v3238, %v2843
      %v3271 = vmul.f32 %v3239, %v2843
      %v3272 = vmul.f32 %v3240, %v2843
      %v3273 = vmul.f32 %v3241, %v2843
      %v3274 = vmul.f32 %v3242, %v2843
      %v3275 = vmul.f32 %v3243, %v2843
      %v3276 = vmul.f32 %v3244, %v2843
      %v3277 = vmul.f32 %v3245, %v2843
      %v3278 = vmul.f32 %v3246, %v2843
      %v3279 = vmul.f32 %v3247, %v2843
      %v3280 = vmul.f32 %v3248, %v2843
      %v3281 = vmul.f32 %v3249, %v2843
      %v3282 = vmul.f32 %v3250, %v2843
      %v3283 = vmul.f32 %v3251, %v2843
      %v3284 = vmul.f32 %v3252, %v2843
      %v3285 = vmul.f32 %v3253, %v2843
      %v3286 = vmul.f32 %v3254, %v2843
      %v3287 = vmul.f32 %v3255, %v2843
      %v3288 = vmul.f32 %v3256, %v2843
      %v3289 = vmul.f32 %v3257, %v2843
      %v3290 = vmul.f32 %v3258, %v2843
      %v3291 = vmul.f32 %v3259, %v2843
      %v3292 = vmul.f32 %v3260, %v2843
      %v3293 = vmul.f32 %v3261, %v2843
      %v3294 = vmax.f32 %v3262, 0.0
      %v3295 = vmax.f32 %v3263, 0.0
      %v3296 = vmax.f32 %v3264, 0.0
      %v3297 = vmax.f32 %v3265, 0.0
      %v3298 = vmax.f32 %v3266, 0.0
      %v3299 = vmax.f32 %v3267, 0.0
      %v3300 = vmax.f32 %v3268, 0.0
      %v3301 = vmax.f32 %v3269, 0.0
      %v3302 = vmax.f32 %v3270, 0.0
      %v3303 = vmax.f32 %v3271, 0.0
      %v3304 = vmax.f32 %v3272, 0.0
      %v3305 = vmax.f32 %v3273, 0.0
      %v3306 = vmax.f32 %v3274, 0.0
      %v3307 = vmax.f32 %v3275, 0.0
      %v3308 = vmax.f32 %v3276, 0.0
      %v3309 = vmax.f32 %v3277, 0.0
      %v3310 = vmax.f32 %v3278, 0.0
      %v3311 = vmax.f32 %v3279, 0.0
      %v3312 = vmax.f32 %v3280, 0.0
      %v3313 = vmax.f32 %v3281, 0.0
      %v3314 = vmax.f32 %v3282, 0.0
      %v3315 = vmax.f32 %v3283, 0.0
      %v3316 = vmax.f32 %v3284, 0.0
      %v3317 = vmax.f32 %v3285, 0.0
      %v3318 = vmax.f32 %v3286, 0.0
      %v3319 = vmax.f32 %v3287, 0.0
      %v3320 = vmax.f32 %v3288, 0.0
      %v3321 = vmax.f32 %v3289, 0.0
      %v3322 = vmax.f32 %v3290, 0.0
      %v3323 = vmax.f32 %v3291, 0.0
      %v3324 = vmax.f32 %v3292, 0.0
      %v3325 = vmax.f32 %v3293, 0.0
      %s3326 = scalar_lea.vmem %s143, 768
      %3327 = vst.msk [vmem:[%s3326] sm:$0xff] %vm623, %v3294
      %3328 = vst.msk [vmem:[%s3326 + $0x8] sm:$0xff] %vm623, %v3295
      %3329 = vst.msk [vmem:[%s3326 + $0x10] sm:$0xff] %vm623, %v3296
      %3330 = vst.msk [vmem:[%s3326 + $0x18] sm:$0xff] %vm623, %v3297
      %3331 = vst.msk [vmem:[%s3326 + $0x20] sm:$0xff] %vm623, %v3298
      %3332 = vst.msk [vmem:[%s3326 + $0x28] sm:$0xff] %vm623, %v3299
      %3333 = vst.msk [vmem:[%s3326 + $0x30] sm:$0xff] %vm623, %v3300
      %3334 = vst.msk [vmem:[%s3326 + $0x38] sm:$0xff] %vm623, %v3301
      %3335 = vst.msk [vmem:[%s3326 + $0x40] sm:$0xff] %vm623, %v3302
      %3336 = vst.msk [vmem:[%s3326 + $0x48] sm:$0xff] %vm623, %v3303
      %3337 = vst.msk [vmem:[%s3326 + $0x50] sm:$0xff] %vm623, %v3304
      %3338 = vst.msk [vmem:[%s3326 + $0x58] sm:$0xff] %vm623, %v3305
      %3339 = vst.msk [vmem:[%s3326 + $0x60] sm:$0xff] %vm623, %v3306
      %3340 = vst.msk [vmem:[%s3326 + $0x68] sm:$0xff] %vm623, %v3307
      %3341 = vst.msk [vmem:[%s3326 + $0x70] sm:$0xff] %vm623, %v3308
      %3342 = vst.msk [vmem:[%s3326 + $0x78] sm:$0xff] %vm623, %v3309
      %3343 = vst.msk [vmem:[%s3326 + $0x80] sm:$0xff] %vm623, %v3310
      %3344 = vst.msk [vmem:[%s3326 + $0x88] sm:$0xff] %vm623, %v3311
      %3345 = vst.msk [vmem:[%s3326 + $0x90] sm:$0xff] %vm623, %v3312
      %3346 = vst.msk [vmem:[%s3326 + $0x98] sm:$0xff] %vm623, %v3313
      %3347 = vst.msk [vmem:[%s3326 + $0xa0] sm:$0xff] %vm623, %v3314
      %3348 = vst.msk [vmem:[%s3326 + $0xa8] sm:$0xff] %vm623, %v3315
      %3349 = vst.msk [vmem:[%s3326 + $0xb0] sm:$0xff] %vm623, %v3316
      %3350 = vst.msk [vmem:[%s3326 + $0xb8] sm:$0xff] %vm623, %v3317
      %3351 = vst.msk [vmem:[%s3326 + $0xc0] sm:$0xff] %vm623, %v3318
      %3352 = vst.msk [vmem:[%s3326 + $0xc8] sm:$0xff] %vm623, %v3319
      %3353 = vst.msk [vmem:[%s3326 + $0xd0] sm:$0xff] %vm623, %v3320
      %3354 = vst.msk [vmem:[%s3326 + $0xd8] sm:$0xff] %vm623, %v3321
      %3355 = vst.msk [vmem:[%s3326 + $0xe0] sm:$0xff] %vm623, %v3322
      %3356 = vst.msk [vmem:[%s3326 + $0xe8] sm:$0xff] %vm623, %v3323
      %3357 = vst.msk [vmem:[%s3326 + $0xf0] sm:$0xff] %vm623, %v3324
      %3358 = vst.msk [vmem:[%s3326 + $0xf8] sm:$0xff] %vm623, %v3325
      %p3359 = scmp.lt.s32.totalorder %s13, 1
      %s3360 = scalar_select %p3359, %s13, 1
      %s3361 = smul.addr %s3360, 128
      %s3362 = smul.addr %s3361, 8
      %s3363 = scalar_lea.vmem %s2, %s3362
      // Predicated region
      $region29: #{tpu_custom_call.1} parent=27 // pred_check
        %p3364 = pneg %p78
      $region30: #{tpu_custom_call.1} parent=27 // pred_check_branch
        %3366 = sbr.rel (%p3364) target = $region32
      $region31: #{tpu_custom_call.1} parent=27 // pred_region
        _
      $region32: #{tpu_custom_call.1} parent=27 // pred_fallthru
        _
    $region28: #{tpu_custom_call.1} parent=5 // pred_fallthru
      _
    %p3367 = scmp.le.s32.totalorder 2, %s8
    // Predicated region
    $region33: #{tpu_custom_call.1} parent=5 // pred_check
      %p3368 = pneg %p3367
    $region34: #{tpu_custom_call.1} parent=5 // pred_check_branch
      %3370 = sbr.rel (%p3368) target = $region36
    $region35: #{tpu_custom_call.1} parent=5 // pred_region
      %s3371 = ssub.s32 %s8, 2
      // Predicated region
      $region37: #{tpu_custom_call.1} parent=35 // pred_check
        %p3372 = pneg %p84
      $region38: #{tpu_custom_call.1} parent=35 // pred_check_branch
        %3374 = sbr.rel (%p3372) target = $region40
      $region39: #{tpu_custom_call.1} parent=35 // pred_region
        %p3375 = scmp.lt.s32.totalorder %s14, 1
        %s3376 = scalar_select %p3375, %s14, 1
        %s3377 = smul.addr %s3376, 128
        %s3378 = smul.addr %s3377, 8
        %s3379 = scalar_lea.vmem %s2, %s3378
      $region40: #{tpu_custom_call.1} parent=35 // pred_fallthru
        _
    $region36: #{tpu_custom_call.1} parent=5 // pred_fallthru
      _
  $region6: #{tpu_custom_call.1} parent=0 // loop_footer
    %s12 = sadd.s32 1, %s8
  $region7: #{tpu_custom_call.1} parent=0 // loop_footer_branch
    %7 = sbr.rel target = $region3
  $region8: #{tpu_custom_call.1} parent=0 // loop_exit
    _

</llo_original>
